<compile_context>
chip_gen: v7x
topology: tpu7x:2x2x1
jax: 0.10.0
libtpu: 0.0.40
codegen_flags: <defaults>
</compile_context>

<pallas_src>
import functools

import jax
import jax.numpy as jnp
from jax import lax
from jax.experimental import pallas as pl
from jax.experimental.pallas import tpu as pltpu


def _sparse_proj_fused_kernel(x_ref, mw_ref, pw_ref, o_ref, *,
                              chans, nb, W, HW, eps, neg_slope):
    """All 4 proj blocks for `nb` batch elements; activations stay on-chip.

    x_ref : (nb, Cin, HW)          input, spatial flattened onto lanes
    mw_ref: (4, 9, R, HW)          mask-folded depthwise weights,
                                   row layout = b_local*ci + c (zero padded)
    pw_ref: (4, R, Kpad)           block-diagonal (over batch) pointwise weights
    o_ref : (nb, Cout, HW)
    """
    inv_hw = 1.0 / HW
    cin = chans[0][0]
    # Pack batch onto sublanes: row = b_local*ci + c (layout-free for Cin%8==0
    # or nb==1).
    x = x_ref[...].reshape(nb * cin, HW)

    for b, (ci, co) in enumerate(chans):              # statically unrolled
        ri, ro = nb * ci, nb * co

        # --- depthwise 3x3, padding=1: center tap + 8 lane rolls (XLU).
        # The zero-padding masks are pre-folded into mw, so wrapped lanes are
        # multiplied by exactly 0 (padding semantics preserved).
        acc = x * mw_ref[b, 4, :ri, :]
        for k in (0, 1, 2, 3, 5, 6, 7, 8):
            oy, ox = k // 3 - 1, k % 3 - 1
            shift = (-(oy * W + ox)) % HW             # rolled[p] == x[p + oy*W + ox]
            acc = acc + pltpu.roll(x, shift, 1) * mw_ref[b, k, :ri, :]

        # --- pointwise 1x1 conv on the (otherwise idle) MXU; block-diagonal
        # over the packed batch rows.  Conv biases are omitted: being constant
        # over H*W they are cancelled exactly by the InstanceNorm mean.
        y = jnp.dot(pw_ref[b, :ro, :ri], acc,
                    preferred_element_type=jnp.float32,
                    precision=lax.Precision.HIGHEST)

        # --- InstanceNorm2d (biased variance, no affine), two-pass form.
        mean = jnp.sum(y, axis=1, keepdims=True) * inv_hw
        d = y - mean
        var = jnp.sum(d * d, axis=1, keepdims=True) * inv_hw
        yn = d * lax.rsqrt(var + eps)

        # --- LeakyReLU
        x = jnp.where(yn >= 0, yn, neg_slope * yn)

    o_ref[...] = x.reshape(nb, chans[-1][1], HW)      # lane-dense (*, 256) store


def _pick_batch_tile(n):
    """Largest batch-per-step that still leaves >=2 grid steps (v7x: 2 TCs)."""
    if n <= 1:
        return 1
    target = max(1, n // 2)
    for nb in range(target, 0, -1):
        if n % nb == 0:
            return nb
    return 1


def sparse_proj_layer(x_nchw, params, *, eps=1e-5, neg_slope=0.01,
                      batch_per_step=None):
    """Forward pass equivalent to SparseProjLayer.forward.

    x_nchw : (N, C, H, W) float array (PyTorch layout).
    params : list of 4 dicts in PyTorch layout:
             w_dw (C,1,3,3), b_dw (C,), w_pw (Cout,Cin,1,1), b_pw (Cout,).
    batch_per_step : batch elements packed per grid step.  Default keeps >=2
             grid steps (both v7x TensorCores busy); pass N on single-TC
             v5e/v6e to collapse the grid to one step.
    """
    N, Cin, H, W = x_nchw.shape
    HW = H * W
    n_blocks = len(params)
    chans = tuple((int(p["w_pw"].shape[1]), int(p["w_pw"].shape[0])) for p in params)
    assert chans[0][0] == Cin
    out_c = chans[-1][1]

    nb = _pick_batch_tile(N) if batch_per_step is None else int(batch_per_step)
    assert N % nb == 0, (N, nb)
    cmax = max(max(ci, co) for ci, co in chans)
    R = max(8, ((nb * cmax + 7) // 8) * 8)            # sublane-aligned row pad
    Kpad = max(128, ((R + 127) // 128) * 128)         # lane-dense pointwise const

    # Per-tap validity masks (zero padding=1), folded into the depthwise weights.
    idx = jnp.arange(HW, dtype=jnp.int32)
    hh, ww = idx // W, idx % W
    masks = []
    for k in range(9):
        oy, ox = k // 3 - 1, k % 3 - 1
        ok = (hh + oy >= 0) & (hh + oy < H) & (ww + ox >= 0) & (ww + ox < W)
        masks.append(ok.astype(jnp.float32))
    masks = jnp.stack(masks)                          # (9, HW)

    mw_blocks, pw_blocks = [], []
    eye_nb = jnp.eye(nb, dtype=jnp.float32)
    for b, p in enumerate(params):
        ci, co = chans[b]
        w9 = p["w_dw"].reshape(ci, 9).astype(jnp.float32)        # (ci, 9)
        mw = w9.T[:, :, None] * masks[:, None, :]                # (9, ci, HW)
        mw = jnp.tile(mw, (1, nb, 1))                            # (9, nb*ci, HW)
        mw = jnp.pad(mw, ((0, 0), (0, R - nb * ci), (0, 0)))
        mw_blocks.append(mw)

        wpw = p["w_pw"].reshape(co, ci).astype(jnp.float32)      # (co, ci)
        bd = jnp.kron(eye_nb, wpw)                               # (nb*co, nb*ci)
        bd = jnp.pad(bd, ((0, R - nb * co), (0, Kpad - nb * ci)))
        pw_blocks.append(bd)
    mw_pack = jnp.stack(mw_blocks)                    # (n_blocks, 9, R, HW)
    pw_pack = jnp.stack(pw_blocks)                    # (n_blocks, R, Kpad)
    # NOTE: conv biases (b_dw, b_pw) are intentionally not packed: they are
    # constant over H*W, so InstanceNorm's mean subtraction removes them
    # exactly and they cannot influence the module output.

    x_flat = x_nchw.astype(jnp.float32).reshape(N, Cin, HW)      # free reshape

    kernel = functools.partial(_sparse_proj_fused_kernel, chans=chans, nb=nb,
                               W=W, HW=HW, eps=eps, neg_slope=neg_slope)

    y = pl.pallas_call(
        kernel,
        out_shape=jax.ShapeDtypeStruct((N, out_c, HW), jnp.float32),
        grid=(N // nb,),
        in_specs=[
            pl.BlockSpec((nb, Cin, HW), lambda n: (n, 0, 0)),
            pl.BlockSpec((n_blocks, 9, R, HW), lambda n: (0, 0, 0, 0)),
            pl.BlockSpec((n_blocks, R, Kpad), lambda n: (0, 0, 0)),
        ],
        out_specs=pl.BlockSpec((nb, out_c, HW), lambda n: (n, 0, 0)),
        compiler_params=pltpu.CompilerParams(dimension_semantics=("parallel",)),
    )(x_flat, mw_pack, pw_pack)

    return y.reshape(N, out_c, H, W)


def init_sparse_proj_params(key, in_c, out_c):
    """Deterministic synthetic parameters matching SparseProjLayer(in_c, out_c).

    Stored in PyTorch layout (depthwise (C,1,3,3), pointwise (Cout,Cin,1,1)) so
    a real checkpoint could be dropped in without transposition.
    """
    chans = [(in_c, in_c // 2), (in_c // 2, in_c // 4),
             (in_c // 4, in_c // 2), (in_c // 2, out_c)]
    params = []
    for ci, co in chans:
        key, k1, k2, k3, k4 = jax.random.split(key, 5)
        params.append(dict(
            w_dw=0.1 * jax.random.normal(k1, (ci, 1, 3, 3), jnp.float32),
            b_dw=0.1 * jax.random.normal(k2, (ci,), jnp.float32),
            w_pw=0.1 * jax.random.normal(k3, (co, ci, 1, 1), jnp.float32),
            b_pw=0.1 * jax.random.normal(k4, (co,), jnp.float32),
        ))
    return params


def sparse_proj_reference(x_nchw, params, *, eps=1e-5, neg_slope=0.01):
    """Pure-XLA reference (lax.conv, biases included) of the PyTorch module."""
    dn = ("NCHW", "OIHW", "NCHW")
    x = x_nchw.astype(jnp.float32)
    for p in params:
        ci = p["w_dw"].shape[0]
        x = lax.conv_general_dilated(
            x, p["w_dw"], (1, 1), ((1, 1), (1, 1)), dimension_numbers=dn,
            feature_group_count=ci, precision=lax.Precision.HIGHEST)
        x = x + p["b_dw"][None, :, None, None]
        x = lax.conv_general_dilated(
            x, p["w_pw"], (1, 1), ((0, 0), (0, 0)), dimension_numbers=dn,
            precision=lax.Precision.HIGHEST)
        x = x + p["b_pw"][None, :, None, None]
        mean = jnp.mean(x, axis=(2, 3), keepdims=True)
        var = jnp.mean(jnp.square(x - mean), axis=(2, 3), keepdims=True)
        x = (x - mean) * lax.rsqrt(var + eps)
        x = jnp.where(x >= 0, x, neg_slope * x)
    return x


if __name__ == "__main__":
    in_c, out_c, H, W = 8, 8, 16, 16

    key = jax.random.PRNGKey(0)
    key, kp = jax.random.split(key)
    params = init_sparse_proj_params(kp, in_c, out_c)

    fwd = jax.jit(sparse_proj_layer)

    # N=2 -> nb=1, grid=(2,) (v7x 2-TC friendly);
    # N=4 -> nb=2, grid=(2,) (exercises batch packing on sublanes).
    for N in (2, 4):
        key, kx = jax.random.split(key)
        x = jax.random.normal(kx, (N, in_c, H, W), jnp.float32)   # NCHW layout
        y = fwd(x, params)
        jax.block_until_ready(y)

        assert y.shape == (N, out_c, H, W), y.shape
        assert bool(jnp.all(jnp.isfinite(y)))

        # Numerical self-check against a pure-XLA reference (with biases).
        y_ref = sparse_proj_reference(x, params)
        max_err = float(jnp.max(jnp.abs(y - y_ref)))
        assert max_err < 2e-3, f"N={N}: mismatch vs reference, max abs err = {max_err}"

    print("KERNEL_OK")
</pallas_src>

<mosaic_0001>
module attributes {stable_mosaic.version = 11 : i64} {
  func.func @_sparse_proj_fused_kernel(%arg0: i32, %arg1: memref<1x8x256xf32, #tpu.memory_space<vmem>>, %arg2: memref<4x9x8x256xf32, #tpu.memory_space<vmem>>, %arg3: memref<4x8x128xf32, #tpu.memory_space<vmem>>, %arg4: memref<1x8x256xf32, #tpu.memory_space<vmem>>) attributes {dimension_semantics = [#tpu.dimension_semantics<parallel>], iteration_bounds = array<i64: 2>, scalar_prefetch = 0 : i64, scratch_operands = 0 : i64, tpu.core_type = #tpu.core_type<tc>, window_params = [{transform_indices = @transform_0, window_bounds = array<i64: 1, 8, 256>}, {pipeline_mode = #tpu.pipeline_mode<synchronous>, transform_indices = @transform_1, window_bounds = array<i64: 4, 9, 8, 256>}, {pipeline_mode = #tpu.pipeline_mode<synchronous>, transform_indices = @transform_2, window_bounds = array<i64: 4, 8, 128>}, {transform_indices = @transform_3, window_bounds = array<i64: 1, 8, 256>}]} {
    %c0 = arith.constant 0 : index
    %c0_0 = arith.constant 0 : index
    %c0_1 = arith.constant 0 : index
    %0 = vector.load %arg1[%c0, %c0_0, %c0_1] : memref<1x8x256xf32, #tpu.memory_space<vmem>>, vector<1x8x256xf32>
    %1 = vector.shape_cast %0 : vector<1x8x256xf32> to vector<8x256xf32>
    %c0_2 = arith.constant 0 : index
    %c4 = arith.constant 4 : index
    %c0_3 = arith.constant 0 : index
    %c0_4 = arith.constant 0 : index
    %2 = vector.load %arg2[%c0_2, %c4, %c0_3, %c0_4] : memref<4x9x8x256xf32, #tpu.memory_space<vmem>>, vector<1x1x8x256xf32>
    %3 = vector.shape_cast %2 : vector<1x1x8x256xf32> to vector<8x256xf32>
    %4 = arith.mulf %1, %3 : vector<8x256xf32>
    %c17_i32 = arith.constant 17 : i32
    %5 = tpu.dynamic_rotate %1 by %c17_i32 dim 1 : vector<8x256xf32>, i32 -> vector<8x256xf32>
    %c0_5 = arith.constant 0 : index
    %c0_6 = arith.constant 0 : index
    %c0_7 = arith.constant 0 : index
    %c0_8 = arith.constant 0 : index
    %6 = vector.load %arg2[%c0_5, %c0_6, %c0_7, %c0_8] : memref<4x9x8x256xf32, #tpu.memory_space<vmem>>, vector<1x1x8x256xf32>
    %7 = vector.shape_cast %6 : vector<1x1x8x256xf32> to vector<8x256xf32>
    %8 = arith.mulf %5, %7 : vector<8x256xf32>
    %9 = arith.addf %4, %8 : vector<8x256xf32>
    %c16_i32 = arith.constant 16 : i32
    %10 = tpu.dynamic_rotate %1 by %c16_i32 dim 1 : vector<8x256xf32>, i32 -> vector<8x256xf32>
    %c0_9 = arith.constant 0 : index
    %c1 = arith.constant 1 : index
    %c0_10 = arith.constant 0 : index
    %c0_11 = arith.constant 0 : index
    %11 = vector.load %arg2[%c0_9, %c1, %c0_10, %c0_11] : memref<4x9x8x256xf32, #tpu.memory_space<vmem>>, vector<1x1x8x256xf32>
    %12 = vector.shape_cast %11 : vector<1x1x8x256xf32> to vector<8x256xf32>
    %13 = arith.mulf %10, %12 : vector<8x256xf32>
    %14 = arith.addf %9, %13 : vector<8x256xf32>
    %c15_i32 = arith.constant 15 : i32
    %15 = tpu.dynamic_rotate %1 by %c15_i32 dim 1 : vector<8x256xf32>, i32 -> vector<8x256xf32>
    %c0_12 = arith.constant 0 : index
    %c2 = arith.constant 2 : index
    %c0_13 = arith.constant 0 : index
    %c0_14 = arith.constant 0 : index
    %16 = vector.load %arg2[%c0_12, %c2, %c0_13, %c0_14] : memref<4x9x8x256xf32, #tpu.memory_space<vmem>>, vector<1x1x8x256xf32>
    %17 = vector.shape_cast %16 : vector<1x1x8x256xf32> to vector<8x256xf32>
    %18 = arith.mulf %15, %17 : vector<8x256xf32>
    %19 = arith.addf %14, %18 : vector<8x256xf32>
    %c1_i32 = arith.constant 1 : i32
    %20 = tpu.dynamic_rotate %1 by %c1_i32 dim 1 : vector<8x256xf32>, i32 -> vector<8x256xf32>
    %c0_15 = arith.constant 0 : index
    %c3 = arith.constant 3 : index
    %c0_16 = arith.constant 0 : index
    %c0_17 = arith.constant 0 : index
    %21 = vector.load %arg2[%c0_15, %c3, %c0_16, %c0_17] : memref<4x9x8x256xf32, #tpu.memory_space<vmem>>, vector<1x1x8x256xf32>
    %22 = vector.shape_cast %21 : vector<1x1x8x256xf32> to vector<8x256xf32>
    %23 = arith.mulf %20, %22 : vector<8x256xf32>
    %24 = arith.addf %19, %23 : vector<8x256xf32>
    %c255_i32 = arith.constant 255 : i32
    %25 = tpu.dynamic_rotate %1 by %c255_i32 dim 1 : vector<8x256xf32>, i32 -> vector<8x256xf32>
    %c0_18 = arith.constant 0 : index
    %c5 = arith.constant 5 : index
    %c0_19 = arith.constant 0 : index
    %c0_20 = arith.constant 0 : index
    %26 = vector.load %arg2[%c0_18, %c5, %c0_19, %c0_20] : memref<4x9x8x256xf32, #tpu.memory_space<vmem>>, vector<1x1x8x256xf32>
    %27 = vector.shape_cast %26 : vector<1x1x8x256xf32> to vector<8x256xf32>
    %28 = arith.mulf %25, %27 : vector<8x256xf32>
    %29 = arith.addf %24, %28 : vector<8x256xf32>
    %c241_i32 = arith.constant 241 : i32
    %30 = tpu.dynamic_rotate %1 by %c241_i32 dim 1 : vector<8x256xf32>, i32 -> vector<8x256xf32>
    %c0_21 = arith.constant 0 : index
    %c6 = arith.constant 6 : index
    %c0_22 = arith.constant 0 : index
    %c0_23 = arith.constant 0 : index
    %31 = vector.load %arg2[%c0_21, %c6, %c0_22, %c0_23] : memref<4x9x8x256xf32, #tpu.memory_space<vmem>>, vector<1x1x8x256xf32>
    %32 = vector.shape_cast %31 : vector<1x1x8x256xf32> to vector<8x256xf32>
    %33 = arith.mulf %30, %32 : vector<8x256xf32>
    %34 = arith.addf %29, %33 : vector<8x256xf32>
    %c240_i32 = arith.constant 240 : i32
    %35 = tpu.dynamic_rotate %1 by %c240_i32 dim 1 : vector<8x256xf32>, i32 -> vector<8x256xf32>
    %c0_24 = arith.constant 0 : index
    %c7 = arith.constant 7 : index
    %c0_25 = arith.constant 0 : index
    %c0_26 = arith.constant 0 : index
    %36 = vector.load %arg2[%c0_24, %c7, %c0_25, %c0_26] : memref<4x9x8x256xf32, #tpu.memory_space<vmem>>, vector<1x1x8x256xf32>
    %37 = vector.shape_cast %36 : vector<1x1x8x256xf32> to vector<8x256xf32>
    %38 = arith.mulf %35, %37 : vector<8x256xf32>
    %39 = arith.addf %34, %38 : vector<8x256xf32>
    %c239_i32 = arith.constant 239 : i32
    %40 = tpu.dynamic_rotate %1 by %c239_i32 dim 1 : vector<8x256xf32>, i32 -> vector<8x256xf32>
    %c0_27 = arith.constant 0 : index
    %c8 = arith.constant 8 : index
    %c0_28 = arith.constant 0 : index
    %c0_29 = arith.constant 0 : index
    %41 = vector.load %arg2[%c0_27, %c8, %c0_28, %c0_29] : memref<4x9x8x256xf32, #tpu.memory_space<vmem>>, vector<1x1x8x256xf32>
    %42 = vector.shape_cast %41 : vector<1x1x8x256xf32> to vector<8x256xf32>
    %43 = arith.mulf %40, %42 : vector<8x256xf32>
    %44 = arith.addf %39, %43 : vector<8x256xf32>
    %c0_30 = arith.constant 0 : index
    %c0_31 = arith.constant 0 : index
    %c0_32 = arith.constant 0 : index
    %45 = vector.load %arg3[%c0_30, %c0_31, %c0_32] : memref<4x8x128xf32, #tpu.memory_space<vmem>>, vector<1x4x8xf32>
    %46 = vector.shape_cast %45 : vector<1x4x8xf32> to vector<4x8xf32>
    %cst = arith.constant dense<0.000000e+00> : vector<4x256xf32>
    %47 = tpu.matmul %46, %44, %cst {dimension_numbers = #tpu.dot_dimension_numbers<[1], [0], [0], [1], [0, 0, 1, 1], [], []>, precision = #tpu.contract_precision<fp32>} : vector<4x8xf32>, vector<8x256xf32>, vector<4x256xf32> -> vector<4x256xf32>
    %cst_33 = arith.constant dense<0.000000e+00> : vector<4xf32>
    %48 = vector.multi_reduction <add>, %47, %cst_33 [1] : vector<4x256xf32> to vector<4xf32>
    %49 = vector.shape_cast %48 : vector<4xf32> to vector<4x1xf32>
    %cst_34 = arith.constant 3.906250e-03 : f32
    %50 = vector.broadcast %cst_34 : f32 to vector<4x1xf32>
    %51 = arith.mulf %49, %50 : vector<4x1xf32>
    %52 = vector.broadcast %51 : vector<4x1xf32> to vector<4x256xf32>
    %53 = arith.subf %47, %52 : vector<4x256xf32>
    %54 = arith.mulf %53, %53 : vector<4x256xf32>
    %cst_35 = arith.constant dense<0.000000e+00> : vector<4xf32>
    %55 = vector.multi_reduction <add>, %54, %cst_35 [1] : vector<4x256xf32> to vector<4xf32>
    %56 = vector.shape_cast %55 : vector<4xf32> to vector<4x1xf32>
    %cst_36 = arith.constant 3.906250e-03 : f32
    %57 = vector.broadcast %cst_36 : f32 to vector<4x1xf32>
    %58 = arith.mulf %56, %57 : vector<4x1xf32>
    %cst_37 = arith.constant 9.99999974E-6 : f32
    %59 = vector.broadcast %cst_37 : f32 to vector<4x1xf32>
    %60 = arith.addf %58, %59 : vector<4x1xf32>
    %61 = math.rsqrt %60 : vector<4x1xf32>
    %62 = vector.broadcast %61 : vector<4x1xf32> to vector<4x256xf32>
    %63 = arith.mulf %53, %62 : vector<4x256xf32>
    %cst_38 = arith.constant 0.000000e+00 : f32
    %64 = vector.broadcast %cst_38 : f32 to vector<4x256xf32>
    %65 = arith.cmpf oge, %63, %64 : vector<4x256xf32>
    %cst_39 = arith.constant 0.00999999977 : f32
    %66 = vector.broadcast %cst_39 : f32 to vector<4x256xf32>
    %67 = arith.mulf %66, %63 : vector<4x256xf32>
    %68 = arith.select %65, %63, %67 : vector<4x256xi1>, vector<4x256xf32>
    %c1_40 = arith.constant 1 : index
    %c4_41 = arith.constant 4 : index
    %c0_42 = arith.constant 0 : index
    %c0_43 = arith.constant 0 : index
    %69 = vector.load %arg2[%c1_40, %c4_41, %c0_42, %c0_43] : memref<4x9x8x256xf32, #tpu.memory_space<vmem>>, vector<1x1x4x256xf32>
    %70 = vector.shape_cast %69 : vector<1x1x4x256xf32> to vector<4x256xf32>
    %71 = arith.mulf %68, %70 : vector<4x256xf32>
    %c17_i32_44 = arith.constant 17 : i32
    %72 = tpu.dynamic_rotate %68 by %c17_i32_44 dim 1 : vector<4x256xf32>, i32 -> vector<4x256xf32>
    %c1_45 = arith.constant 1 : index
    %c0_46 = arith.constant 0 : index
    %c0_47 = arith.constant 0 : index
    %c0_48 = arith.constant 0 : index
    %73 = vector.load %arg2[%c1_45, %c0_46, %c0_47, %c0_48] : memref<4x9x8x256xf32, #tpu.memory_space<vmem>>, vector<1x1x4x256xf32>
    %74 = vector.shape_cast %73 : vector<1x1x4x256xf32> to vector<4x256xf32>
    %75 = arith.mulf %72, %74 : vector<4x256xf32>
    %76 = arith.addf %71, %75 : vector<4x256xf32>
    %c16_i32_49 = arith.constant 16 : i32
    %77 = tpu.dynamic_rotate %68 by %c16_i32_49 dim 1 : vector<4x256xf32>, i32 -> vector<4x256xf32>
    %c1_50 = arith.constant 1 : index
    %c1_51 = arith.constant 1 : index
    %c0_52 = arith.constant 0 : index
    %c0_53 = arith.constant 0 : index
    %78 = vector.load %arg2[%c1_50, %c1_51, %c0_52, %c0_53] : memref<4x9x8x256xf32, #tpu.memory_space<vmem>>, vector<1x1x4x256xf32>
    %79 = vector.shape_cast %78 : vector<1x1x4x256xf32> to vector<4x256xf32>
    %80 = arith.mulf %77, %79 : vector<4x256xf32>
    %81 = arith.addf %76, %80 : vector<4x256xf32>
    %c15_i32_54 = arith.constant 15 : i32
    %82 = tpu.dynamic_rotate %68 by %c15_i32_54 dim 1 : vector<4x256xf32>, i32 -> vector<4x256xf32>
    %c1_55 = arith.constant 1 : index
    %c2_56 = arith.constant 2 : index
    %c0_57 = arith.constant 0 : index
    %c0_58 = arith.constant 0 : index
    %83 = vector.load %arg2[%c1_55, %c2_56, %c0_57, %c0_58] : memref<4x9x8x256xf32, #tpu.memory_space<vmem>>, vector<1x1x4x256xf32>
    %84 = vector.shape_cast %83 : vector<1x1x4x256xf32> to vector<4x256xf32>
    %85 = arith.mulf %82, %84 : vector<4x256xf32>
    %86 = arith.addf %81, %85 : vector<4x256xf32>
    %c1_i32_59 = arith.constant 1 : i32
    %87 = tpu.dynamic_rotate %68 by %c1_i32_59 dim 1 : vector<4x256xf32>, i32 -> vector<4x256xf32>
    %c1_60 = arith.constant 1 : index
    %c3_61 = arith.constant 3 : index
    %c0_62 = arith.constant 0 : index
    %c0_63 = arith.constant 0 : index
    %88 = vector.load %arg2[%c1_60, %c3_61, %c0_62, %c0_63] : memref<4x9x8x256xf32, #tpu.memory_space<vmem>>, vector<1x1x4x256xf32>
    %89 = vector.shape_cast %88 : vector<1x1x4x256xf32> to vector<4x256xf32>
    %90 = arith.mulf %87, %89 : vector<4x256xf32>
    %91 = arith.addf %86, %90 : vector<4x256xf32>
    %c255_i32_64 = arith.constant 255 : i32
    %92 = tpu.dynamic_rotate %68 by %c255_i32_64 dim 1 : vector<4x256xf32>, i32 -> vector<4x256xf32>
    %c1_65 = arith.constant 1 : index
    %c5_66 = arith.constant 5 : index
    %c0_67 = arith.constant 0 : index
    %c0_68 = arith.constant 0 : index
    %93 = vector.load %arg2[%c1_65, %c5_66, %c0_67, %c0_68] : memref<4x9x8x256xf32, #tpu.memory_space<vmem>>, vector<1x1x4x256xf32>
    %94 = vector.shape_cast %93 : vector<1x1x4x256xf32> to vector<4x256xf32>
    %95 = arith.mulf %92, %94 : vector<4x256xf32>
    %96 = arith.addf %91, %95 : vector<4x256xf32>
    %c241_i32_69 = arith.constant 241 : i32
    %97 = tpu.dynamic_rotate %68 by %c241_i32_69 dim 1 : vector<4x256xf32>, i32 -> vector<4x256xf32>
    %c1_70 = arith.constant 1 : index
    %c6_71 = arith.constant 6 : index
    %c0_72 = arith.constant 0 : index
    %c0_73 = arith.constant 0 : index
    %98 = vector.load %arg2[%c1_70, %c6_71, %c0_72, %c0_73] : memref<4x9x8x256xf32, #tpu.memory_space<vmem>>, vector<1x1x4x256xf32>
    %99 = vector.shape_cast %98 : vector<1x1x4x256xf32> to vector<4x256xf32>
    %100 = arith.mulf %97, %99 : vector<4x256xf32>
    %101 = arith.addf %96, %100 : vector<4x256xf32>
    %c240_i32_74 = arith.constant 240 : i32
    %102 = tpu.dynamic_rotate %68 by %c240_i32_74 dim 1 : vector<4x256xf32>, i32 -> vector<4x256xf32>
    %c1_75 = arith.constant 1 : index
    %c7_76 = arith.constant 7 : index
    %c0_77 = arith.constant 0 : index
    %c0_78 = arith.constant 0 : index
    %103 = vector.load %arg2[%c1_75, %c7_76, %c0_77, %c0_78] : memref<4x9x8x256xf32, #tpu.memory_space<vmem>>, vector<1x1x4x256xf32>
    %104 = vector.shape_cast %103 : vector<1x1x4x256xf32> to vector<4x256xf32>
    %105 = arith.mulf %102, %104 : vector<4x256xf32>
    %106 = arith.addf %101, %105 : vector<4x256xf32>
    %c239_i32_79 = arith.constant 239 : i32
    %107 = tpu.dynamic_rotate %68 by %c239_i32_79 dim 1 : vector<4x256xf32>, i32 -> vector<4x256xf32>
    %c1_80 = arith.constant 1 : index
    %c8_81 = arith.constant 8 : index
    %c0_82 = arith.constant 0 : index
    %c0_83 = arith.constant 0 : index
    %108 = vector.load %arg2[%c1_80, %c8_81, %c0_82, %c0_83] : memref<4x9x8x256xf32, #tpu.memory_space<vmem>>, vector<1x1x4x256xf32>
    %109 = vector.shape_cast %108 : vector<1x1x4x256xf32> to vector<4x256xf32>
    %110 = arith.mulf %107, %109 : vector<4x256xf32>
    %111 = arith.addf %106, %110 : vector<4x256xf32>
    %c1_84 = arith.constant 1 : index
    %c0_85 = arith.constant 0 : index
    %c0_86 = arith.constant 0 : index
    %112 = vector.load %arg3[%c1_84, %c0_85, %c0_86] : memref<4x8x128xf32, #tpu.memory_space<vmem>>, vector<1x2x4xf32>
    %113 = vector.shape_cast %112 : vector<1x2x4xf32> to vector<2x4xf32>
    %cst_87 = arith.constant dense<0.000000e+00> : vector<2x256xf32>
    %114 = tpu.matmul %113, %111, %cst_87 {dimension_numbers = #tpu.dot_dimension_numbers<[1], [0], [0], [1], [0, 0, 1, 1], [], []>, precision = #tpu.contract_precision<fp32>} : vector<2x4xf32>, vector<4x256xf32>, vector<2x256xf32> -> vector<2x256xf32>
    %cst_88 = arith.constant dense<0.000000e+00> : vector<2xf32>
    %115 = vector.multi_reduction <add>, %114, %cst_88 [1] : vector<2x256xf32> to vector<2xf32>
    %116 = vector.shape_cast %115 : vector<2xf32> to vector<2x1xf32>
    %cst_89 = arith.constant 3.906250e-03 : f32
    %117 = vector.broadcast %cst_89 : f32 to vector<2x1xf32>
    %118 = arith.mulf %116, %117 : vector<2x1xf32>
    %119 = vector.broadcast %118 : vector<2x1xf32> to vector<2x256xf32>
    %120 = arith.subf %114, %119 : vector<2x256xf32>
    %121 = arith.mulf %120, %120 : vector<2x256xf32>
    %cst_90 = arith.constant dense<0.000000e+00> : vector<2xf32>
    %122 = vector.multi_reduction <add>, %121, %cst_90 [1] : vector<2x256xf32> to vector<2xf32>
    %123 = vector.shape_cast %122 : vector<2xf32> to vector<2x1xf32>
    %cst_91 = arith.constant 3.906250e-03 : f32
    %124 = vector.broadcast %cst_91 : f32 to vector<2x1xf32>
    %125 = arith.mulf %123, %124 : vector<2x1xf32>
    %cst_92 = arith.constant 9.99999974E-6 : f32
    %126 = vector.broadcast %cst_92 : f32 to vector<2x1xf32>
    %127 = arith.addf %125, %126 : vector<2x1xf32>
    %128 = math.rsqrt %127 : vector<2x1xf32>
    %129 = vector.broadcast %128 : vector<2x1xf32> to vector<2x256xf32>
    %130 = arith.mulf %120, %129 : vector<2x256xf32>
    %cst_93 = arith.constant 0.000000e+00 : f32
    %131 = vector.broadcast %cst_93 : f32 to vector<2x256xf32>
    %132 = arith.cmpf oge, %130, %131 : vector<2x256xf32>
    %cst_94 = arith.constant 0.00999999977 : f32
    %133 = vector.broadcast %cst_94 : f32 to vector<2x256xf32>
    %134 = arith.mulf %133, %130 : vector<2x256xf32>
    %135 = arith.select %132, %130, %134 : vector<2x256xi1>, vector<2x256xf32>
    %c2_95 = arith.constant 2 : index
    %c4_96 = arith.constant 4 : index
    %c0_97 = arith.constant 0 : index
    %c0_98 = arith.constant 0 : index
    %136 = vector.load %arg2[%c2_95, %c4_96, %c0_97, %c0_98] : memref<4x9x8x256xf32, #tpu.memory_space<vmem>>, vector<1x1x2x256xf32>
    %137 = vector.shape_cast %136 : vector<1x1x2x256xf32> to vector<2x256xf32>
    %138 = arith.mulf %135, %137 : vector<2x256xf32>
    %c17_i32_99 = arith.constant 17 : i32
    %139 = tpu.dynamic_rotate %135 by %c17_i32_99 dim 1 : vector<2x256xf32>, i32 -> vector<2x256xf32>
    %c2_100 = arith.constant 2 : index
    %c0_101 = arith.constant 0 : index
    %c0_102 = arith.constant 0 : index
    %c0_103 = arith.constant 0 : index
    %140 = vector.load %arg2[%c2_100, %c0_101, %c0_102, %c0_103] : memref<4x9x8x256xf32, #tpu.memory_space<vmem>>, vector<1x1x2x256xf32>
    %141 = vector.shape_cast %140 : vector<1x1x2x256xf32> to vector<2x256xf32>
    %142 = arith.mulf %139, %141 : vector<2x256xf32>
    %143 = arith.addf %138, %142 : vector<2x256xf32>
    %c16_i32_104 = arith.constant 16 : i32
    %144 = tpu.dynamic_rotate %135 by %c16_i32_104 dim 1 : vector<2x256xf32>, i32 -> vector<2x256xf32>
    %c2_105 = arith.constant 2 : index
    %c1_106 = arith.constant 1 : index
    %c0_107 = arith.constant 0 : index
    %c0_108 = arith.constant 0 : index
    %145 = vector.load %arg2[%c2_105, %c1_106, %c0_107, %c0_108] : memref<4x9x8x256xf32, #tpu.memory_space<vmem>>, vector<1x1x2x256xf32>
    %146 = vector.shape_cast %145 : vector<1x1x2x256xf32> to vector<2x256xf32>
    %147 = arith.mulf %144, %146 : vector<2x256xf32>
    %148 = arith.addf %143, %147 : vector<2x256xf32>
    %c15_i32_109 = arith.constant 15 : i32
    %149 = tpu.dynamic_rotate %135 by %c15_i32_109 dim 1 : vector<2x256xf32>, i32 -> vector<2x256xf32>
    %c2_110 = arith.constant 2 : index
    %c2_111 = arith.constant 2 : index
    %c0_112 = arith.constant 0 : index
    %c0_113 = arith.constant 0 : index
    %150 = vector.load %arg2[%c2_110, %c2_111, %c0_112, %c0_113] : memref<4x9x8x256xf32, #tpu.memory_space<vmem>>, vector<1x1x2x256xf32>
    %151 = vector.shape_cast %150 : vector<1x1x2x256xf32> to vector<2x256xf32>
    %152 = arith.mulf %149, %151 : vector<2x256xf32>
    %153 = arith.addf %148, %152 : vector<2x256xf32>
    %c1_i32_114 = arith.constant 1 : i32
    %154 = tpu.dynamic_rotate %135 by %c1_i32_114 dim 1 : vector<2x256xf32>, i32 -> vector<2x256xf32>
    %c2_115 = arith.constant 2 : index
    %c3_116 = arith.constant 3 : index
    %c0_117 = arith.constant 0 : index
    %c0_118 = arith.constant 0 : index
    %155 = vector.load %arg2[%c2_115, %c3_116, %c0_117, %c0_118] : memref<4x9x8x256xf32, #tpu.memory_space<vmem>>, vector<1x1x2x256xf32>
    %156 = vector.shape_cast %155 : vector<1x1x2x256xf32> to vector<2x256xf32>
    %157 = arith.mulf %154, %156 : vector<2x256xf32>
    %158 = arith.addf %153, %157 : vector<2x256xf32>
    %c255_i32_119 = arith.constant 255 : i32
    %159 = tpu.dynamic_rotate %135 by %c255_i32_119 dim 1 : vector<2x256xf32>, i32 -> vector<2x256xf32>
    %c2_120 = arith.constant 2 : index
    %c5_121 = arith.constant 5 : index
    %c0_122 = arith.constant 0 : index
    %c0_123 = arith.constant 0 : index
    %160 = vector.load %arg2[%c2_120, %c5_121, %c0_122, %c0_123] : memref<4x9x8x256xf32, #tpu.memory_space<vmem>>, vector<1x1x2x256xf32>
    %161 = vector.shape_cast %160 : vector<1x1x2x256xf32> to vector<2x256xf32>
    %162 = arith.mulf %159, %161 : vector<2x256xf32>
    %163 = arith.addf %158, %162 : vector<2x256xf32>
    %c241_i32_124 = arith.constant 241 : i32
    %164 = tpu.dynamic_rotate %135 by %c241_i32_124 dim 1 : vector<2x256xf32>, i32 -> vector<2x256xf32>
    %c2_125 = arith.constant 2 : index
    %c6_126 = arith.constant 6 : index
    %c0_127 = arith.constant 0 : index
    %c0_128 = arith.constant 0 : index
    %165 = vector.load %arg2[%c2_125, %c6_126, %c0_127, %c0_128] : memref<4x9x8x256xf32, #tpu.memory_space<vmem>>, vector<1x1x2x256xf32>
    %166 = vector.shape_cast %165 : vector<1x1x2x256xf32> to vector<2x256xf32>
    %167 = arith.mulf %164, %166 : vector<2x256xf32>
    %168 = arith.addf %163, %167 : vector<2x256xf32>
    %c240_i32_129 = arith.constant 240 : i32
    %169 = tpu.dynamic_rotate %135 by %c240_i32_129 dim 1 : vector<2x256xf32>, i32 -> vector<2x256xf32>
    %c2_130 = arith.constant 2 : index
    %c7_131 = arith.constant 7 : index
    %c0_132 = arith.constant 0 : index
    %c0_133 = arith.constant 0 : index
    %170 = vector.load %arg2[%c2_130, %c7_131, %c0_132, %c0_133] : memref<4x9x8x256xf32, #tpu.memory_space<vmem>>, vector<1x1x2x256xf32>
    %171 = vector.shape_cast %170 : vector<1x1x2x256xf32> to vector<2x256xf32>
    %172 = arith.mulf %169, %171 : vector<2x256xf32>
    %173 = arith.addf %168, %172 : vector<2x256xf32>
    %c239_i32_134 = arith.constant 239 : i32
    %174 = tpu.dynamic_rotate %135 by %c239_i32_134 dim 1 : vector<2x256xf32>, i32 -> vector<2x256xf32>
    %c2_135 = arith.constant 2 : index
    %c8_136 = arith.constant 8 : index
    %c0_137 = arith.constant 0 : index
    %c0_138 = arith.constant 0 : index
    %175 = vector.load %arg2[%c2_135, %c8_136, %c0_137, %c0_138] : memref<4x9x8x256xf32, #tpu.memory_space<vmem>>, vector<1x1x2x256xf32>
    %176 = vector.shape_cast %175 : vector<1x1x2x256xf32> to vector<2x256xf32>
    %177 = arith.mulf %174, %176 : vector<2x256xf32>
    %178 = arith.addf %173, %177 : vector<2x256xf32>
    %c2_139 = arith.constant 2 : index
    %c0_140 = arith.constant 0 : index
    %c0_141 = arith.constant 0 : index
    %179 = vector.load %arg3[%c2_139, %c0_140, %c0_141] : memref<4x8x128xf32, #tpu.memory_space<vmem>>, vector<1x4x2xf32>
    %180 = vector.shape_cast %179 : vector<1x4x2xf32> to vector<4x2xf32>
    %cst_142 = arith.constant dense<0.000000e+00> : vector<4x256xf32>
    %181 = tpu.matmul %180, %178, %cst_142 {dimension_numbers = #tpu.dot_dimension_numbers<[1], [0], [0], [1], [0, 0, 1, 1], [], []>, precision = #tpu.contract_precision<fp32>} : vector<4x2xf32>, vector<2x256xf32>, vector<4x256xf32> -> vector<4x256xf32>
    %cst_143 = arith.constant dense<0.000000e+00> : vector<4xf32>
    %182 = vector.multi_reduction <add>, %181, %cst_143 [1] : vector<4x256xf32> to vector<4xf32>
    %183 = vector.shape_cast %182 : vector<4xf32> to vector<4x1xf32>
    %cst_144 = arith.constant 3.906250e-03 : f32
    %184 = vector.broadcast %cst_144 : f32 to vector<4x1xf32>
    %185 = arith.mulf %183, %184 : vector<4x1xf32>
    %186 = vector.broadcast %185 : vector<4x1xf32> to vector<4x256xf32>
    %187 = arith.subf %181, %186 : vector<4x256xf32>
    %188 = arith.mulf %187, %187 : vector<4x256xf32>
    %cst_145 = arith.constant dense<0.000000e+00> : vector<4xf32>
    %189 = vector.multi_reduction <add>, %188, %cst_145 [1] : vector<4x256xf32> to vector<4xf32>
    %190 = vector.shape_cast %189 : vector<4xf32> to vector<4x1xf32>
    %cst_146 = arith.constant 3.906250e-03 : f32
    %191 = vector.broadcast %cst_146 : f32 to vector<4x1xf32>
    %192 = arith.mulf %190, %191 : vector<4x1xf32>
    %cst_147 = arith.constant 9.99999974E-6 : f32
    %193 = vector.broadcast %cst_147 : f32 to vector<4x1xf32>
    %194 = arith.addf %192, %193 : vector<4x1xf32>
    %195 = math.rsqrt %194 : vector<4x1xf32>
    %196 = vector.broadcast %195 : vector<4x1xf32> to vector<4x256xf32>
    %197 = arith.mulf %187, %196 : vector<4x256xf32>
    %cst_148 = arith.constant 0.000000e+00 : f32
    %198 = vector.broadcast %cst_148 : f32 to vector<4x256xf32>
    %199 = arith.cmpf oge, %197, %198 : vector<4x256xf32>
    %cst_149 = arith.constant 0.00999999977 : f32
    %200 = vector.broadcast %cst_149 : f32 to vector<4x256xf32>
    %201 = arith.mulf %200, %197 : vector<4x256xf32>
    %202 = arith.select %199, %197, %201 : vector<4x256xi1>, vector<4x256xf32>
    %c3_150 = arith.constant 3 : index
    %c4_151 = arith.constant 4 : index
    %c0_152 = arith.constant 0 : index
    %c0_153 = arith.constant 0 : index
    %203 = vector.load %arg2[%c3_150, %c4_151, %c0_152, %c0_153] : memref<4x9x8x256xf32, #tpu.memory_space<vmem>>, vector<1x1x4x256xf32>
    %204 = vector.shape_cast %203 : vector<1x1x4x256xf32> to vector<4x256xf32>
    %205 = arith.mulf %202, %204 : vector<4x256xf32>
    %c17_i32_154 = arith.constant 17 : i32
    %206 = tpu.dynamic_rotate %202 by %c17_i32_154 dim 1 : vector<4x256xf32>, i32 -> vector<4x256xf32>
    %c3_155 = arith.constant 3 : index
    %c0_156 = arith.constant 0 : index
    %c0_157 = arith.constant 0 : index
    %c0_158 = arith.constant 0 : index
    %207 = vector.load %arg2[%c3_155, %c0_156, %c0_157, %c0_158] : memref<4x9x8x256xf32, #tpu.memory_space<vmem>>, vector<1x1x4x256xf32>
    %208 = vector.shape_cast %207 : vector<1x1x4x256xf32> to vector<4x256xf32>
    %209 = arith.mulf %206, %208 : vector<4x256xf32>
    %210 = arith.addf %205, %209 : vector<4x256xf32>
    %c16_i32_159 = arith.constant 16 : i32
    %211 = tpu.dynamic_rotate %202 by %c16_i32_159 dim 1 : vector<4x256xf32>, i32 -> vector<4x256xf32>
    %c3_160 = arith.constant 3 : index
    %c1_161 = arith.constant 1 : index
    %c0_162 = arith.constant 0 : index
    %c0_163 = arith.constant 0 : index
    %212 = vector.load %arg2[%c3_160, %c1_161, %c0_162, %c0_163] : memref<4x9x8x256xf32, #tpu.memory_space<vmem>>, vector<1x1x4x256xf32>
    %213 = vector.shape_cast %212 : vector<1x1x4x256xf32> to vector<4x256xf32>
    %214 = arith.mulf %211, %213 : vector<4x256xf32>
    %215 = arith.addf %210, %214 : vector<4x256xf32>
    %c15_i32_164 = arith.constant 15 : i32
    %216 = tpu.dynamic_rotate %202 by %c15_i32_164 dim 1 : vector<4x256xf32>, i32 -> vector<4x256xf32>
    %c3_165 = arith.constant 3 : index
    %c2_166 = arith.constant 2 : index
    %c0_167 = arith.constant 0 : index
    %c0_168 = arith.constant 0 : index
    %217 = vector.load %arg2[%c3_165, %c2_166, %c0_167, %c0_168] : memref<4x9x8x256xf32, #tpu.memory_space<vmem>>, vector<1x1x4x256xf32>
    %218 = vector.shape_cast %217 : vector<1x1x4x256xf32> to vector<4x256xf32>
    %219 = arith.mulf %216, %218 : vector<4x256xf32>
    %220 = arith.addf %215, %219 : vector<4x256xf32>
    %c1_i32_169 = arith.constant 1 : i32
    %221 = tpu.dynamic_rotate %202 by %c1_i32_169 dim 1 : vector<4x256xf32>, i32 -> vector<4x256xf32>
    %c3_170 = arith.constant 3 : index
    %c3_171 = arith.constant 3 : index
    %c0_172 = arith.constant 0 : index
    %c0_173 = arith.constant 0 : index
    %222 = vector.load %arg2[%c3_170, %c3_171, %c0_172, %c0_173] : memref<4x9x8x256xf32, #tpu.memory_space<vmem>>, vector<1x1x4x256xf32>
    %223 = vector.shape_cast %222 : vector<1x1x4x256xf32> to vector<4x256xf32>
    %224 = arith.mulf %221, %223 : vector<4x256xf32>
    %225 = arith.addf %220, %224 : vector<4x256xf32>
    %c255_i32_174 = arith.constant 255 : i32
    %226 = tpu.dynamic_rotate %202 by %c255_i32_174 dim 1 : vector<4x256xf32>, i32 -> vector<4x256xf32>
    %c3_175 = arith.constant 3 : index
    %c5_176 = arith.constant 5 : index
    %c0_177 = arith.constant 0 : index
    %c0_178 = arith.constant 0 : index
    %227 = vector.load %arg2[%c3_175, %c5_176, %c0_177, %c0_178] : memref<4x9x8x256xf32, #tpu.memory_space<vmem>>, vector<1x1x4x256xf32>
    %228 = vector.shape_cast %227 : vector<1x1x4x256xf32> to vector<4x256xf32>
    %229 = arith.mulf %226, %228 : vector<4x256xf32>
    %230 = arith.addf %225, %229 : vector<4x256xf32>
    %c241_i32_179 = arith.constant 241 : i32
    %231 = tpu.dynamic_rotate %202 by %c241_i32_179 dim 1 : vector<4x256xf32>, i32 -> vector<4x256xf32>
    %c3_180 = arith.constant 3 : index
    %c6_181 = arith.constant 6 : index
    %c0_182 = arith.constant 0 : index
    %c0_183 = arith.constant 0 : index
    %232 = vector.load %arg2[%c3_180, %c6_181, %c0_182, %c0_183] : memref<4x9x8x256xf32, #tpu.memory_space<vmem>>, vector<1x1x4x256xf32>
    %233 = vector.shape_cast %232 : vector<1x1x4x256xf32> to vector<4x256xf32>
    %234 = arith.mulf %231, %233 : vector<4x256xf32>
    %235 = arith.addf %230, %234 : vector<4x256xf32>
    %c240_i32_184 = arith.constant 240 : i32
    %236 = tpu.dynamic_rotate %202 by %c240_i32_184 dim 1 : vector<4x256xf32>, i32 -> vector<4x256xf32>
    %c3_185 = arith.constant 3 : index
    %c7_186 = arith.constant 7 : index
    %c0_187 = arith.constant 0 : index
    %c0_188 = arith.constant 0 : index
    %237 = vector.load %arg2[%c3_185, %c7_186, %c0_187, %c0_188] : memref<4x9x8x256xf32, #tpu.memory_space<vmem>>, vector<1x1x4x256xf32>
    %238 = vector.shape_cast %237 : vector<1x1x4x256xf32> to vector<4x256xf32>
    %239 = arith.mulf %236, %238 : vector<4x256xf32>
    %240 = arith.addf %235, %239 : vector<4x256xf32>
    %c239_i32_189 = arith.constant 239 : i32
    %241 = tpu.dynamic_rotate %202 by %c239_i32_189 dim 1 : vector<4x256xf32>, i32 -> vector<4x256xf32>
    %c3_190 = arith.constant 3 : index
    %c8_191 = arith.constant 8 : index
    %c0_192 = arith.constant 0 : index
    %c0_193 = arith.constant 0 : index
    %242 = vector.load %arg2[%c3_190, %c8_191, %c0_192, %c0_193] : memref<4x9x8x256xf32, #tpu.memory_space<vmem>>, vector<1x1x4x256xf32>
    %243 = vector.shape_cast %242 : vector<1x1x4x256xf32> to vector<4x256xf32>
    %244 = arith.mulf %241, %243 : vector<4x256xf32>
    %245 = arith.addf %240, %244 : vector<4x256xf32>
    %c3_194 = arith.constant 3 : index
    %c0_195 = arith.constant 0 : index
    %c0_196 = arith.constant 0 : index
    %246 = vector.load %arg3[%c3_194, %c0_195, %c0_196] : memref<4x8x128xf32, #tpu.memory_space<vmem>>, vector<1x8x4xf32>
    %247 = vector.shape_cast %246 : vector<1x8x4xf32> to vector<8x4xf32>
    %cst_197 = arith.constant dense<0.000000e+00> : vector<8x256xf32>
    %248 = tpu.matmul %247, %245, %cst_197 {dimension_numbers = #tpu.dot_dimension_numbers<[1], [0], [0], [1], [0, 0, 1, 1], [], []>, precision = #tpu.contract_precision<fp32>} : vector<8x4xf32>, vector<4x256xf32>, vector<8x256xf32> -> vector<8x256xf32>
    %cst_198 = arith.constant dense<0.000000e+00> : vector<8xf32>
    %249 = vector.multi_reduction <add>, %248, %cst_198 [1] : vector<8x256xf32> to vector<8xf32>
    %250 = vector.shape_cast %249 : vector<8xf32> to vector<8x1xf32>
    %cst_199 = arith.constant 3.906250e-03 : f32
    %251 = vector.broadcast %cst_199 : f32 to vector<8x1xf32>
    %252 = arith.mulf %250, %251 : vector<8x1xf32>
    %253 = vector.broadcast %252 : vector<8x1xf32> to vector<8x256xf32>
    %254 = arith.subf %248, %253 : vector<8x256xf32>
    %255 = arith.mulf %254, %254 : vector<8x256xf32>
    %cst_200 = arith.constant dense<0.000000e+00> : vector<8xf32>
    %256 = vector.multi_reduction <add>, %255, %cst_200 [1] : vector<8x256xf32> to vector<8xf32>
    %257 = vector.shape_cast %256 : vector<8xf32> to vector<8x1xf32>
    %cst_201 = arith.constant 3.906250e-03 : f32
    %258 = vector.broadcast %cst_201 : f32 to vector<8x1xf32>
    %259 = arith.mulf %257, %258 : vector<8x1xf32>
    %cst_202 = arith.constant 9.99999974E-6 : f32
    %260 = vector.broadcast %cst_202 : f32 to vector<8x1xf32>
    %261 = arith.addf %259, %260 : vector<8x1xf32>
    %262 = math.rsqrt %261 : vector<8x1xf32>
    %263 = vector.broadcast %262 : vector<8x1xf32> to vector<8x256xf32>
    %264 = arith.mulf %254, %263 : vector<8x256xf32>
    %cst_203 = arith.constant 0.000000e+00 : f32
    %265 = vector.broadcast %cst_203 : f32 to vector<8x256xf32>
    %266 = arith.cmpf oge, %264, %265 : vector<8x256xf32>
    %cst_204 = arith.constant 0.00999999977 : f32
    %267 = vector.broadcast %cst_204 : f32 to vector<8x256xf32>
    %268 = arith.mulf %267, %264 : vector<8x256xf32>
    %269 = arith.select %266, %264, %268 : vector<8x256xi1>, vector<8x256xf32>
    %270 = vector.shape_cast %269 : vector<8x256xf32> to vector<1x8x256xf32>
    %c0_205 = arith.constant 0 : index
    %c0_206 = arith.constant 0 : index
    %c0_207 = arith.constant 0 : index
    %271 = vector.load %arg4[%c0_205, %c0_206, %c0_207] : memref<1x8x256xf32, #tpu.memory_space<vmem>>, vector<1x8x256xf32>
    tpu.vector_store %arg4[%c0_205, %c0_206, %c0_207], %270 {strides = array<i32>} : memref<1x8x256xf32, #tpu.memory_space<vmem>>, vector<1x8x256xf32>,
    return
  }
  func.func @transform_0(%arg0: i32) -> (i32, i32, i32) {
    %c0_i32 = arith.constant 0 : i32
    %c0_i32_0 = arith.constant 0 : i32
    %c0_i32_1 = arith.constant 0 : i32
    return %arg0, %c0_i32, %c0_i32_0 : i32, i32, i32
  }
  func.func @transform_1(%arg0: i32) -> (i32, i32, i32, i32) {
    %c0_i32 = arith.constant 0 : i32
    %c0_i32_0 = arith.constant 0 : i32
    %c0_i32_1 = arith.constant 0 : i32
    %c0_i32_2 = arith.constant 0 : i32
    %c0_i32_3 = arith.constant 0 : i32
    return %c0_i32, %c0_i32_0, %c0_i32_1, %c0_i32_2 : i32, i32, i32, i32
  }
  func.func @transform_2(%arg0: i32) -> (i32, i32, i32) {
    %c0_i32 = arith.constant 0 : i32
    %c0_i32_0 = arith.constant 0 : i32
    %c0_i32_1 = arith.constant 0 : i32
    %c0_i32_2 = arith.constant 0 : i32
    return %c0_i32, %c0_i32_0, %c0_i32_1 : i32, i32, i32
  }
  func.func @transform_3(%arg0: i32) -> (i32, i32, i32) {
    %c0_i32 = arith.constant 0 : i32
    %c0_i32_0 = arith.constant 0 : i32
    %c0_i32_1 = arith.constant 0 : i32
    return %arg0, %c0_i32, %c0_i32_0 : i32, i32, i32
  }
}

</mosaic_0001>

<llo_original>
// kernel: sparse_proj_layer.1
$region0: #{sparse_proj_layer.1}
  #allocation0 [shape = 'u32[]', space=smem, size = 0x4, offset = 0x4, fixed_abs, tag = 'smem constant byte address 0x4 - core index']
  #allocation1 [shape = 'u32[144,128]{1,0:T(1,128)}', space=vmem, size = 0x12000, scoped, tag = 'internal scratch']
  %s0 = inlined_call_operand.vmem [shape: f32[2,8,256], index: 0, kind: input, shape index: {}]
  %s1 = inlined_call_operand.vmem [shape: f32[4,9,8,256], index: 1, kind: input, shape index: {}]
  %s2 = inlined_call_operand.vmem [shape: f32[4,8,128], index: 2, kind: input, shape index: {}]
  %s3 = inlined_call_operand.vmem [shape: f32[2,8,256], index: 3, kind: output, shape index: {}]
  %s4 = sld [smem:[#allocation0]]
  $region45: #{sparse_proj_layer.1} parent=0
    _
  %s6 = ssub.s32 1, %s4
  %s7 = scalar_select 0, %s6, %s4
  loop: start=0, step=1, limit=4
  $region2: #{sparse_proj_layer.1} parent=0 // loop_pre_header
    _
  $region3: #{sparse_proj_layer.1} parent=0 // loop_header
    %s9 = sphi 0, %s13
    %p10 = scmp.ge.s32.totalorder %s9, 4
    %s19 = sphi 0, %s21
    %s22 = sphi 0, %s19
    %s23 = sphi 0, %s22
    %s39 = sphi 0, %s23
    %s43 = sphi 0, %s43
    %s45 = sphi 0, %s43
    %s46 = sphi 0, %s45
    %s60 = sphi 0, %s46
    %s64 = sphi 0, %s64
    %s66 = sphi 0, %s64
    %s67 = sphi 0, %s66
    %s81 = sphi 0, %s67
    %s87 = sphi 0, %s89
    %s90 = sphi 0, %s87
    %s91 = sphi 0, %s90
    %s107 = sphi 0, %s91
  $region4: #{sparse_proj_layer.1} parent=0 // loop_header_branch
    %12 = sbr.rel (%p10) target = $region8
  $region5: #{sparse_proj_layer.1} parent=0 // loop_body
    %s14 = ssub.s32 %s9, 1
    %s15 = ssub.s32 %s9, 2
    %s16 = sadd.s32 %s9, 1
    %s17 = ssub.s32 %s9, %s16
    %p18 = scmp.eq.s32.totalorder %s17, 0
    %s20 = sadd.s32 %s19, 1
    %s21 = scalar_select %p18, %s19, %s20
    %p24 = pneg %p18
    %p25 = scmp.eq.s32.totalorder %s9, 1
    %p26 = por %p24, %p25
    %p27 = scmp.ne.s32.totalorder %s19, %s22
    %p28 = scmp.eq.s32.totalorder %s9, 0
    %p29 = por %p27, %p28
    %p30 = scmp.ne.s32.totalorder %s19, %s22
    %p31 = scmp.eq.s32.totalorder %s14, 1
    %p32 = por %p30, %p31
    %p33 = scmp.ne.s32.totalorder %s22, %s23
    %p34 = scmp.eq.s32.totalorder %s14, 0
    %p35 = por %p33, %p34
    %p36 = scmp.ne.s32.totalorder %s22, %s23
    %p37 = scmp.eq.s32.totalorder %s15, 1
    %p38 = por %p36, %p37
    %p40 = scmp.ne.s32.totalorder %s23, %s39
    %p41 = scmp.eq.s32.totalorder %s15, 0
    %p42 = por %p40, %p41
    %s44 = sadd.s32 %s43, 1
    %p47 = scmp.eq.s32.totalorder %s9, 1
    %p48 = scmp.ne.s32.totalorder %s43, %s45
    %p49 = scmp.eq.s32.totalorder %s9, 0
    %p50 = por %p48, %p49
    %p51 = scmp.ne.s32.totalorder %s43, %s45
    %p52 = scmp.eq.s32.totalorder %s14, 1
    %p53 = por %p51, %p52
    %p54 = scmp.ne.s32.totalorder %s45, %s46
    %p55 = scmp.eq.s32.totalorder %s14, 0
    %p56 = por %p54, %p55
    %p57 = scmp.ne.s32.totalorder %s45, %s46
    %p58 = scmp.eq.s32.totalorder %s15, 1
    %p59 = por %p57, %p58
    %p61 = scmp.ne.s32.totalorder %s46, %s60
    %p62 = scmp.eq.s32.totalorder %s15, 0
    %p63 = por %p61, %p62
    %s65 = sadd.s32 %s64, 1
    %p68 = scmp.eq.s32.totalorder %s9, 1
    %p69 = scmp.ne.s32.totalorder %s64, %s66
    %p70 = scmp.eq.s32.totalorder %s9, 0
    %p71 = por %p69, %p70
    %p72 = scmp.ne.s32.totalorder %s64, %s66
    %p73 = scmp.eq.s32.totalorder %s14, 1
    %p74 = por %p72, %p73
    %p75 = scmp.ne.s32.totalorder %s66, %s67
    %p76 = scmp.eq.s32.totalorder %s14, 0
    %p77 = por %p75, %p76
    %p78 = scmp.ne.s32.totalorder %s66, %s67
    %p79 = scmp.eq.s32.totalorder %s15, 1
    %p80 = por %p78, %p79
    %p82 = scmp.ne.s32.totalorder %s67, %s81
    %p83 = scmp.eq.s32.totalorder %s15, 0
    %p84 = por %p82, %p83
    %s85 = ssub.s32 %s9, %s16
    %p86 = scmp.eq.s32.totalorder %s85, 0
    %s88 = sadd.s32 %s87, 1
    %s89 = scalar_select %p86, %s87, %s88
    %p92 = pneg %p86
    %p93 = scmp.eq.s32.totalorder %s9, 1
    %p94 = por %p92, %p93
    %p95 = scmp.ne.s32.totalorder %s87, %s90
    %p96 = scmp.eq.s32.totalorder %s9, 0
    %p97 = por %p95, %p96
    %p98 = scmp.ne.s32.totalorder %s87, %s90
    %p99 = scmp.eq.s32.totalorder %s14, 1
    %p100 = por %p98, %p99
    %p101 = scmp.ne.s32.totalorder %s90, %s91
    %p102 = scmp.eq.s32.totalorder %s14, 0
    %p103 = por %p101, %p102
    %p104 = scmp.ne.s32.totalorder %s90, %s91
    %p105 = scmp.eq.s32.totalorder %s15, 1
    %p106 = por %p104, %p105
    %p108 = scmp.ne.s32.totalorder %s91, %s107
    %p109 = scmp.eq.s32.totalorder %s15, 0
    %p110 = por %p108, %p109
    %p111 = scmp.le.s32.totalorder 1, %s9
    %p112 = scmp.lt.s32.totalorder %s9, 3
    %p113 = pnand %p111, %p112
    %p114 = pneg %p113
    // Predicated region
    $region9: #{sparse_proj_layer.1} parent=5 // pred_check
      _
    $region10: #{sparse_proj_layer.1} parent=5 // pred_check_branch
      %116 = sbr.rel (%p113) target = $region12
    $region11: #{sparse_proj_layer.1} parent=5 // pred_region
      %s117 = ssub.s32 %s9, 1
      // Predicated region
      $region13: #{sparse_proj_layer.1} parent=11 // pred_check
        %p118 = pneg %p56
      $region14: #{sparse_proj_layer.1} parent=11 // pred_check_branch
        %120 = sbr.rel (%p118) target = $region16
      $region15: #{sparse_proj_layer.1} parent=11 // pred_region
        _
      $region16: #{sparse_proj_layer.1} parent=11 // pred_fallthru
        _
      // Predicated region
      $region17: #{sparse_proj_layer.1} parent=11 // pred_check
        %p121 = pneg %p77
      $region18: #{sparse_proj_layer.1} parent=11 // pred_check_branch
        %123 = sbr.rel (%p121) target = $region20
      $region19: #{sparse_proj_layer.1} parent=11 // pred_region
        _
      $region20: #{sparse_proj_layer.1} parent=11 // pred_fallthru
        _
    $region12: #{sparse_proj_layer.1} parent=5 // pred_fallthru
      _
    %p124 = scmp.lt.s32.totalorder %s9, 2
    // Predicated region
    $region21: #{sparse_proj_layer.1} parent=5 // pred_check
      %p125 = pneg %p124
    $region22: #{sparse_proj_layer.1} parent=5 // pred_check_branch
      %127 = sbr.rel (%p125) target = $region24
    $region23: #{sparse_proj_layer.1} parent=5 // pred_region
      // Predicated region
      $region25: #{sparse_proj_layer.1} parent=23 // pred_check
        %p128 = pneg %p29
      $region26: #{sparse_proj_layer.1} parent=23 // pred_check_branch
        %130 = sbr.rel (%p128) target = $region28
      $region27: #{sparse_proj_layer.1} parent=23 // pred_region
        %p131 = scmp.lt.s32.totalorder %s9, 1
        %s132 = scalar_select %p131, %s9, 1
        %s133 = smul.addr %s132, 2
        %s134 = smul.addr %s133, 8
        %s135 = scalar_lea.vmem %s0, %s134
      $region28: #{sparse_proj_layer.1} parent=23 // pred_fallthru
        _
    $region24: #{sparse_proj_layer.1} parent=5 // pred_fallthru
      _
    %p136 = scmp.le.s32.totalorder 1, %s9
    %p137 = scmp.lt.s32.totalorder %s9, 3
    %p138 = pnand %p136, %p137
    %p139 = pneg %p138
    // Predicated region
    $region29: #{sparse_proj_layer.1} parent=5 // pred_check
      _
    $region30: #{sparse_proj_layer.1} parent=5 // pred_check_branch
      %141 = sbr.rel (%p138) target = $region32
    $region31: #{sparse_proj_layer.1} parent=5 // pred_region
      %s142 = ssub.s32 %s9, 1
      %p143 = scmp.lt.s32.totalorder %s14, 1
      %s144 = scalar_select %p143, %s14, 1
      %s145 = smul.addr %s144, 2
      %s146 = smul.addr %s145, 8
      %s147 = scalar_lea.vmem %s0, %s146
      %p148 = pneg %p35
      %p149 = pneg %p32
      %p150 = pneg %p56
      %p151 = pneg %p53
      %p152 = pneg %p77
      %p153 = pneg %p74
      %p154 = pneg %p103
      %p155 = pneg %p100
      %p156 = scmp.lt.s32.totalorder %s14, 1
      %s157 = scalar_select %p156, %s14, 1
      %s158 = smul.addr %s157, 2
      %s159 = smul.addr %s158, 8
      %s160 = scalar_lea.vmem %s3, %s159
      %p161 = scmp.lt.s32.totalorder %s14, 1
      %s162 = scalar_select %p161, %s14, 1
      %s163 = smul.addr %s162, 2
      %s164 = smul.addr %s163, 8
      %s165 = scalar_lea.vmem %s0, %s164
      %p166 = scmp.lt.s32.totalorder %s14, 1
      %s167 = scalar_select %p166, %s14, 1
      %s168 = smul.addr %s167, 2
      %s169 = smul.addr %s168, 8
      %s170 = scalar_lea.vmem %s3, %s169
      %v171 = vld [vmem:[%s165] sm:$0xff]
      %v172 = vld [vmem:[%s165 + $0x8] sm:$0xff]
      %s173 = scalar_lea.vmem %s1, 64
      %v174 = vld [vmem:[%s173] sm:$0xff]
      %v175 = vld [vmem:[%s173 + $0x8] sm:$0xff]
      %v176 = vmul.f32 %v171, %v174
      %v177 = vmul.f32 %v172, %v175
      %178 = vrot.lane.b32.xlu0 %v171, 17
      %v179 = vpop.permute.xlu0 %178
      %180 = vrot.lane.b32.xlu0 %v172, 17
      %v181 = vpop.permute.xlu0 %180
      %v182 = vlaneseq
      %v183 = vand.u32 %v182, 127
      %vm184 = vcmp.lt.s32.totalorder %v183, 17
      %v185 = vsel %vm184, %v179, %v181
      %v186 = vsel %vm184, %v181, %v179
      %v187 = vld [vmem:[%s1] sm:$0xff]
      %v188 = vld [vmem:[%s1 + $0x8] sm:$0xff]
      %v189 = vmul.f32 %v186, %v187
      %v190 = vmul.f32 %v185, %v188
      %v191 = vadd.f32 %v176, %v189
      %v192 = vadd.f32 %v177, %v190
      %193 = vrot.lane.b32.xlu0 %v171, 16
      %v194 = vpop.permute.xlu0 %193
      %195 = vrot.lane.b32.xlu0 %v172, 16
      %v196 = vpop.permute.xlu0 %195
      %vm197 = vcmp.lt.s32.totalorder %v183, 16
      %v198 = vsel %vm197, %v194, %v196
      %v199 = vsel %vm197, %v196, %v194
      %s200 = scalar_lea.vmem %s1, 16
      %v201 = vld [vmem:[%s200] sm:$0xff]
      %v202 = vld [vmem:[%s200 + $0x8] sm:$0xff]
      %v203 = vmul.f32 %v199, %v201
      %v204 = vmul.f32 %v198, %v202
      %v205 = vadd.f32 %v191, %v203
      %v206 = vadd.f32 %v192, %v204
      %207 = vrot.lane.b32.xlu0 %v171, 15
      %v208 = vpop.permute.xlu0 %207
      %209 = vrot.lane.b32.xlu0 %v172, 15
      %v210 = vpop.permute.xlu0 %209
      %vm211 = vcmp.lt.s32.totalorder %v183, 15
      %v212 = vsel %vm211, %v208, %v210
      %v213 = vsel %vm211, %v210, %v208
      %s214 = scalar_lea.vmem %s1, 32
      %v215 = vld [vmem:[%s214] sm:$0xff]
      %v216 = vld [vmem:[%s214 + $0x8] sm:$0xff]
      %v217 = vmul.f32 %v213, %v215
      %v218 = vmul.f32 %v212, %v216
      %v219 = vadd.f32 %v205, %v217
      %v220 = vadd.f32 %v206, %v218
      %221 = vrot.lane.b32.xlu0 %v171, 1
      %v222 = vpop.permute.xlu0 %221
      %223 = vrot.lane.b32.xlu0 %v172, 1
      %v224 = vpop.permute.xlu0 %223
      %vm225 = vcmp.lt.s32.totalorder %v183, 1
      %v226 = vsel %vm225, %v222, %v224
      %v227 = vsel %vm225, %v224, %v222
      %s228 = scalar_lea.vmem %s1, 48
      %v229 = vld [vmem:[%s228] sm:$0xff]
      %v230 = vld [vmem:[%s228 + $0x8] sm:$0xff]
      %v231 = vmul.f32 %v227, %v229
      %v232 = vmul.f32 %v226, %v230
      %v233 = vadd.f32 %v219, %v231
      %v234 = vadd.f32 %v220, %v232
      %235 = vrot.lane.b32.xlu0 %v171, 127
      %v236 = vpop.permute.xlu0 %235
      %237 = vrot.lane.b32.xlu0 %v172, 127
      %v238 = vpop.permute.xlu0 %237
      %vm239 = vcmp.lt.s32.totalorder %v183, 127
      %v240 = vsel %vm239, %v236, %v238
      %v241 = vsel %vm239, %v238, %v236
      %s242 = scalar_lea.vmem %s1, 80
      %v243 = vld [vmem:[%s242] sm:$0xff]
      %v244 = vld [vmem:[%s242 + $0x8] sm:$0xff]
      %v245 = vmul.f32 %v240, %v243
      %v246 = vmul.f32 %v241, %v244
      %v247 = vadd.f32 %v233, %v245
      %v248 = vadd.f32 %v234, %v246
      %249 = vrot.lane.b32.xlu0 %v171, 113
      %v250 = vpop.permute.xlu0 %249
      %251 = vrot.lane.b32.xlu0 %v172, 113
      %v252 = vpop.permute.xlu0 %251
      %vm253 = vcmp.lt.s32.totalorder %v183, 113
      %v254 = vsel %vm253, %v250, %v252
      %v255 = vsel %vm253, %v252, %v250
      %s256 = scalar_lea.vmem %s1, 96
      %v257 = vld [vmem:[%s256] sm:$0xff]
      %v258 = vld [vmem:[%s256 + $0x8] sm:$0xff]
      %v259 = vmul.f32 %v254, %v257
      %v260 = vmul.f32 %v255, %v258
      %v261 = vadd.f32 %v247, %v259
      %v262 = vadd.f32 %v248, %v260
      %263 = vrot.lane.b32.xlu0 %v171, 112
      %v264 = vpop.permute.xlu0 %263
      %265 = vrot.lane.b32.xlu0 %v172, 112
      %v266 = vpop.permute.xlu0 %265
      %vm267 = vcmp.lt.s32.totalorder %v183, 112
      %v268 = vsel %vm267, %v264, %v266
      %v269 = vsel %vm267, %v266, %v264
      %s270 = scalar_lea.vmem %s1, 112
      %v271 = vld [vmem:[%s270] sm:$0xff]
      %v272 = vld [vmem:[%s270 + $0x8] sm:$0xff]
      %v273 = vmul.f32 %v268, %v271
      %v274 = vmul.f32 %v269, %v272
      %v275 = vadd.f32 %v261, %v273
      %v276 = vadd.f32 %v262, %v274
      %277 = vrot.lane.b32.xlu0 %v171, 111
      %v278 = vpop.permute.xlu0 %277
      %279 = vrot.lane.b32.xlu0 %v172, 111
      %v280 = vpop.permute.xlu0 %279
      %vm281 = vcmp.lt.s32.totalorder %v183, 111
      %v282 = vsel %vm281, %v278, %v280
      %v283 = vsel %vm281, %v280, %v278
      %s284 = scalar_lea.vmem %s1, 128
      %v285 = vld [vmem:[%s284] sm:$0xff]
      %v286 = vld [vmem:[%s284 + $0x8] sm:$0xff]
      %v287 = vmul.f32 %v282, %v285
      %v288 = vmul.f32 %v283, %v286
      %v289 = vadd.f32 %v275, %v287
      %v290 = vadd.f32 %v276, %v288
      %v291 = vld [vmem:[%s2] sm:$0xf]
      %vm292 = vcmask 64512
      %v294 = vsel %vm292, %v291, 0
      %v296 = vand.u32 %v290, 4294901760
      %297 = vmatprep.subr.mxu0 %v296
      %v298 = vand.u32 %v289, 4294901760
      %299 = vmatpush1.msra.mxu0 %v298
      %300 = vmatprep.subr.mxu0 0.0
      %301 = vmatpush1.msra.mxu0 0.0
      %302 = vmatprep.subr.mxu0 0.0
      %303 = vmatpush1.msra.mxu0 0.0
      %304 = vmatprep.subr.mxu0 0.0
      %305 = vmatpush1.msra.mxu0 0.0
      %306 = vmatprep.subr.mxu0 0.0
      %307 = vmatpush1.msra.mxu0 0.0
      %308 = vmatprep.subr.mxu0 0.0
      %309 = vmatpush1.msra.mxu0 0.0
      %310 = vmatprep.subr.mxu0 0.0
      %311 = vmatpush1.msra.mxu0 0.0
      %312 = vmatprep.subr.mxu0 0.0
      %313 = vmatpush1.msra.mxu0 0.0
      %314 = vmatprep.subr.mxu0 0.0
      %315 = vmatpush1.msra.mxu0 0.0
      %316 = vmatprep.subr.mxu0 0.0
      %317 = vmatpush1.msra.mxu0 0.0
      %318 = vmatprep.subr.mxu0 0.0
      %319 = vmatpush1.msra.mxu0 0.0
      %320 = vmatprep.subr.mxu0 0.0
      %321 = vmatpush1.msra.mxu0 0.0
      %322 = vmatprep.subr.mxu0 0.0
      %323 = vmatpush1.msra.mxu0 0.0
      %324 = vmatprep.subr.mxu0 0.0
      %325 = vmatpush1.msra.mxu0 0.0
      %326 = vmatprep.subr.mxu0 0.0
      %327 = vmatpush1.msra.mxu0 0.0
      %328 = vmatprep.subr.mxu0 0.0
      %329 = vmatpush1.msra.mxu0 0.0
      %330 = vmatprep.subr.mxu0 0.0
      %331 = vmatpush1.msra.mxu0 0.0
      %332 = vmatprep.subr.mxu0 0.0
      %333 = vmatpush1.msra.mxu0 0.0
      %334 = vmatprep.subr.mxu0 0.0
      %335 = vmatpush1.msra.mxu0 0.0
      %336 = vmatprep.subr.mxu0 0.0
      %337 = vmatpush1.msra.mxu0 0.0
      %338 = vmatprep.subr.mxu0 0.0
      %339 = vmatpush1.msra.mxu0 0.0
      %340 = vmatprep.subr.mxu0 0.0
      %341 = vmatpush1.msra.mxu0 0.0
      %342 = vmatprep.subr.mxu0 0.0
      %343 = vmatpush1.msra.mxu0 0.0
      %344 = vmatprep.subr.mxu0 0.0
      %345 = vmatpush1.msra.mxu0 0.0
      %346 = vmatprep.subr.mxu0 0.0
      %347 = vmatpush1.msra.mxu0 0.0
      %348 = vmatprep.subr.mxu0 0.0
      %349 = vmatpush1.msra.mxu0 0.0
      %350 = vmatprep.subr.mxu0 0.0
      %351 = vmatpush1.msra.mxu0 0.0
      %352 = vmatprep.subr.mxu0 0.0
      %353 = vmatpush1.msra.mxu0 0.0
      %354 = vmatprep.subr.mxu0 0.0
      %355 = vmatpush1.msra.mxu0 0.0
      %356 = vmatprep.subr.mxu0 0.0
      %357 = vmatpush1.msra.mxu0 0.0
      %358 = vmatprep.subr.mxu0 0.0
      %359 = vmatpush1.msra.mxu0 0.0
      %360 = vmatprep.subr.mxu0 0.0
      %361 = vmatpush1.msra.mxu0 0.0
      %362 = vmatprep.mubr.f32.mxu0 0.0
      %v363 = vand.u32 %v294, 4294901760
      %v364 = vsub.f32 %v294, %v363
      %v365 = vand.u32 %v364, 4294901760
      %v366 = vsub.f32 %v364, %v365
      %v367 = vand.u32 %v366, 4294901760
      %368 = vmatmul.mubr.f32.gmra.mrb[0].mxu0 %v367
      %v369 = vpop.f32.mrb[0].mxu0
      %v370 = vadd.f32 0.0, %v369
      %v371 = vpop.f32.mrb[0].mxu0
      %v372 = vadd.f32 0.0, %v371
      %373 = vdwg.mxu0
      %v374 = vand.u32 %v290, 4294901760
      %v375 = vsub.f32 %v290, %v374
      %v376 = vand.u32 %v375, 4294901760
      %v377 = vsub.f32 %v375, %v376
      %v378 = vand.u32 %v377, 4294901760
      %379 = vmatprep.subr.mxu0 %v378
      %v380 = vand.u32 %v289, 4294901760
      %v381 = vsub.f32 %v289, %v380
      %v382 = vand.u32 %v381, 4294901760
      %v383 = vsub.f32 %v381, %v382
      %v384 = vand.u32 %v383, 4294901760
      %385 = vmatpush1.msra.mxu0 %v384
      %386 = vmatprep.subr.mxu0 0.0
      %387 = vmatpush1.msra.mxu0 0.0
      %388 = vmatprep.subr.mxu0 0.0
      %389 = vmatpush1.msra.mxu0 0.0
      %390 = vmatprep.subr.mxu0 0.0
      %391 = vmatpush1.msra.mxu0 0.0
      %392 = vmatprep.subr.mxu0 0.0
      %393 = vmatpush1.msra.mxu0 0.0
      %394 = vmatprep.subr.mxu0 0.0
      %395 = vmatpush1.msra.mxu0 0.0
      %396 = vmatprep.subr.mxu0 0.0
      %397 = vmatpush1.msra.mxu0 0.0
      %398 = vmatprep.subr.mxu0 0.0
      %399 = vmatpush1.msra.mxu0 0.0
      %400 = vmatprep.subr.mxu0 0.0
      %401 = vmatpush1.msra.mxu0 0.0
      %402 = vmatprep.subr.mxu0 0.0
      %403 = vmatpush1.msra.mxu0 0.0
      %404 = vmatprep.subr.mxu0 0.0
      %405 = vmatpush1.msra.mxu0 0.0
      %406 = vmatprep.subr.mxu0 0.0
      %407 = vmatpush1.msra.mxu0 0.0
      %408 = vmatprep.subr.mxu0 0.0
      %409 = vmatpush1.msra.mxu0 0.0
      %410 = vmatprep.subr.mxu0 0.0
      %411 = vmatpush1.msra.mxu0 0.0
      %412 = vmatprep.subr.mxu0 0.0
      %413 = vmatpush1.msra.mxu0 0.0
      %414 = vmatprep.subr.mxu0 0.0
      %415 = vmatpush1.msra.mxu0 0.0
      %416 = vmatprep.subr.mxu0 0.0
      %417 = vmatpush1.msra.mxu0 0.0
      %418 = vmatprep.subr.mxu0 0.0
      %419 = vmatpush1.msra.mxu0 0.0
      %420 = vmatprep.subr.mxu0 0.0
      %421 = vmatpush1.msra.mxu0 0.0
      %422 = vmatprep.subr.mxu0 0.0
      %423 = vmatpush1.msra.mxu0 0.0
      %424 = vmatprep.subr.mxu0 0.0
      %425 = vmatpush1.msra.mxu0 0.0
      %426 = vmatprep.subr.mxu0 0.0
      %427 = vmatpush1.msra.mxu0 0.0
      %428 = vmatprep.subr.mxu0 0.0
      %429 = vmatpush1.msra.mxu0 0.0
      %430 = vmatprep.subr.mxu0 0.0
      %431 = vmatpush1.msra.mxu0 0.0
      %432 = vmatprep.subr.mxu0 0.0
      %433 = vmatpush1.msra.mxu0 0.0
      %434 = vmatprep.subr.mxu0 0.0
      %435 = vmatpush1.msra.mxu0 0.0
      %436 = vmatprep.subr.mxu0 0.0
      %437 = vmatpush1.msra.mxu0 0.0
      %438 = vmatprep.subr.mxu0 0.0
      %439 = vmatpush1.msra.mxu0 0.0
      %440 = vmatprep.subr.mxu0 0.0
      %441 = vmatpush1.msra.mxu0 0.0
      %442 = vmatprep.subr.mxu0 0.0
      %443 = vmatpush1.msra.mxu0 0.0
      %444 = vmatprep.subr.mxu0 0.0
      %445 = vmatpush1.msra.mxu0 0.0
      %446 = vmatprep.subr.mxu0 0.0
      %447 = vmatpush1.msra.mxu0 0.0
      %448 = vmatprep.mubr.f32.mxu0 0.0
      %v449 = vand.u32 %v294, 4294901760
      %450 = vmatmul.mubr.f32.gmra.mrb[0].mxu0 %v449
      %v451 = vpop.f32.mrb[0].mxu0
      %v452 = vadd.f32 %v370, %v451
      %v453 = vpop.f32.mrb[0].mxu0
      %v454 = vadd.f32 %v372, %v453
      %455 = vdwg.mxu0
      %v456 = vand.u32 %v290, 4294901760
      %v457 = vsub.f32 %v290, %v456
      %458 = vmatprep.subr.mxu0 %v457
      %v459 = vand.u32 %v289, 4294901760
      %v460 = vsub.f32 %v289, %v459
      %461 = vmatpush1.msra.mxu0 %v460
      %462 = vmatprep.subr.mxu0 0.0
      %463 = vmatpush1.msra.mxu0 0.0
      %464 = vmatprep.subr.mxu0 0.0
      %465 = vmatpush1.msra.mxu0 0.0
      %466 = vmatprep.subr.mxu0 0.0
      %467 = vmatpush1.msra.mxu0 0.0
      %468 = vmatprep.subr.mxu0 0.0
      %469 = vmatpush1.msra.mxu0 0.0
      %470 = vmatprep.subr.mxu0 0.0
      %471 = vmatpush1.msra.mxu0 0.0
      %472 = vmatprep.subr.mxu0 0.0
      %473 = vmatpush1.msra.mxu0 0.0
      %474 = vmatprep.subr.mxu0 0.0
      %475 = vmatpush1.msra.mxu0 0.0
      %476 = vmatprep.subr.mxu0 0.0
      %477 = vmatpush1.msra.mxu0 0.0
      %478 = vmatprep.subr.mxu0 0.0
      %479 = vmatpush1.msra.mxu0 0.0
      %480 = vmatprep.subr.mxu0 0.0
      %481 = vmatpush1.msra.mxu0 0.0
      %482 = vmatprep.subr.mxu0 0.0
      %483 = vmatpush1.msra.mxu0 0.0
      %484 = vmatprep.subr.mxu0 0.0
      %485 = vmatpush1.msra.mxu0 0.0
      %486 = vmatprep.subr.mxu0 0.0
      %487 = vmatpush1.msra.mxu0 0.0
      %488 = vmatprep.subr.mxu0 0.0
      %489 = vmatpush1.msra.mxu0 0.0
      %490 = vmatprep.subr.mxu0 0.0
      %491 = vmatpush1.msra.mxu0 0.0
      %492 = vmatprep.subr.mxu0 0.0
      %493 = vmatpush1.msra.mxu0 0.0
      %494 = vmatprep.subr.mxu0 0.0
      %495 = vmatpush1.msra.mxu0 0.0
      %496 = vmatprep.subr.mxu0 0.0
      %497 = vmatpush1.msra.mxu0 0.0
      %498 = vmatprep.subr.mxu0 0.0
      %499 = vmatpush1.msra.mxu0 0.0
      %500 = vmatprep.subr.mxu0 0.0
      %501 = vmatpush1.msra.mxu0 0.0
      %502 = vmatprep.subr.mxu0 0.0
      %503 = vmatpush1.msra.mxu0 0.0
      %504 = vmatprep.subr.mxu0 0.0
      %505 = vmatpush1.msra.mxu0 0.0
      %506 = vmatprep.subr.mxu0 0.0
      %507 = vmatpush1.msra.mxu0 0.0
      %508 = vmatprep.subr.mxu0 0.0
      %509 = vmatpush1.msra.mxu0 0.0
      %510 = vmatprep.subr.mxu0 0.0
      %511 = vmatpush1.msra.mxu0 0.0
      %512 = vmatprep.subr.mxu0 0.0
      %513 = vmatpush1.msra.mxu0 0.0
      %514 = vmatprep.subr.mxu0 0.0
      %515 = vmatpush1.msra.mxu0 0.0
      %516 = vmatprep.subr.mxu0 0.0
      %517 = vmatpush1.msra.mxu0 0.0
      %518 = vmatprep.subr.mxu0 0.0
      %519 = vmatpush1.msra.mxu0 0.0
      %520 = vmatprep.subr.mxu0 0.0
      %521 = vmatpush1.msra.mxu0 0.0
      %522 = vmatprep.subr.mxu0 0.0
      %523 = vmatpush1.msra.mxu0 0.0
      %524 = vmatprep.mubr.f32.mxu0 0.0
      %v525 = vand.u32 %v294, 4294901760
      %v526 = vsub.f32 %v294, %v525
      %527 = vmatmul.mubr.f32.gmra.mrb[0].mxu0 %v526
      %v528 = vpop.f32.mrb[0].mxu0
      %v529 = vadd.f32 %v452, %v528
      %v530 = vpop.f32.mrb[0].mxu0
      %v531 = vadd.f32 %v454, %v530
      %532 = vdwg.mxu0
      %v533 = vand.u32 %v290, 4294901760
      %534 = vmatprep.subr.mxu0 %v533
      %v535 = vand.u32 %v289, 4294901760
      %536 = vmatpush1.msra.mxu0 %v535
      %537 = vmatprep.subr.mxu0 0.0
      %538 = vmatpush1.msra.mxu0 0.0
      %539 = vmatprep.subr.mxu0 0.0
      %540 = vmatpush1.msra.mxu0 0.0
      %541 = vmatprep.subr.mxu0 0.0
      %542 = vmatpush1.msra.mxu0 0.0
      %543 = vmatprep.subr.mxu0 0.0
      %544 = vmatpush1.msra.mxu0 0.0
      %545 = vmatprep.subr.mxu0 0.0
      %546 = vmatpush1.msra.mxu0 0.0
      %547 = vmatprep.subr.mxu0 0.0
      %548 = vmatpush1.msra.mxu0 0.0
      %549 = vmatprep.subr.mxu0 0.0
      %550 = vmatpush1.msra.mxu0 0.0
      %551 = vmatprep.subr.mxu0 0.0
      %552 = vmatpush1.msra.mxu0 0.0
      %553 = vmatprep.subr.mxu0 0.0
      %554 = vmatpush1.msra.mxu0 0.0
      %555 = vmatprep.subr.mxu0 0.0
      %556 = vmatpush1.msra.mxu0 0.0
      %557 = vmatprep.subr.mxu0 0.0
      %558 = vmatpush1.msra.mxu0 0.0
      %559 = vmatprep.subr.mxu0 0.0
      %560 = vmatpush1.msra.mxu0 0.0
      %561 = vmatprep.subr.mxu0 0.0
      %562 = vmatpush1.msra.mxu0 0.0
      %563 = vmatprep.subr.mxu0 0.0
      %564 = vmatpush1.msra.mxu0 0.0
      %565 = vmatprep.subr.mxu0 0.0
      %566 = vmatpush1.msra.mxu0 0.0
      %567 = vmatprep.subr.mxu0 0.0
      %568 = vmatpush1.msra.mxu0 0.0
      %569 = vmatprep.subr.mxu0 0.0
      %570 = vmatpush1.msra.mxu0 0.0
      %571 = vmatprep.subr.mxu0 0.0
      %572 = vmatpush1.msra.mxu0 0.0
      %573 = vmatprep.subr.mxu0 0.0
      %574 = vmatpush1.msra.mxu0 0.0
      %575 = vmatprep.subr.mxu0 0.0
      %576 = vmatpush1.msra.mxu0 0.0
      %577 = vmatprep.subr.mxu0 0.0
      %578 = vmatpush1.msra.mxu0 0.0
      %579 = vmatprep.subr.mxu0 0.0
      %580 = vmatpush1.msra.mxu0 0.0
      %581 = vmatprep.subr.mxu0 0.0
      %582 = vmatpush1.msra.mxu0 0.0
      %583 = vmatprep.subr.mxu0 0.0
      %584 = vmatpush1.msra.mxu0 0.0
      %585 = vmatprep.subr.mxu0 0.0
      %586 = vmatpush1.msra.mxu0 0.0
      %587 = vmatprep.subr.mxu0 0.0
      %588 = vmatpush1.msra.mxu0 0.0
      %589 = vmatprep.subr.mxu0 0.0
      %590 = vmatpush1.msra.mxu0 0.0
      %591 = vmatprep.subr.mxu0 0.0
      %592 = vmatpush1.msra.mxu0 0.0
      %593 = vmatprep.subr.mxu0 0.0
      %594 = vmatpush1.msra.mxu0 0.0
      %595 = vmatprep.subr.mxu0 0.0
      %596 = vmatpush1.msra.mxu0 0.0
      %597 = vmatprep.subr.mxu0 0.0
      %598 = vmatpush1.msra.mxu0 0.0
      %599 = vmatprep.mubr.f32.mxu0 0.0
      %v600 = vand.u32 %v294, 4294901760
      %v601 = vsub.f32 %v294, %v600
      %v602 = vand.u32 %v601, 4294901760
      %603 = vmatmul.mubr.f32.gmra.mrb[0].mxu0 %v602
      %v604 = vpop.f32.mrb[0].mxu0
      %v605 = vadd.f32 %v529, %v604
      %v606 = vpop.f32.mrb[0].mxu0
      %v607 = vadd.f32 %v531, %v606
      %608 = vdwg.mxu0
      %v609 = vand.u32 %v290, 4294901760
      %v610 = vsub.f32 %v290, %v609
      %v611 = vand.u32 %v610, 4294901760
      %612 = vmatprep.subr.mxu0 %v611
      %v613 = vand.u32 %v289, 4294901760
      %v614 = vsub.f32 %v289, %v613
      %v615 = vand.u32 %v614, 4294901760
      %616 = vmatpush1.msra.mxu0 %v615
      %617 = vmatprep.subr.mxu0 0.0
      %618 = vmatpush1.msra.mxu0 0.0
      %619 = vmatprep.subr.mxu0 0.0
      %620 = vmatpush1.msra.mxu0 0.0
      %621 = vmatprep.subr.mxu0 0.0
      %622 = vmatpush1.msra.mxu0 0.0
      %623 = vmatprep.subr.mxu0 0.0
      %624 = vmatpush1.msra.mxu0 0.0
      %625 = vmatprep.subr.mxu0 0.0
      %626 = vmatpush1.msra.mxu0 0.0
      %627 = vmatprep.subr.mxu0 0.0
      %628 = vmatpush1.msra.mxu0 0.0
      %629 = vmatprep.subr.mxu0 0.0
      %630 = vmatpush1.msra.mxu0 0.0
      %631 = vmatprep.subr.mxu0 0.0
      %632 = vmatpush1.msra.mxu0 0.0
      %633 = vmatprep.subr.mxu0 0.0
      %634 = vmatpush1.msra.mxu0 0.0
      %635 = vmatprep.subr.mxu0 0.0
      %636 = vmatpush1.msra.mxu0 0.0
      %637 = vmatprep.subr.mxu0 0.0
      %638 = vmatpush1.msra.mxu0 0.0
      %639 = vmatprep.subr.mxu0 0.0
      %640 = vmatpush1.msra.mxu0 0.0
      %641 = vmatprep.subr.mxu0 0.0
      %642 = vmatpush1.msra.mxu0 0.0
      %643 = vmatprep.subr.mxu0 0.0
      %644 = vmatpush1.msra.mxu0 0.0
      %645 = vmatprep.subr.mxu0 0.0
      %646 = vmatpush1.msra.mxu0 0.0
      %647 = vmatprep.subr.mxu0 0.0
      %648 = vmatpush1.msra.mxu0 0.0
      %649 = vmatprep.subr.mxu0 0.0
      %650 = vmatpush1.msra.mxu0 0.0
      %651 = vmatprep.subr.mxu0 0.0
      %652 = vmatpush1.msra.mxu0 0.0
      %653 = vmatprep.subr.mxu0 0.0
      %654 = vmatpush1.msra.mxu0 0.0
      %655 = vmatprep.subr.mxu0 0.0
      %656 = vmatpush1.msra.mxu0 0.0
      %657 = vmatprep.subr.mxu0 0.0
      %658 = vmatpush1.msra.mxu0 0.0
      %659 = vmatprep.subr.mxu0 0.0
      %660 = vmatpush1.msra.mxu0 0.0
      %661 = vmatprep.subr.mxu0 0.0
      %662 = vmatpush1.msra.mxu0 0.0
      %663 = vmatprep.subr.mxu0 0.0
      %664 = vmatpush1.msra.mxu0 0.0
      %665 = vmatprep.subr.mxu0 0.0
      %666 = vmatpush1.msra.mxu0 0.0
      %667 = vmatprep.subr.mxu0 0.0
      %668 = vmatpush1.msra.mxu0 0.0
      %669 = vmatprep.subr.mxu0 0.0
      %670 = vmatpush1.msra.mxu0 0.0
      %671 = vmatprep.subr.mxu0 0.0
      %672 = vmatpush1.msra.mxu0 0.0
      %673 = vmatprep.subr.mxu0 0.0
      %674 = vmatpush1.msra.mxu0 0.0
      %675 = vmatprep.subr.mxu0 0.0
      %676 = vmatpush1.msra.mxu0 0.0
      %677 = vmatprep.subr.mxu0 0.0
      %678 = vmatpush1.msra.mxu0 0.0
      %679 = vmatprep.mubr.f32.mxu0 0.0
      %v680 = vand.u32 %v294, 4294901760
      %681 = vmatmul.mubr.f32.gmra.mrb[0].mxu0 %v680
      %v682 = vpop.f32.mrb[0].mxu0
      %v683 = vadd.f32 %v605, %v682
      %v684 = vpop.f32.mrb[0].mxu0
      %v685 = vadd.f32 %v607, %v684
      %686 = vdwg.mxu0
      %v687 = vand.u32 %v290, 4294901760
      %688 = vmatprep.subr.mxu0 %v687
      %v689 = vand.u32 %v289, 4294901760
      %690 = vmatpush1.msra.mxu0 %v689
      %691 = vmatprep.subr.mxu0 0.0
      %692 = vmatpush1.msra.mxu0 0.0
      %693 = vmatprep.subr.mxu0 0.0
      %694 = vmatpush1.msra.mxu0 0.0
      %695 = vmatprep.subr.mxu0 0.0
      %696 = vmatpush1.msra.mxu0 0.0
      %697 = vmatprep.subr.mxu0 0.0
      %698 = vmatpush1.msra.mxu0 0.0
      %699 = vmatprep.subr.mxu0 0.0
      %700 = vmatpush1.msra.mxu0 0.0
      %701 = vmatprep.subr.mxu0 0.0
      %702 = vmatpush1.msra.mxu0 0.0
      %703 = vmatprep.subr.mxu0 0.0
      %704 = vmatpush1.msra.mxu0 0.0
      %705 = vmatprep.subr.mxu0 0.0
      %706 = vmatpush1.msra.mxu0 0.0
      %707 = vmatprep.subr.mxu0 0.0
      %708 = vmatpush1.msra.mxu0 0.0
      %709 = vmatprep.subr.mxu0 0.0
      %710 = vmatpush1.msra.mxu0 0.0
      %711 = vmatprep.subr.mxu0 0.0
      %712 = vmatpush1.msra.mxu0 0.0
      %713 = vmatprep.subr.mxu0 0.0
      %714 = vmatpush1.msra.mxu0 0.0
      %715 = vmatprep.subr.mxu0 0.0
      %716 = vmatpush1.msra.mxu0 0.0
      %717 = vmatprep.subr.mxu0 0.0
      %718 = vmatpush1.msra.mxu0 0.0
      %719 = vmatprep.subr.mxu0 0.0
      %720 = vmatpush1.msra.mxu0 0.0
      %721 = vmatprep.subr.mxu0 0.0
      %722 = vmatpush1.msra.mxu0 0.0
      %723 = vmatprep.subr.mxu0 0.0
      %724 = vmatpush1.msra.mxu0 0.0
      %725 = vmatprep.subr.mxu0 0.0
      %726 = vmatpush1.msra.mxu0 0.0
      %727 = vmatprep.subr.mxu0 0.0
      %728 = vmatpush1.msra.mxu0 0.0
      %729 = vmatprep.subr.mxu0 0.0
      %730 = vmatpush1.msra.mxu0 0.0
      %731 = vmatprep.subr.mxu0 0.0
      %732 = vmatpush1.msra.mxu0 0.0
      %733 = vmatprep.subr.mxu0 0.0
      %734 = vmatpush1.msra.mxu0 0.0
      %735 = vmatprep.subr.mxu0 0.0
      %736 = vmatpush1.msra.mxu0 0.0
      %737 = vmatprep.subr.mxu0 0.0
      %738 = vmatpush1.msra.mxu0 0.0
      %739 = vmatprep.subr.mxu0 0.0
      %740 = vmatpush1.msra.mxu0 0.0
      %741 = vmatprep.subr.mxu0 0.0
      %742 = vmatpush1.msra.mxu0 0.0
      %743 = vmatprep.subr.mxu0 0.0
      %744 = vmatpush1.msra.mxu0 0.0
      %745 = vmatprep.subr.mxu0 0.0
      %746 = vmatpush1.msra.mxu0 0.0
      %747 = vmatprep.subr.mxu0 0.0
      %748 = vmatpush1.msra.mxu0 0.0
      %749 = vmatprep.subr.mxu0 0.0
      %750 = vmatpush1.msra.mxu0 0.0
      %751 = vmatprep.subr.mxu0 0.0
      %752 = vmatpush1.msra.mxu0 0.0
      %753 = vmatprep.mubr.f32.mxu0 0.0
      %v754 = vand.u32 %v294, 4294901760
      %755 = vmatmul.mubr.f32.gmra.mrb[0].mxu0 %v754
      %v756 = vpop.f32.mrb[0].mxu0
      %v757 = vadd.f32 %v683, %v756
      %v758 = vpop.f32.mrb[0].mxu0
      %v759 = vadd.f32 %v685, %v758
      %760 = vdwg.mxu0
      %vm761 = vcmask 1043456
      %v762 = vsel %vm761, %v757, 0.0
      %v763 = vsel %vm761, %v759, 0.0
      %v764 = vadd.f32 %v762, %v763
      %765 = vadd.xlane.f32.xlu0 %v764
      %v766 = vpop.xlane.xlu0 %765
      %v767 = vmul.f32 %v766, 0.00390625
      %v768 = vsub.f32 %v757, %v767
      %v769 = vsub.f32 %v759, %v767
      %v770 = vmul.f32 %v768, %v768
      %v771 = vmul.f32 %v769, %v769
      %v772 = vsel %vm761, %v770, 0.0
      %v773 = vsel %vm761, %v771, 0.0
      %v774 = vadd.f32 %v772, %v773
      %775 = vadd.xlane.f32.xlu0 %v774
      %v776 = vpop.xlane.xlu0 %775
      %v777 = vmul.f32 %v776, 0.00390625
      %v778 = vadd.f32 %v777, 1e-05
      %v779 = vrsqrt.pop %v778
      %v780 = vmul.f32 %v768, %v779
      %v781 = vmul.f32 %v769, %v779
      %vm782 = vcmp.ge.f32.partialorder %v780, 0.0
      %vm783 = vcmp.ge.f32.partialorder %v781, 0.0
      %v784 = vmul.f32 %v780, 0.01
      %v785 = vmul.f32 %v781, 0.01
      %v786 = vsel %vm782, %v780, %v784
      %v787 = vsel %vm783, %v781, %v785
      %s788 = scalar_lea.vmem %s1, 208
      %v789 = vld [vmem:[%s788] sm:$0xf]
      %v790 = vld [vmem:[%s788 + $0x8] sm:$0xf]
      %v791 = vmul.f32 %v786, %v789
      %v792 = vmul.f32 %v787, %v790
      %793 = vrot.lane.b32.xlu0 %v786, 17
      %v794 = vpop.permute.xlu0 %793
      %795 = vrot.lane.b32.xlu0 %v787, 17
      %v796 = vpop.permute.xlu0 %795
      %v797 = vsel %vm184, %v794, %v796
      %v798 = vsel %vm184, %v796, %v794
      %s799 = scalar_lea.vmem %s1, 144
      %v800 = vld [vmem:[%s799] sm:$0xf]
      %v801 = vld [vmem:[%s799 + $0x8] sm:$0xf]
      %v802 = vmul.f32 %v798, %v800
      %v803 = vmul.f32 %v797, %v801
      %v804 = vadd.f32 %v791, %v802
      %v805 = vadd.f32 %v792, %v803
      %806 = vrot.lane.b32.xlu0 %v786, 16
      %v807 = vpop.permute.xlu0 %806
      %808 = vrot.lane.b32.xlu0 %v787, 16
      %v809 = vpop.permute.xlu0 %808
      %v810 = vsel %vm197, %v807, %v809
      %v811 = vsel %vm197, %v809, %v807
      %s812 = scalar_lea.vmem %s1, 160
      %v813 = vld [vmem:[%s812] sm:$0xf]
      %v814 = vld [vmem:[%s812 + $0x8] sm:$0xf]
      %v815 = vmul.f32 %v811, %v813
      %v816 = vmul.f32 %v810, %v814
      %v817 = vadd.f32 %v804, %v815
      %v818 = vadd.f32 %v805, %v816
      %819 = vrot.lane.b32.xlu0 %v786, 15
      %v820 = vpop.permute.xlu0 %819
      %821 = vrot.lane.b32.xlu0 %v787, 15
      %v822 = vpop.permute.xlu0 %821
      %v823 = vsel %vm211, %v820, %v822
      %v824 = vsel %vm211, %v822, %v820
      %s825 = scalar_lea.vmem %s1, 176
      %v826 = vld [vmem:[%s825] sm:$0xf]
      %v827 = vld [vmem:[%s825 + $0x8] sm:$0xf]
      %v828 = vmul.f32 %v824, %v826
      %v829 = vmul.f32 %v823, %v827
      %v830 = vadd.f32 %v817, %v828
      %v831 = vadd.f32 %v818, %v829
      %832 = vrot.lane.b32.xlu0 %v786, 1
      %v833 = vpop.permute.xlu0 %832
      %834 = vrot.lane.b32.xlu0 %v787, 1
      %v835 = vpop.permute.xlu0 %834
      %v836 = vsel %vm225, %v833, %v835
      %v837 = vsel %vm225, %v835, %v833
      %s838 = scalar_lea.vmem %s1, 192
      %v839 = vld [vmem:[%s838] sm:$0xf]
      %v840 = vld [vmem:[%s838 + $0x8] sm:$0xf]
      %v841 = vmul.f32 %v837, %v839
      %v842 = vmul.f32 %v836, %v840
      %v843 = vadd.f32 %v830, %v841
      %v844 = vadd.f32 %v831, %v842
      %845 = vrot.lane.b32.xlu0 %v786, 127
      %v846 = vpop.permute.xlu0 %845
      %847 = vrot.lane.b32.xlu0 %v787, 127
      %v848 = vpop.permute.xlu0 %847
      %v849 = vsel %vm239, %v846, %v848
      %v850 = vsel %vm239, %v848, %v846
      %s851 = scalar_lea.vmem %s1, 224
      %v852 = vld [vmem:[%s851] sm:$0xf]
      %v853 = vld [vmem:[%s851 + $0x8] sm:$0xf]
      %v854 = vmul.f32 %v849, %v852
      %v855 = vmul.f32 %v850, %v853
      %v856 = vadd.f32 %v843, %v854
      %v857 = vadd.f32 %v844, %v855
      %858 = vrot.lane.b32.xlu0 %v786, 113
      %v859 = vpop.permute.xlu0 %858
      %860 = vrot.lane.b32.xlu0 %v787, 113
      %v861 = vpop.permute.xlu0 %860
      %v862 = vsel %vm253, %v859, %v861
      %v863 = vsel %vm253, %v861, %v859
      %s864 = scalar_lea.vmem %s1, 240
      %v865 = vld [vmem:[%s864] sm:$0xf]
      %v866 = vld [vmem:[%s864 + $0x8] sm:$0xf]
      %v867 = vmul.f32 %v862, %v865
      %v868 = vmul.f32 %v863, %v866
      %v869 = vadd.f32 %v856, %v867
      %v870 = vadd.f32 %v857, %v868
      %871 = vrot.lane.b32.xlu0 %v786, 112
      %v872 = vpop.permute.xlu0 %871
      %873 = vrot.lane.b32.xlu0 %v787, 112
      %v874 = vpop.permute.xlu0 %873
      %v875 = vsel %vm267, %v872, %v874
      %v876 = vsel %vm267, %v874, %v872
      %s877 = scalar_lea.vmem %s1, 256
      %v878 = vld [vmem:[%s877] sm:$0xf]
      %v879 = vld [vmem:[%s877 + $0x8] sm:$0xf]
      %v880 = vmul.f32 %v875, %v878
      %v881 = vmul.f32 %v876, %v879
      %v882 = vadd.f32 %v869, %v880
      %v883 = vadd.f32 %v870, %v881
      %884 = vrot.lane.b32.xlu0 %v786, 111
      %v885 = vpop.permute.xlu0 %884
      %886 = vrot.lane.b32.xlu0 %v787, 111
      %v887 = vpop.permute.xlu0 %886
      %v888 = vsel %vm281, %v885, %v887
      %v889 = vsel %vm281, %v887, %v885
      %s890 = scalar_lea.vmem %s1, 272
      %v891 = vld [vmem:[%s890] sm:$0xf]
      %v892 = vld [vmem:[%s890 + $0x8] sm:$0xf]
      %v893 = vmul.f32 %v888, %v891
      %v894 = vmul.f32 %v889, %v892
      %v895 = vadd.f32 %v882, %v893
      %v896 = vadd.f32 %v883, %v894
      %s897 = scalar_lea.vmem %s2, 8
      %v898 = vld [vmem:[%s897] sm:$0x3]
      %vm899 = vcmask 31744
      %v901 = vsel %vm899, %v898, 0
      %v904 = vsel %vm761, %v895, 0
      %v907 = vsel %vm761, %v896, 0
      %v909 = vand.u32 %v907, 4294901760
      %910 = vmatprep.subr.mxu0 %v909
      %v911 = vand.u32 %v904, 4294901760
      %912 = vmatpush1.msra.mxu0 %v911
      %913 = vmatprep.subr.mxu0 0.0
      %914 = vmatpush1.msra.mxu0 0.0
      %915 = vmatprep.subr.mxu0 0.0
      %916 = vmatpush1.msra.mxu0 0.0
      %917 = vmatprep.subr.mxu0 0.0
      %918 = vmatpush1.msra.mxu0 0.0
      %919 = vmatprep.subr.mxu0 0.0
      %920 = vmatpush1.msra.mxu0 0.0
      %921 = vmatprep.subr.mxu0 0.0
      %922 = vmatpush1.msra.mxu0 0.0
      %923 = vmatprep.subr.mxu0 0.0
      %924 = vmatpush1.msra.mxu0 0.0
      %925 = vmatprep.subr.mxu0 0.0
      %926 = vmatpush1.msra.mxu0 0.0
      %927 = vmatprep.subr.mxu0 0.0
      %928 = vmatpush1.msra.mxu0 0.0
      %929 = vmatprep.subr.mxu0 0.0
      %930 = vmatpush1.msra.mxu0 0.0
      %931 = vmatprep.subr.mxu0 0.0
      %932 = vmatpush1.msra.mxu0 0.0
      %933 = vmatprep.subr.mxu0 0.0
      %934 = vmatpush1.msra.mxu0 0.0
      %935 = vmatprep.subr.mxu0 0.0
      %936 = vmatpush1.msra.mxu0 0.0
      %937 = vmatprep.subr.mxu0 0.0
      %938 = vmatpush1.msra.mxu0 0.0
      %939 = vmatprep.subr.mxu0 0.0
      %940 = vmatpush1.msra.mxu0 0.0
      %941 = vmatprep.subr.mxu0 0.0
      %942 = vmatpush1.msra.mxu0 0.0
      %943 = vmatprep.subr.mxu0 0.0
      %944 = vmatpush1.msra.mxu0 0.0
      %945 = vmatprep.subr.mxu0 0.0
      %946 = vmatpush1.msra.mxu0 0.0
      %947 = vmatprep.subr.mxu0 0.0
      %948 = vmatpush1.msra.mxu0 0.0
      %949 = vmatprep.subr.mxu0 0.0
      %950 = vmatpush1.msra.mxu0 0.0
      %951 = vmatprep.subr.mxu0 0.0
      %952 = vmatpush1.msra.mxu0 0.0
      %953 = vmatprep.subr.mxu0 0.0
      %954 = vmatpush1.msra.mxu0 0.0
      %955 = vmatprep.subr.mxu0 0.0
      %956 = vmatpush1.msra.mxu0 0.0
      %957 = vmatprep.subr.mxu0 0.0
      %958 = vmatpush1.msra.mxu0 0.0
      %959 = vmatprep.subr.mxu0 0.0
      %960 = vmatpush1.msra.mxu0 0.0
      %961 = vmatprep.subr.mxu0 0.0
      %962 = vmatpush1.msra.mxu0 0.0
      %963 = vmatprep.subr.mxu0 0.0
      %964 = vmatpush1.msra.mxu0 0.0
      %965 = vmatprep.subr.mxu0 0.0
      %966 = vmatpush1.msra.mxu0 0.0
      %967 = vmatprep.subr.mxu0 0.0
      %968 = vmatpush1.msra.mxu0 0.0
      %969 = vmatprep.subr.mxu0 0.0
      %970 = vmatpush1.msra.mxu0 0.0
      %971 = vmatprep.subr.mxu0 0.0
      %972 = vmatpush1.msra.mxu0 0.0
      %973 = vmatprep.subr.mxu0 0.0
      %974 = vmatpush1.msra.mxu0 0.0
      %975 = vmatprep.mubr.f32.mxu0 0.0
      %v976 = vand.u32 %v901, 4294901760
      %v977 = vsub.f32 %v901, %v976
      %v978 = vand.u32 %v977, 4294901760
      %v979 = vsub.f32 %v977, %v978
      %v980 = vand.u32 %v979, 4294901760
      %981 = vmatmul.mubr.f32.gmra.mrb[0].mxu0 %v980
      %v982 = vpop.f32.mrb[0].mxu0
      %v983 = vadd.f32 0.0, %v982
      %v984 = vpop.f32.mrb[0].mxu0
      %v985 = vadd.f32 0.0, %v984
      %986 = vdwg.mxu0
      %v987 = vand.u32 %v907, 4294901760
      %v988 = vsub.f32 %v907, %v987
      %v989 = vand.u32 %v988, 4294901760
      %v990 = vsub.f32 %v988, %v989
      %v991 = vand.u32 %v990, 4294901760
      %992 = vmatprep.subr.mxu0 %v991
      %v993 = vand.u32 %v904, 4294901760
      %v994 = vsub.f32 %v904, %v993
      %v995 = vand.u32 %v994, 4294901760
      %v996 = vsub.f32 %v994, %v995
      %v997 = vand.u32 %v996, 4294901760
      %998 = vmatpush1.msra.mxu0 %v997
      %999 = vmatprep.subr.mxu0 0.0
      %1000 = vmatpush1.msra.mxu0 0.0
      %1001 = vmatprep.subr.mxu0 0.0
      %1002 = vmatpush1.msra.mxu0 0.0
      %1003 = vmatprep.subr.mxu0 0.0
      %1004 = vmatpush1.msra.mxu0 0.0
      %1005 = vmatprep.subr.mxu0 0.0
      %1006 = vmatpush1.msra.mxu0 0.0
      %1007 = vmatprep.subr.mxu0 0.0
      %1008 = vmatpush1.msra.mxu0 0.0
      %1009 = vmatprep.subr.mxu0 0.0
      %1010 = vmatpush1.msra.mxu0 0.0
      %1011 = vmatprep.subr.mxu0 0.0
      %1012 = vmatpush1.msra.mxu0 0.0
      %1013 = vmatprep.subr.mxu0 0.0
      %1014 = vmatpush1.msra.mxu0 0.0
      %1015 = vmatprep.subr.mxu0 0.0
      %1016 = vmatpush1.msra.mxu0 0.0
      %1017 = vmatprep.subr.mxu0 0.0
      %1018 = vmatpush1.msra.mxu0 0.0
      %1019 = vmatprep.subr.mxu0 0.0
      %1020 = vmatpush1.msra.mxu0 0.0
      %1021 = vmatprep.subr.mxu0 0.0
      %1022 = vmatpush1.msra.mxu0 0.0
      %1023 = vmatprep.subr.mxu0 0.0
      %1024 = vmatpush1.msra.mxu0 0.0
      %1025 = vmatprep.subr.mxu0 0.0
      %1026 = vmatpush1.msra.mxu0 0.0
      %1027 = vmatprep.subr.mxu0 0.0
      %1028 = vmatpush1.msra.mxu0 0.0
      %1029 = vmatprep.subr.mxu0 0.0
      %1030 = vmatpush1.msra.mxu0 0.0
      %1031 = vmatprep.subr.mxu0 0.0
      %1032 = vmatpush1.msra.mxu0 0.0
      %1033 = vmatprep.subr.mxu0 0.0
      %1034 = vmatpush1.msra.mxu0 0.0
      %1035 = vmatprep.subr.mxu0 0.0
      %1036 = vmatpush1.msra.mxu0 0.0
      %1037 = vmatprep.subr.mxu0 0.0
      %1038 = vmatpush1.msra.mxu0 0.0
      %1039 = vmatprep.subr.mxu0 0.0
      %1040 = vmatpush1.msra.mxu0 0.0
      %1041 = vmatprep.subr.mxu0 0.0
      %1042 = vmatpush1.msra.mxu0 0.0
      %1043 = vmatprep.subr.mxu0 0.0
      %1044 = vmatpush1.msra.mxu0 0.0
      %1045 = vmatprep.subr.mxu0 0.0
      %1046 = vmatpush1.msra.mxu0 0.0
      %1047 = vmatprep.subr.mxu0 0.0
      %1048 = vmatpush1.msra.mxu0 0.0
      %1049 = vmatprep.subr.mxu0 0.0
      %1050 = vmatpush1.msra.mxu0 0.0
      %1051 = vmatprep.subr.mxu0 0.0
      %1052 = vmatpush1.msra.mxu0 0.0
      %1053 = vmatprep.subr.mxu0 0.0
      %1054 = vmatpush1.msra.mxu0 0.0
      %1055 = vmatprep.subr.mxu0 0.0
      %1056 = vmatpush1.msra.mxu0 0.0
      %1057 = vmatprep.subr.mxu0 0.0
      %1058 = vmatpush1.msra.mxu0 0.0
      %1059 = vmatprep.subr.mxu0 0.0
      %1060 = vmatpush1.msra.mxu0 0.0
      %1061 = vmatprep.mubr.f32.mxu0 0.0
      %v1062 = vand.u32 %v901, 4294901760
      %1063 = vmatmul.mubr.f32.gmra.mrb[0].mxu0 %v1062
      %v1064 = vpop.f32.mrb[0].mxu0
      %v1065 = vadd.f32 %v983, %v1064
      %v1066 = vpop.f32.mrb[0].mxu0
      %v1067 = vadd.f32 %v985, %v1066
      %1068 = vdwg.mxu0
      %v1069 = vand.u32 %v907, 4294901760
      %v1070 = vsub.f32 %v907, %v1069
      %1071 = vmatprep.subr.mxu0 %v1070
      %v1072 = vand.u32 %v904, 4294901760
      %v1073 = vsub.f32 %v904, %v1072
      %1074 = vmatpush1.msra.mxu0 %v1073
      %1075 = vmatprep.subr.mxu0 0.0
      %1076 = vmatpush1.msra.mxu0 0.0
      %1077 = vmatprep.subr.mxu0 0.0
      %1078 = vmatpush1.msra.mxu0 0.0
      %1079 = vmatprep.subr.mxu0 0.0
      %1080 = vmatpush1.msra.mxu0 0.0
      %1081 = vmatprep.subr.mxu0 0.0
      %1082 = vmatpush1.msra.mxu0 0.0
      %1083 = vmatprep.subr.mxu0 0.0
      %1084 = vmatpush1.msra.mxu0 0.0
      %1085 = vmatprep.subr.mxu0 0.0
      %1086 = vmatpush1.msra.mxu0 0.0
      %1087 = vmatprep.subr.mxu0 0.0
      %1088 = vmatpush1.msra.mxu0 0.0
      %1089 = vmatprep.subr.mxu0 0.0
      %1090 = vmatpush1.msra.mxu0 0.0
      %1091 = vmatprep.subr.mxu0 0.0
      %1092 = vmatpush1.msra.mxu0 0.0
      %1093 = vmatprep.subr.mxu0 0.0
      %1094 = vmatpush1.msra.mxu0 0.0
      %1095 = vmatprep.subr.mxu0 0.0
      %1096 = vmatpush1.msra.mxu0 0.0
      %1097 = vmatprep.subr.mxu0 0.0
      %1098 = vmatpush1.msra.mxu0 0.0
      %1099 = vmatprep.subr.mxu0 0.0
      %1100 = vmatpush1.msra.mxu0 0.0
      %1101 = vmatprep.subr.mxu0 0.0
      %1102 = vmatpush1.msra.mxu0 0.0
      %1103 = vmatprep.subr.mxu0 0.0
      %1104 = vmatpush1.msra.mxu0 0.0
      %1105 = vmatprep.subr.mxu0 0.0
      %1106 = vmatpush1.msra.mxu0 0.0
      %1107 = vmatprep.subr.mxu0 0.0
      %1108 = vmatpush1.msra.mxu0 0.0
      %1109 = vmatprep.subr.mxu0 0.0
      %1110 = vmatpush1.msra.mxu0 0.0
      %1111 = vmatprep.subr.mxu0 0.0
      %1112 = vmatpush1.msra.mxu0 0.0
      %1113 = vmatprep.subr.mxu0 0.0
      %1114 = vmatpush1.msra.mxu0 0.0
      %1115 = vmatprep.subr.mxu0 0.0
      %1116 = vmatpush1.msra.mxu0 0.0
      %1117 = vmatprep.subr.mxu0 0.0
      %1118 = vmatpush1.msra.mxu0 0.0
      %1119 = vmatprep.subr.mxu0 0.0
      %1120 = vmatpush1.msra.mxu0 0.0
      %1121 = vmatprep.subr.mxu0 0.0
      %1122 = vmatpush1.msra.mxu0 0.0
      %1123 = vmatprep.subr.mxu0 0.0
      %1124 = vmatpush1.msra.mxu0 0.0
      %1125 = vmatprep.subr.mxu0 0.0
      %1126 = vmatpush1.msra.mxu0 0.0
      %1127 = vmatprep.subr.mxu0 0.0
      %1128 = vmatpush1.msra.mxu0 0.0
      %1129 = vmatprep.subr.mxu0 0.0
      %1130 = vmatpush1.msra.mxu0 0.0
      %1131 = vmatprep.subr.mxu0 0.0
      %1132 = vmatpush1.msra.mxu0 0.0
      %1133 = vmatprep.subr.mxu0 0.0
      %1134 = vmatpush1.msra.mxu0 0.0
      %1135 = vmatprep.subr.mxu0 0.0
      %1136 = vmatpush1.msra.mxu0 0.0
      %1137 = vmatprep.mubr.f32.mxu0 0.0
      %v1138 = vand.u32 %v901, 4294901760
      %v1139 = vsub.f32 %v901, %v1138
      %1140 = vmatmul.mubr.f32.gmra.mrb[0].mxu0 %v1139
      %v1141 = vpop.f32.mrb[0].mxu0
      %v1142 = vadd.f32 %v1065, %v1141
      %v1143 = vpop.f32.mrb[0].mxu0
      %v1144 = vadd.f32 %v1067, %v1143
      %1145 = vdwg.mxu0
      %v1146 = vand.u32 %v907, 4294901760
      %1147 = vmatprep.subr.mxu0 %v1146
      %v1148 = vand.u32 %v904, 4294901760
      %1149 = vmatpush1.msra.mxu0 %v1148
      %1150 = vmatprep.subr.mxu0 0.0
      %1151 = vmatpush1.msra.mxu0 0.0
      %1152 = vmatprep.subr.mxu0 0.0
      %1153 = vmatpush1.msra.mxu0 0.0
      %1154 = vmatprep.subr.mxu0 0.0
      %1155 = vmatpush1.msra.mxu0 0.0
      %1156 = vmatprep.subr.mxu0 0.0
      %1157 = vmatpush1.msra.mxu0 0.0
      %1158 = vmatprep.subr.mxu0 0.0
      %1159 = vmatpush1.msra.mxu0 0.0
      %1160 = vmatprep.subr.mxu0 0.0
      %1161 = vmatpush1.msra.mxu0 0.0
      %1162 = vmatprep.subr.mxu0 0.0
      %1163 = vmatpush1.msra.mxu0 0.0
      %1164 = vmatprep.subr.mxu0 0.0
      %1165 = vmatpush1.msra.mxu0 0.0
      %1166 = vmatprep.subr.mxu0 0.0
      %1167 = vmatpush1.msra.mxu0 0.0
      %1168 = vmatprep.subr.mxu0 0.0
      %1169 = vmatpush1.msra.mxu0 0.0
      %1170 = vmatprep.subr.mxu0 0.0
      %1171 = vmatpush1.msra.mxu0 0.0
      %1172 = vmatprep.subr.mxu0 0.0
      %1173 = vmatpush1.msra.mxu0 0.0
      %1174 = vmatprep.subr.mxu0 0.0
      %1175 = vmatpush1.msra.mxu0 0.0
      %1176 = vmatprep.subr.mxu0 0.0
      %1177 = vmatpush1.msra.mxu0 0.0
      %1178 = vmatprep.subr.mxu0 0.0
      %1179 = vmatpush1.msra.mxu0 0.0
      %1180 = vmatprep.subr.mxu0 0.0
      %1181 = vmatpush1.msra.mxu0 0.0
      %1182 = vmatprep.subr.mxu0 0.0
      %1183 = vmatpush1.msra.mxu0 0.0
      %1184 = vmatprep.subr.mxu0 0.0
      %1185 = vmatpush1.msra.mxu0 0.0
      %1186 = vmatprep.subr.mxu0 0.0
      %1187 = vmatpush1.msra.mxu0 0.0
      %1188 = vmatprep.subr.mxu0 0.0
      %1189 = vmatpush1.msra.mxu0 0.0
      %1190 = vmatprep.subr.mxu0 0.0
      %1191 = vmatpush1.msra.mxu0 0.0
      %1192 = vmatprep.subr.mxu0 0.0
      %1193 = vmatpush1.msra.mxu0 0.0
      %1194 = vmatprep.subr.mxu0 0.0
      %1195 = vmatpush1.msra.mxu0 0.0
      %1196 = vmatprep.subr.mxu0 0.0
      %1197 = vmatpush1.msra.mxu0 0.0
      %1198 = vmatprep.subr.mxu0 0.0
      %1199 = vmatpush1.msra.mxu0 0.0
      %1200 = vmatprep.subr.mxu0 0.0
      %1201 = vmatpush1.msra.mxu0 0.0
      %1202 = vmatprep.subr.mxu0 0.0
      %1203 = vmatpush1.msra.mxu0 0.0
      %1204 = vmatprep.subr.mxu0 0.0
      %1205 = vmatpush1.msra.mxu0 0.0
      %1206 = vmatprep.subr.mxu0 0.0
      %1207 = vmatpush1.msra.mxu0 0.0
      %1208 = vmatprep.subr.mxu0 0.0
      %1209 = vmatpush1.msra.mxu0 0.0
      %1210 = vmatprep.subr.mxu0 0.0
      %1211 = vmatpush1.msra.mxu0 0.0
      %1212 = vmatprep.mubr.f32.mxu0 0.0
      %v1213 = vand.u32 %v901, 4294901760
      %v1214 = vsub.f32 %v901, %v1213
      %v1215 = vand.u32 %v1214, 4294901760
      %1216 = vmatmul.mubr.f32.gmra.mrb[0].mxu0 %v1215
      %v1217 = vpop.f32.mrb[0].mxu0
      %v1218 = vadd.f32 %v1142, %v1217
      %v1219 = vpop.f32.mrb[0].mxu0
      %v1220 = vadd.f32 %v1144, %v1219
      %1221 = vdwg.mxu0
      %v1222 = vand.u32 %v907, 4294901760
      %v1223 = vsub.f32 %v907, %v1222
      %v1224 = vand.u32 %v1223, 4294901760
      %1225 = vmatprep.subr.mxu0 %v1224
      %v1226 = vand.u32 %v904, 4294901760
      %v1227 = vsub.f32 %v904, %v1226
      %v1228 = vand.u32 %v1227, 4294901760
      %1229 = vmatpush1.msra.mxu0 %v1228
      %1230 = vmatprep.subr.mxu0 0.0
      %1231 = vmatpush1.msra.mxu0 0.0
      %1232 = vmatprep.subr.mxu0 0.0
      %1233 = vmatpush1.msra.mxu0 0.0
      %1234 = vmatprep.subr.mxu0 0.0
      %1235 = vmatpush1.msra.mxu0 0.0
      %1236 = vmatprep.subr.mxu0 0.0
      %1237 = vmatpush1.msra.mxu0 0.0
      %1238 = vmatprep.subr.mxu0 0.0
      %1239 = vmatpush1.msra.mxu0 0.0
      %1240 = vmatprep.subr.mxu0 0.0
      %1241 = vmatpush1.msra.mxu0 0.0
      %1242 = vmatprep.subr.mxu0 0.0
      %1243 = vmatpush1.msra.mxu0 0.0
      %1244 = vmatprep.subr.mxu0 0.0
      %1245 = vmatpush1.msra.mxu0 0.0
      %1246 = vmatprep.subr.mxu0 0.0
      %1247 = vmatpush1.msra.mxu0 0.0
      %1248 = vmatprep.subr.mxu0 0.0
      %1249 = vmatpush1.msra.mxu0 0.0
      %1250 = vmatprep.subr.mxu0 0.0
      %1251 = vmatpush1.msra.mxu0 0.0
      %1252 = vmatprep.subr.mxu0 0.0
      %1253 = vmatpush1.msra.mxu0 0.0
      %1254 = vmatprep.subr.mxu0 0.0
      %1255 = vmatpush1.msra.mxu0 0.0
      %1256 = vmatprep.subr.mxu0 0.0
      %1257 = vmatpush1.msra.mxu0 0.0
      %1258 = vmatprep.subr.mxu0 0.0
      %1259 = vmatpush1.msra.mxu0 0.0
      %1260 = vmatprep.subr.mxu0 0.0
      %1261 = vmatpush1.msra.mxu0 0.0
      %1262 = vmatprep.subr.mxu0 0.0
      %1263 = vmatpush1.msra.mxu0 0.0
      %1264 = vmatprep.subr.mxu0 0.0
      %1265 = vmatpush1.msra.mxu0 0.0
      %1266 = vmatprep.subr.mxu0 0.0
      %1267 = vmatpush1.msra.mxu0 0.0
      %1268 = vmatprep.subr.mxu0 0.0
      %1269 = vmatpush1.msra.mxu0 0.0
      %1270 = vmatprep.subr.mxu0 0.0
      %1271 = vmatpush1.msra.mxu0 0.0
      %1272 = vmatprep.subr.mxu0 0.0
      %1273 = vmatpush1.msra.mxu0 0.0
      %1274 = vmatprep.subr.mxu0 0.0
      %1275 = vmatpush1.msra.mxu0 0.0
      %1276 = vmatprep.subr.mxu0 0.0
      %1277 = vmatpush1.msra.mxu0 0.0
      %1278 = vmatprep.subr.mxu0 0.0
      %1279 = vmatpush1.msra.mxu0 0.0
      %1280 = vmatprep.subr.mxu0 0.0
      %1281 = vmatpush1.msra.mxu0 0.0
      %1282 = vmatprep.subr.mxu0 0.0
      %1283 = vmatpush1.msra.mxu0 0.0
      %1284 = vmatprep.subr.mxu0 0.0
      %1285 = vmatpush1.msra.mxu0 0.0
      %1286 = vmatprep.subr.mxu0 0.0
      %1287 = vmatpush1.msra.mxu0 0.0
      %1288 = vmatprep.subr.mxu0 0.0
      %1289 = vmatpush1.msra.mxu0 0.0
      %1290 = vmatprep.subr.mxu0 0.0
      %1291 = vmatpush1.msra.mxu0 0.0
      %1292 = vmatprep.mubr.f32.mxu0 0.0
      %v1293 = vand.u32 %v901, 4294901760
      %1294 = vmatmul.mubr.f32.gmra.mrb[0].mxu0 %v1293
      %v1295 = vpop.f32.mrb[0].mxu0
      %v1296 = vadd.f32 %v1218, %v1295
      %v1297 = vpop.f32.mrb[0].mxu0
      %v1298 = vadd.f32 %v1220, %v1297
      %1299 = vdwg.mxu0
      %v1300 = vand.u32 %v907, 4294901760
      %1301 = vmatprep.subr.mxu0 %v1300
      %v1302 = vand.u32 %v904, 4294901760
      %1303 = vmatpush1.msra.mxu0 %v1302
      %1304 = vmatprep.subr.mxu0 0.0
      %1305 = vmatpush1.msra.mxu0 0.0
      %1306 = vmatprep.subr.mxu0 0.0
      %1307 = vmatpush1.msra.mxu0 0.0
      %1308 = vmatprep.subr.mxu0 0.0
      %1309 = vmatpush1.msra.mxu0 0.0
      %1310 = vmatprep.subr.mxu0 0.0
      %1311 = vmatpush1.msra.mxu0 0.0
      %1312 = vmatprep.subr.mxu0 0.0
      %1313 = vmatpush1.msra.mxu0 0.0
      %1314 = vmatprep.subr.mxu0 0.0
      %1315 = vmatpush1.msra.mxu0 0.0
      %1316 = vmatprep.subr.mxu0 0.0
      %1317 = vmatpush1.msra.mxu0 0.0
      %1318 = vmatprep.subr.mxu0 0.0
      %1319 = vmatpush1.msra.mxu0 0.0
      %1320 = vmatprep.subr.mxu0 0.0
      %1321 = vmatpush1.msra.mxu0 0.0
      %1322 = vmatprep.subr.mxu0 0.0
      %1323 = vmatpush1.msra.mxu0 0.0
      %1324 = vmatprep.subr.mxu0 0.0
      %1325 = vmatpush1.msra.mxu0 0.0
      %1326 = vmatprep.subr.mxu0 0.0
      %1327 = vmatpush1.msra.mxu0 0.0
      %1328 = vmatprep.subr.mxu0 0.0
      %1329 = vmatpush1.msra.mxu0 0.0
      %1330 = vmatprep.subr.mxu0 0.0
      %1331 = vmatpush1.msra.mxu0 0.0
      %1332 = vmatprep.subr.mxu0 0.0
      %1333 = vmatpush1.msra.mxu0 0.0
      %1334 = vmatprep.subr.mxu0 0.0
      %1335 = vmatpush1.msra.mxu0 0.0
      %1336 = vmatprep.subr.mxu0 0.0
      %1337 = vmatpush1.msra.mxu0 0.0
      %1338 = vmatprep.subr.mxu0 0.0
      %1339 = vmatpush1.msra.mxu0 0.0
      %1340 = vmatprep.subr.mxu0 0.0
      %1341 = vmatpush1.msra.mxu0 0.0
      %1342 = vmatprep.subr.mxu0 0.0
      %1343 = vmatpush1.msra.mxu0 0.0
      %1344 = vmatprep.subr.mxu0 0.0
      %1345 = vmatpush1.msra.mxu0 0.0
      %1346 = vmatprep.subr.mxu0 0.0
      %1347 = vmatpush1.msra.mxu0 0.0
      %1348 = vmatprep.subr.mxu0 0.0
      %1349 = vmatpush1.msra.mxu0 0.0
      %1350 = vmatprep.subr.mxu0 0.0
      %1351 = vmatpush1.msra.mxu0 0.0
      %1352 = vmatprep.subr.mxu0 0.0
      %1353 = vmatpush1.msra.mxu0 0.0
      %1354 = vmatprep.subr.mxu0 0.0
      %1355 = vmatpush1.msra.mxu0 0.0
      %1356 = vmatprep.subr.mxu0 0.0
      %1357 = vmatpush1.msra.mxu0 0.0
      %1358 = vmatprep.subr.mxu0 0.0
      %1359 = vmatpush1.msra.mxu0 0.0
      %1360 = vmatprep.subr.mxu0 0.0
      %1361 = vmatpush1.msra.mxu0 0.0
      %1362 = vmatprep.subr.mxu0 0.0
      %1363 = vmatpush1.msra.mxu0 0.0
      %1364 = vmatprep.subr.mxu0 0.0
      %1365 = vmatpush1.msra.mxu0 0.0
      %1366 = vmatprep.mubr.f32.mxu0 0.0
      %v1367 = vand.u32 %v901, 4294901760
      %1368 = vmatmul.mubr.f32.gmra.mrb[0].mxu0 %v1367
      %v1369 = vpop.f32.mrb[0].mxu0
      %v1370 = vadd.f32 %v1296, %v1369
      %v1371 = vpop.f32.mrb[0].mxu0
      %v1372 = vadd.f32 %v1298, %v1371
      %1373 = vdwg.mxu0
      %vm1374 = vcmask 1041408
      %v1375 = vsel %vm1374, %v1370, 0.0
      %v1376 = vsel %vm1374, %v1372, 0.0
      %v1377 = vadd.f32 %v1375, %v1376
      %1378 = vadd.xlane.f32.xlu0 %v1377
      %v1379 = vpop.xlane.xlu0 %1378
      %v1380 = vmul.f32 %v1379, 0.00390625
      %v1381 = vsub.f32 %v1370, %v1380
      %v1382 = vsub.f32 %v1372, %v1380
      %v1383 = vmul.f32 %v1381, %v1381
      %v1384 = vmul.f32 %v1382, %v1382
      %v1385 = vsel %vm1374, %v1383, 0.0
      %v1386 = vsel %vm1374, %v1384, 0.0
      %v1387 = vadd.f32 %v1385, %v1386
      %1388 = vadd.xlane.f32.xlu0 %v1387
      %v1389 = vpop.xlane.xlu0 %1388
      %v1390 = vmul.f32 %v1389, 0.00390625
      %v1391 = vadd.f32 %v1390, 1e-05
      %v1392 = vrsqrt.pop %v1391
      %v1393 = vmul.f32 %v1381, %v1392
      %v1394 = vmul.f32 %v1382, %v1392
      %vm1395 = vcmp.ge.f32.partialorder %v1393, 0.0
      %vm1396 = vcmp.ge.f32.partialorder %v1394, 0.0
      %v1397 = vmul.f32 %v1393, 0.01
      %v1398 = vmul.f32 %v1394, 0.01
      %v1399 = vsel %vm1395, %v1393, %v1397
      %v1400 = vsel %vm1396, %v1394, %v1398
      %s1401 = scalar_lea.vmem %s1, 352
      %v1402 = vld [vmem:[%s1401] sm:$0x3]
      %v1403 = vld [vmem:[%s1401 + $0x8] sm:$0x3]
      %v1404 = vmul.f32 %v1399, %v1402
      %v1405 = vmul.f32 %v1400, %v1403
      %1406 = vrot.lane.b32.xlu0 %v1399, 17
      %v1407 = vpop.permute.xlu0 %1406
      %1408 = vrot.lane.b32.xlu0 %v1400, 17
      %v1409 = vpop.permute.xlu0 %1408
      %v1410 = vsel %vm184, %v1407, %v1409
      %v1411 = vsel %vm184, %v1409, %v1407
      %s1412 = scalar_lea.vmem %s1, 288
      %v1413 = vld [vmem:[%s1412] sm:$0x3]
      %v1414 = vld [vmem:[%s1412 + $0x8] sm:$0x3]
      %v1415 = vmul.f32 %v1411, %v1413
      %v1416 = vmul.f32 %v1410, %v1414
      %v1417 = vadd.f32 %v1404, %v1415
      %v1418 = vadd.f32 %v1405, %v1416
      %1419 = vrot.lane.b32.xlu0 %v1399, 16
      %v1420 = vpop.permute.xlu0 %1419
      %1421 = vrot.lane.b32.xlu0 %v1400, 16
      %v1422 = vpop.permute.xlu0 %1421
      %v1423 = vsel %vm197, %v1420, %v1422
      %v1424 = vsel %vm197, %v1422, %v1420
      %s1425 = scalar_lea.vmem %s1, 304
      %v1426 = vld [vmem:[%s1425] sm:$0x3]
      %v1427 = vld [vmem:[%s1425 + $0x8] sm:$0x3]
      %v1428 = vmul.f32 %v1424, %v1426
      %v1429 = vmul.f32 %v1423, %v1427
      %v1430 = vadd.f32 %v1417, %v1428
      %v1431 = vadd.f32 %v1418, %v1429
      %1432 = vrot.lane.b32.xlu0 %v1399, 15
      %v1433 = vpop.permute.xlu0 %1432
      %1434 = vrot.lane.b32.xlu0 %v1400, 15
      %v1435 = vpop.permute.xlu0 %1434
      %v1436 = vsel %vm211, %v1433, %v1435
      %v1437 = vsel %vm211, %v1435, %v1433
      %s1438 = scalar_lea.vmem %s1, 320
      %v1439 = vld [vmem:[%s1438] sm:$0x3]
      %v1440 = vld [vmem:[%s1438 + $0x8] sm:$0x3]
      %v1441 = vmul.f32 %v1437, %v1439
      %v1442 = vmul.f32 %v1436, %v1440
      %v1443 = vadd.f32 %v1430, %v1441
      %v1444 = vadd.f32 %v1431, %v1442
      %1445 = vrot.lane.b32.xlu0 %v1399, 1
      %v1446 = vpop.permute.xlu0 %1445
      %1447 = vrot.lane.b32.xlu0 %v1400, 1
      %v1448 = vpop.permute.xlu0 %1447
      %v1449 = vsel %vm225, %v1446, %v1448
      %v1450 = vsel %vm225, %v1448, %v1446
      %s1451 = scalar_lea.vmem %s1, 336
      %v1452 = vld [vmem:[%s1451] sm:$0x3]
      %v1453 = vld [vmem:[%s1451 + $0x8] sm:$0x3]
      %v1454 = vmul.f32 %v1450, %v1452
      %v1455 = vmul.f32 %v1449, %v1453
      %v1456 = vadd.f32 %v1443, %v1454
      %v1457 = vadd.f32 %v1444, %v1455
      %1458 = vrot.lane.b32.xlu0 %v1399, 127
      %v1459 = vpop.permute.xlu0 %1458
      %1460 = vrot.lane.b32.xlu0 %v1400, 127
      %v1461 = vpop.permute.xlu0 %1460
      %v1462 = vsel %vm239, %v1459, %v1461
      %v1463 = vsel %vm239, %v1461, %v1459
      %s1464 = scalar_lea.vmem %s1, 368
      %v1465 = vld [vmem:[%s1464] sm:$0x3]
      %v1466 = vld [vmem:[%s1464 + $0x8] sm:$0x3]
      %v1467 = vmul.f32 %v1462, %v1465
      %v1468 = vmul.f32 %v1463, %v1466
      %v1469 = vadd.f32 %v1456, %v1467
      %v1470 = vadd.f32 %v1457, %v1468
      %1471 = vrot.lane.b32.xlu0 %v1399, 113
      %v1472 = vpop.permute.xlu0 %1471
      %1473 = vrot.lane.b32.xlu0 %v1400, 113
      %v1474 = vpop.permute.xlu0 %1473
      %v1475 = vsel %vm253, %v1472, %v1474
      %v1476 = vsel %vm253, %v1474, %v1472
      %s1477 = scalar_lea.vmem %s1, 384
      %v1478 = vld [vmem:[%s1477] sm:$0x3]
      %v1479 = vld [vmem:[%s1477 + $0x8] sm:$0x3]
      %v1480 = vmul.f32 %v1475, %v1478
      %v1481 = vmul.f32 %v1476, %v1479
      %v1482 = vadd.f32 %v1469, %v1480
      %v1483 = vadd.f32 %v1470, %v1481
      %1484 = vrot.lane.b32.xlu0 %v1399, 112
      %v1485 = vpop.permute.xlu0 %1484
      %1486 = vrot.lane.b32.xlu0 %v1400, 112
      %v1487 = vpop.permute.xlu0 %1486
      %v1488 = vsel %vm267, %v1485, %v1487
      %v1489 = vsel %vm267, %v1487, %v1485
      %s1490 = scalar_lea.vmem %s1, 400
      %v1491 = vld [vmem:[%s1490] sm:$0x3]
      %v1492 = vld [vmem:[%s1490 + $0x8] sm:$0x3]
      %v1493 = vmul.f32 %v1488, %v1491
      %v1494 = vmul.f32 %v1489, %v1492
      %v1495 = vadd.f32 %v1482, %v1493
      %v1496 = vadd.f32 %v1483, %v1494
      %1497 = vrot.lane.b32.xlu0 %v1399, 111
      %v1498 = vpop.permute.xlu0 %1497
      %1499 = vrot.lane.b32.xlu0 %v1400, 111
      %v1500 = vpop.permute.xlu0 %1499
      %v1501 = vsel %vm281, %v1498, %v1500
      %v1502 = vsel %vm281, %v1500, %v1498
      %s1503 = scalar_lea.vmem %s1, 416
      %v1504 = vld [vmem:[%s1503] sm:$0x3]
      %v1505 = vld [vmem:[%s1503 + $0x8] sm:$0x3]
      %v1506 = vmul.f32 %v1501, %v1504
      %v1507 = vmul.f32 %v1502, %v1505
      %v1508 = vadd.f32 %v1495, %v1506
      %v1509 = vadd.f32 %v1496, %v1507
      %s1510 = scalar_lea.vmem %s2, 16
      %v1511 = vld [vmem:[%s1510] sm:$0xf]
      %vm1512 = vcmask 15360
      %v1514 = vsel %vm1512, %v1511, 0
      %v1517 = vsel %vm1374, %v1508, 0
      %v1520 = vsel %vm1374, %v1509, 0
      %v1522 = vand.u32 %v1520, 4294901760
      %1523 = vmatprep.subr.mxu0 %v1522
      %v1524 = vand.u32 %v1517, 4294901760
      %1525 = vmatpush1.msra.mxu0 %v1524
      %1526 = vmatprep.subr.mxu0 0.0
      %1527 = vmatpush1.msra.mxu0 0.0
      %1528 = vmatprep.subr.mxu0 0.0
      %1529 = vmatpush1.msra.mxu0 0.0
      %1530 = vmatprep.subr.mxu0 0.0
      %1531 = vmatpush1.msra.mxu0 0.0
      %1532 = vmatprep.subr.mxu0 0.0
      %1533 = vmatpush1.msra.mxu0 0.0
      %1534 = vmatprep.subr.mxu0 0.0
      %1535 = vmatpush1.msra.mxu0 0.0
      %1536 = vmatprep.subr.mxu0 0.0
      %1537 = vmatpush1.msra.mxu0 0.0
      %1538 = vmatprep.subr.mxu0 0.0
      %1539 = vmatpush1.msra.mxu0 0.0
      %1540 = vmatprep.subr.mxu0 0.0
      %1541 = vmatpush1.msra.mxu0 0.0
      %1542 = vmatprep.subr.mxu0 0.0
      %1543 = vmatpush1.msra.mxu0 0.0
      %1544 = vmatprep.subr.mxu0 0.0
      %1545 = vmatpush1.msra.mxu0 0.0
      %1546 = vmatprep.subr.mxu0 0.0
      %1547 = vmatpush1.msra.mxu0 0.0
      %1548 = vmatprep.subr.mxu0 0.0
      %1549 = vmatpush1.msra.mxu0 0.0
      %1550 = vmatprep.subr.mxu0 0.0
      %1551 = vmatpush1.msra.mxu0 0.0
      %1552 = vmatprep.subr.mxu0 0.0
      %1553 = vmatpush1.msra.mxu0 0.0
      %1554 = vmatprep.subr.mxu0 0.0
      %1555 = vmatpush1.msra.mxu0 0.0
      %1556 = vmatprep.subr.mxu0 0.0
      %1557 = vmatpush1.msra.mxu0 0.0
      %1558 = vmatprep.subr.mxu0 0.0
      %1559 = vmatpush1.msra.mxu0 0.0
      %1560 = vmatprep.subr.mxu0 0.0
      %1561 = vmatpush1.msra.mxu0 0.0
      %1562 = vmatprep.subr.mxu0 0.0
      %1563 = vmatpush1.msra.mxu0 0.0
      %1564 = vmatprep.subr.mxu0 0.0
      %1565 = vmatpush1.msra.mxu0 0.0
      %1566 = vmatprep.subr.mxu0 0.0
      %1567 = vmatpush1.msra.mxu0 0.0
      %1568 = vmatprep.subr.mxu0 0.0
      %1569 = vmatpush1.msra.mxu0 0.0
      %1570 = vmatprep.subr.mxu0 0.0
      %1571 = vmatpush1.msra.mxu0 0.0
      %1572 = vmatprep.subr.mxu0 0.0
      %1573 = vmatpush1.msra.mxu0 0.0
      %1574 = vmatprep.subr.mxu0 0.0
      %1575 = vmatpush1.msra.mxu0 0.0
      %1576 = vmatprep.subr.mxu0 0.0
      %1577 = vmatpush1.msra.mxu0 0.0
      %1578 = vmatprep.subr.mxu0 0.0
      %1579 = vmatpush1.msra.mxu0 0.0
      %1580 = vmatprep.subr.mxu0 0.0
      %1581 = vmatpush1.msra.mxu0 0.0
      %1582 = vmatprep.subr.mxu0 0.0
      %1583 = vmatpush1.msra.mxu0 0.0
      %1584 = vmatprep.subr.mxu0 0.0
      %1585 = vmatpush1.msra.mxu0 0.0
      %1586 = vmatprep.subr.mxu0 0.0
      %1587 = vmatpush1.msra.mxu0 0.0
      %1588 = vmatprep.mubr.f32.mxu0 0.0
      %v1589 = vand.u32 %v1514, 4294901760
      %v1590 = vsub.f32 %v1514, %v1589
      %v1591 = vand.u32 %v1590, 4294901760
      %v1592 = vsub.f32 %v1590, %v1591
      %v1593 = vand.u32 %v1592, 4294901760
      %1594 = vmatmul.mubr.f32.gmra.mrb[0].mxu0 %v1593
      %v1595 = vpop.f32.mrb[0].mxu0
      %v1596 = vadd.f32 0.0, %v1595
      %v1597 = vpop.f32.mrb[0].mxu0
      %v1598 = vadd.f32 0.0, %v1597
      %1599 = vdwg.mxu0
      %v1600 = vand.u32 %v1520, 4294901760
      %v1601 = vsub.f32 %v1520, %v1600
      %v1602 = vand.u32 %v1601, 4294901760
      %v1603 = vsub.f32 %v1601, %v1602
      %v1604 = vand.u32 %v1603, 4294901760
      %1605 = vmatprep.subr.mxu0 %v1604
      %v1606 = vand.u32 %v1517, 4294901760
      %v1607 = vsub.f32 %v1517, %v1606
      %v1608 = vand.u32 %v1607, 4294901760
      %v1609 = vsub.f32 %v1607, %v1608
      %v1610 = vand.u32 %v1609, 4294901760
      %1611 = vmatpush1.msra.mxu0 %v1610
      %1612 = vmatprep.subr.mxu0 0.0
      %1613 = vmatpush1.msra.mxu0 0.0
      %1614 = vmatprep.subr.mxu0 0.0
      %1615 = vmatpush1.msra.mxu0 0.0
      %1616 = vmatprep.subr.mxu0 0.0
      %1617 = vmatpush1.msra.mxu0 0.0
      %1618 = vmatprep.subr.mxu0 0.0
      %1619 = vmatpush1.msra.mxu0 0.0
      %1620 = vmatprep.subr.mxu0 0.0
      %1621 = vmatpush1.msra.mxu0 0.0
      %1622 = vmatprep.subr.mxu0 0.0
      %1623 = vmatpush1.msra.mxu0 0.0
      %1624 = vmatprep.subr.mxu0 0.0
      %1625 = vmatpush1.msra.mxu0 0.0
      %1626 = vmatprep.subr.mxu0 0.0
      %1627 = vmatpush1.msra.mxu0 0.0
      %1628 = vmatprep.subr.mxu0 0.0
      %1629 = vmatpush1.msra.mxu0 0.0
      %1630 = vmatprep.subr.mxu0 0.0
      %1631 = vmatpush1.msra.mxu0 0.0
      %1632 = vmatprep.subr.mxu0 0.0
      %1633 = vmatpush1.msra.mxu0 0.0
      %1634 = vmatprep.subr.mxu0 0.0
      %1635 = vmatpush1.msra.mxu0 0.0
      %1636 = vmatprep.subr.mxu0 0.0
      %1637 = vmatpush1.msra.mxu0 0.0
      %1638 = vmatprep.subr.mxu0 0.0
      %1639 = vmatpush1.msra.mxu0 0.0
      %1640 = vmatprep.subr.mxu0 0.0
      %1641 = vmatpush1.msra.mxu0 0.0
      %1642 = vmatprep.subr.mxu0 0.0
      %1643 = vmatpush1.msra.mxu0 0.0
      %1644 = vmatprep.subr.mxu0 0.0
      %1645 = vmatpush1.msra.mxu0 0.0
      %1646 = vmatprep.subr.mxu0 0.0
      %1647 = vmatpush1.msra.mxu0 0.0
      %1648 = vmatprep.subr.mxu0 0.0
      %1649 = vmatpush1.msra.mxu0 0.0
      %1650 = vmatprep.subr.mxu0 0.0
      %1651 = vmatpush1.msra.mxu0 0.0
      %1652 = vmatprep.subr.mxu0 0.0
      %1653 = vmatpush1.msra.mxu0 0.0
      %1654 = vmatprep.subr.mxu0 0.0
      %1655 = vmatpush1.msra.mxu0 0.0
      %1656 = vmatprep.subr.mxu0 0.0
      %1657 = vmatpush1.msra.mxu0 0.0
      %1658 = vmatprep.subr.mxu0 0.0
      %1659 = vmatpush1.msra.mxu0 0.0
      %1660 = vmatprep.subr.mxu0 0.0
      %1661 = vmatpush1.msra.mxu0 0.0
      %1662 = vmatprep.subr.mxu0 0.0
      %1663 = vmatpush1.msra.mxu0 0.0
      %1664 = vmatprep.subr.mxu0 0.0
      %1665 = vmatpush1.msra.mxu0 0.0
      %1666 = vmatprep.subr.mxu0 0.0
      %1667 = vmatpush1.msra.mxu0 0.0
      %1668 = vmatprep.subr.mxu0 0.0
      %1669 = vmatpush1.msra.mxu0 0.0
      %1670 = vmatprep.subr.mxu0 0.0
      %1671 = vmatpush1.msra.mxu0 0.0
      %1672 = vmatprep.subr.mxu0 0.0
      %1673 = vmatpush1.msra.mxu0 0.0
      %1674 = vmatprep.mubr.f32.mxu0 0.0
      %v1675 = vand.u32 %v1514, 4294901760
      %1676 = vmatmul.mubr.f32.gmra.mrb[0].mxu0 %v1675
      %v1677 = vpop.f32.mrb[0].mxu0
      %v1678 = vadd.f32 %v1596, %v1677
      %v1679 = vpop.f32.mrb[0].mxu0
      %v1680 = vadd.f32 %v1598, %v1679
      %1681 = vdwg.mxu0
      %v1682 = vand.u32 %v1520, 4294901760
      %v1683 = vsub.f32 %v1520, %v1682
      %1684 = vmatprep.subr.mxu0 %v1683
      %v1685 = vand.u32 %v1517, 4294901760
      %v1686 = vsub.f32 %v1517, %v1685
      %1687 = vmatpush1.msra.mxu0 %v1686
      %1688 = vmatprep.subr.mxu0 0.0
      %1689 = vmatpush1.msra.mxu0 0.0
      %1690 = vmatprep.subr.mxu0 0.0
      %1691 = vmatpush1.msra.mxu0 0.0
      %1692 = vmatprep.subr.mxu0 0.0
      %1693 = vmatpush1.msra.mxu0 0.0
      %1694 = vmatprep.subr.mxu0 0.0
      %1695 = vmatpush1.msra.mxu0 0.0
      %1696 = vmatprep.subr.mxu0 0.0
      %1697 = vmatpush1.msra.mxu0 0.0
      %1698 = vmatprep.subr.mxu0 0.0
      %1699 = vmatpush1.msra.mxu0 0.0
      %1700 = vmatprep.subr.mxu0 0.0
      %1701 = vmatpush1.msra.mxu0 0.0
      %1702 = vmatprep.subr.mxu0 0.0
      %1703 = vmatpush1.msra.mxu0 0.0
      %1704 = vmatprep.subr.mxu0 0.0
      %1705 = vmatpush1.msra.mxu0 0.0
      %1706 = vmatprep.subr.mxu0 0.0
      %1707 = vmatpush1.msra.mxu0 0.0
      %1708 = vmatprep.subr.mxu0 0.0
      %1709 = vmatpush1.msra.mxu0 0.0
      %1710 = vmatprep.subr.mxu0 0.0
      %1711 = vmatpush1.msra.mxu0 0.0
      %1712 = vmatprep.subr.mxu0 0.0
      %1713 = vmatpush1.msra.mxu0 0.0
      %1714 = vmatprep.subr.mxu0 0.0
      %1715 = vmatpush1.msra.mxu0 0.0
      %1716 = vmatprep.subr.mxu0 0.0
      %1717 = vmatpush1.msra.mxu0 0.0
      %1718 = vmatprep.subr.mxu0 0.0
      %1719 = vmatpush1.msra.mxu0 0.0
      %1720 = vmatprep.subr.mxu0 0.0
      %1721 = vmatpush1.msra.mxu0 0.0
      %1722 = vmatprep.subr.mxu0 0.0
      %1723 = vmatpush1.msra.mxu0 0.0
      %1724 = vmatprep.subr.mxu0 0.0
      %1725 = vmatpush1.msra.mxu0 0.0
      %1726 = vmatprep.subr.mxu0 0.0
      %1727 = vmatpush1.msra.mxu0 0.0
      %1728 = vmatprep.subr.mxu0 0.0
      %1729 = vmatpush1.msra.mxu0 0.0
      %1730 = vmatprep.subr.mxu0 0.0
      %1731 = vmatpush1.msra.mxu0 0.0
      %1732 = vmatprep.subr.mxu0 0.0
      %1733 = vmatpush1.msra.mxu0 0.0
      %1734 = vmatprep.subr.mxu0 0.0
      %1735 = vmatpush1.msra.mxu0 0.0
      %1736 = vmatprep.subr.mxu0 0.0
      %1737 = vmatpush1.msra.mxu0 0.0
      %1738 = vmatprep.subr.mxu0 0.0
      %1739 = vmatpush1.msra.mxu0 0.0
      %1740 = vmatprep.subr.mxu0 0.0
      %1741 = vmatpush1.msra.mxu0 0.0
      %1742 = vmatprep.subr.mxu0 0.0
      %1743 = vmatpush1.msra.mxu0 0.0
      %1744 = vmatprep.subr.mxu0 0.0
      %1745 = vmatpush1.msra.mxu0 0.0
      %1746 = vmatprep.subr.mxu0 0.0
      %1747 = vmatpush1.msra.mxu0 0.0
      %1748 = vmatprep.subr.mxu0 0.0
      %1749 = vmatpush1.msra.mxu0 0.0
      %1750 = vmatprep.mubr.f32.mxu0 0.0
      %v1751 = vand.u32 %v1514, 4294901760
      %v1752 = vsub.f32 %v1514, %v1751
      %1753 = vmatmul.mubr.f32.gmra.mrb[0].mxu0 %v1752
      %v1754 = vpop.f32.mrb[0].mxu0
      %v1755 = vadd.f32 %v1678, %v1754
      %v1756 = vpop.f32.mrb[0].mxu0
      %v1757 = vadd.f32 %v1680, %v1756
      %1758 = vdwg.mxu0
      %v1759 = vand.u32 %v1520, 4294901760
      %1760 = vmatprep.subr.mxu0 %v1759
      %v1761 = vand.u32 %v1517, 4294901760
      %1762 = vmatpush1.msra.mxu0 %v1761
      %1763 = vmatprep.subr.mxu0 0.0
      %1764 = vmatpush1.msra.mxu0 0.0
      %1765 = vmatprep.subr.mxu0 0.0
      %1766 = vmatpush1.msra.mxu0 0.0
      %1767 = vmatprep.subr.mxu0 0.0
      %1768 = vmatpush1.msra.mxu0 0.0
      %1769 = vmatprep.subr.mxu0 0.0
      %1770 = vmatpush1.msra.mxu0 0.0
      %1771 = vmatprep.subr.mxu0 0.0
      %1772 = vmatpush1.msra.mxu0 0.0
      %1773 = vmatprep.subr.mxu0 0.0
      %1774 = vmatpush1.msra.mxu0 0.0
      %1775 = vmatprep.subr.mxu0 0.0
      %1776 = vmatpush1.msra.mxu0 0.0
      %1777 = vmatprep.subr.mxu0 0.0
      %1778 = vmatpush1.msra.mxu0 0.0
      %1779 = vmatprep.subr.mxu0 0.0
      %1780 = vmatpush1.msra.mxu0 0.0
      %1781 = vmatprep.subr.mxu0 0.0
      %1782 = vmatpush1.msra.mxu0 0.0
      %1783 = vmatprep.subr.mxu0 0.0
      %1784 = vmatpush1.msra.mxu0 0.0
      %1785 = vmatprep.subr.mxu0 0.0
      %1786 = vmatpush1.msra.mxu0 0.0
      %1787 = vmatprep.subr.mxu0 0.0
      %1788 = vmatpush1.msra.mxu0 0.0
      %1789 = vmatprep.subr.mxu0 0.0
      %1790 = vmatpush1.msra.mxu0 0.0
      %1791 = vmatprep.subr.mxu0 0.0
      %1792 = vmatpush1.msra.mxu0 0.0
      %1793 = vmatprep.subr.mxu0 0.0
      %1794 = vmatpush1.msra.mxu0 0.0
      %1795 = vmatprep.subr.mxu0 0.0
      %1796 = vmatpush1.msra.mxu0 0.0
      %1797 = vmatprep.subr.mxu0 0.0
      %1798 = vmatpush1.msra.mxu0 0.0
      %1799 = vmatprep.subr.mxu0 0.0
      %1800 = vmatpush1.msra.mxu0 0.0
      %1801 = vmatprep.subr.mxu0 0.0
      %1802 = vmatpush1.msra.mxu0 0.0
      %1803 = vmatprep.subr.mxu0 0.0
      %1804 = vmatpush1.msra.mxu0 0.0
      %1805 = vmatprep.subr.mxu0 0.0
      %1806 = vmatpush1.msra.mxu0 0.0
      %1807 = vmatprep.subr.mxu0 0.0
      %1808 = vmatpush1.msra.mxu0 0.0
      %1809 = vmatprep.subr.mxu0 0.0
      %1810 = vmatpush1.msra.mxu0 0.0
      %1811 = vmatprep.subr.mxu0 0.0
      %1812 = vmatpush1.msra.mxu0 0.0
      %1813 = vmatprep.subr.mxu0 0.0
      %1814 = vmatpush1.msra.mxu0 0.0
      %1815 = vmatprep.subr.mxu0 0.0
      %1816 = vmatpush1.msra.mxu0 0.0
      %1817 = vmatprep.subr.mxu0 0.0
      %1818 = vmatpush1.msra.mxu0 0.0
      %1819 = vmatprep.subr.mxu0 0.0
      %1820 = vmatpush1.msra.mxu0 0.0
      %1821 = vmatprep.subr.mxu0 0.0
      %1822 = vmatpush1.msra.mxu0 0.0
      %1823 = vmatprep.subr.mxu0 0.0
      %1824 = vmatpush1.msra.mxu0 0.0
      %1825 = vmatprep.mubr.f32.mxu0 0.0
      %v1826 = vand.u32 %v1514, 4294901760
      %v1827 = vsub.f32 %v1514, %v1826
      %v1828 = vand.u32 %v1827, 4294901760
      %1829 = vmatmul.mubr.f32.gmra.mrb[0].mxu0 %v1828
      %v1830 = vpop.f32.mrb[0].mxu0
      %v1831 = vadd.f32 %v1755, %v1830
      %v1832 = vpop.f32.mrb[0].mxu0
      %v1833 = vadd.f32 %v1757, %v1832
      %1834 = vdwg.mxu0
      %v1835 = vand.u32 %v1520, 4294901760
      %v1836 = vsub.f32 %v1520, %v1835
      %v1837 = vand.u32 %v1836, 4294901760
      %1838 = vmatprep.subr.mxu0 %v1837
      %v1839 = vand.u32 %v1517, 4294901760
      %v1840 = vsub.f32 %v1517, %v1839
      %v1841 = vand.u32 %v1840, 4294901760
      %1842 = vmatpush1.msra.mxu0 %v1841
      %1843 = vmatprep.subr.mxu0 0.0
      %1844 = vmatpush1.msra.mxu0 0.0
      %1845 = vmatprep.subr.mxu0 0.0
      %1846 = vmatpush1.msra.mxu0 0.0
      %1847 = vmatprep.subr.mxu0 0.0
      %1848 = vmatpush1.msra.mxu0 0.0
      %1849 = vmatprep.subr.mxu0 0.0
      %1850 = vmatpush1.msra.mxu0 0.0
      %1851 = vmatprep.subr.mxu0 0.0
      %1852 = vmatpush1.msra.mxu0 0.0
      %1853 = vmatprep.subr.mxu0 0.0
      %1854 = vmatpush1.msra.mxu0 0.0
      %1855 = vmatprep.subr.mxu0 0.0
      %1856 = vmatpush1.msra.mxu0 0.0
      %1857 = vmatprep.subr.mxu0 0.0
      %1858 = vmatpush1.msra.mxu0 0.0
      %1859 = vmatprep.subr.mxu0 0.0
      %1860 = vmatpush1.msra.mxu0 0.0
      %1861 = vmatprep.subr.mxu0 0.0
      %1862 = vmatpush1.msra.mxu0 0.0
      %1863 = vmatprep.subr.mxu0 0.0
      %1864 = vmatpush1.msra.mxu0 0.0
      %1865 = vmatprep.subr.mxu0 0.0
      %1866 = vmatpush1.msra.mxu0 0.0
      %1867 = vmatprep.subr.mxu0 0.0
      %1868 = vmatpush1.msra.mxu0 0.0
      %1869 = vmatprep.subr.mxu0 0.0
      %1870 = vmatpush1.msra.mxu0 0.0
      %1871 = vmatprep.subr.mxu0 0.0
      %1872 = vmatpush1.msra.mxu0 0.0
      %1873 = vmatprep.subr.mxu0 0.0
      %1874 = vmatpush1.msra.mxu0 0.0
      %1875 = vmatprep.subr.mxu0 0.0
      %1876 = vmatpush1.msra.mxu0 0.0
      %1877 = vmatprep.subr.mxu0 0.0
      %1878 = vmatpush1.msra.mxu0 0.0
      %1879 = vmatprep.subr.mxu0 0.0
      %1880 = vmatpush1.msra.mxu0 0.0
      %1881 = vmatprep.subr.mxu0 0.0
      %1882 = vmatpush1.msra.mxu0 0.0
      %1883 = vmatprep.subr.mxu0 0.0
      %1884 = vmatpush1.msra.mxu0 0.0
      %1885 = vmatprep.subr.mxu0 0.0
      %1886 = vmatpush1.msra.mxu0 0.0
      %1887 = vmatprep.subr.mxu0 0.0
      %1888 = vmatpush1.msra.mxu0 0.0
      %1889 = vmatprep.subr.mxu0 0.0
      %1890 = vmatpush1.msra.mxu0 0.0
      %1891 = vmatprep.subr.mxu0 0.0
      %1892 = vmatpush1.msra.mxu0 0.0
      %1893 = vmatprep.subr.mxu0 0.0
      %1894 = vmatpush1.msra.mxu0 0.0
      %1895 = vmatprep.subr.mxu0 0.0
      %1896 = vmatpush1.msra.mxu0 0.0
      %1897 = vmatprep.subr.mxu0 0.0
      %1898 = vmatpush1.msra.mxu0 0.0
      %1899 = vmatprep.subr.mxu0 0.0
      %1900 = vmatpush1.msra.mxu0 0.0
      %1901 = vmatprep.subr.mxu0 0.0
      %1902 = vmatpush1.msra.mxu0 0.0
      %1903 = vmatprep.subr.mxu0 0.0
      %1904 = vmatpush1.msra.mxu0 0.0
      %1905 = vmatprep.mubr.f32.mxu0 0.0
      %v1906 = vand.u32 %v1514, 4294901760
      %1907 = vmatmul.mubr.f32.gmra.mrb[0].mxu0 %v1906
      %v1908 = vpop.f32.mrb[0].mxu0
      %v1909 = vadd.f32 %v1831, %v1908
      %v1910 = vpop.f32.mrb[0].mxu0
      %v1911 = vadd.f32 %v1833, %v1910
      %1912 = vdwg.mxu0
      %v1913 = vand.u32 %v1520, 4294901760
      %1914 = vmatprep.subr.mxu0 %v1913
      %v1915 = vand.u32 %v1517, 4294901760
      %1916 = vmatpush1.msra.mxu0 %v1915
      %1917 = vmatprep.subr.mxu0 0.0
      %1918 = vmatpush1.msra.mxu0 0.0
      %1919 = vmatprep.subr.mxu0 0.0
      %1920 = vmatpush1.msra.mxu0 0.0
      %1921 = vmatprep.subr.mxu0 0.0
      %1922 = vmatpush1.msra.mxu0 0.0
      %1923 = vmatprep.subr.mxu0 0.0
      %1924 = vmatpush1.msra.mxu0 0.0
      %1925 = vmatprep.subr.mxu0 0.0
      %1926 = vmatpush1.msra.mxu0 0.0
      %1927 = vmatprep.subr.mxu0 0.0
      %1928 = vmatpush1.msra.mxu0 0.0
      %1929 = vmatprep.subr.mxu0 0.0
      %1930 = vmatpush1.msra.mxu0 0.0
      %1931 = vmatprep.subr.mxu0 0.0
      %1932 = vmatpush1.msra.mxu0 0.0
      %1933 = vmatprep.subr.mxu0 0.0
      %1934 = vmatpush1.msra.mxu0 0.0
      %1935 = vmatprep.subr.mxu0 0.0
      %1936 = vmatpush1.msra.mxu0 0.0
      %1937 = vmatprep.subr.mxu0 0.0
      %1938 = vmatpush1.msra.mxu0 0.0
      %1939 = vmatprep.subr.mxu0 0.0
      %1940 = vmatpush1.msra.mxu0 0.0
      %1941 = vmatprep.subr.mxu0 0.0
      %1942 = vmatpush1.msra.mxu0 0.0
      %1943 = vmatprep.subr.mxu0 0.0
      %1944 = vmatpush1.msra.mxu0 0.0
      %1945 = vmatprep.subr.mxu0 0.0
      %1946 = vmatpush1.msra.mxu0 0.0
      %1947 = vmatprep.subr.mxu0 0.0
      %1948 = vmatpush1.msra.mxu0 0.0
      %1949 = vmatprep.subr.mxu0 0.0
      %1950 = vmatpush1.msra.mxu0 0.0
      %1951 = vmatprep.subr.mxu0 0.0
      %1952 = vmatpush1.msra.mxu0 0.0
      %1953 = vmatprep.subr.mxu0 0.0
      %1954 = vmatpush1.msra.mxu0 0.0
      %1955 = vmatprep.subr.mxu0 0.0
      %1956 = vmatpush1.msra.mxu0 0.0
      %1957 = vmatprep.subr.mxu0 0.0
      %1958 = vmatpush1.msra.mxu0 0.0
      %1959 = vmatprep.subr.mxu0 0.0
      %1960 = vmatpush1.msra.mxu0 0.0
      %1961 = vmatprep.subr.mxu0 0.0
      %1962 = vmatpush1.msra.mxu0 0.0
      %1963 = vmatprep.subr.mxu0 0.0
      %1964 = vmatpush1.msra.mxu0 0.0
      %1965 = vmatprep.subr.mxu0 0.0
      %1966 = vmatpush1.msra.mxu0 0.0
      %1967 = vmatprep.subr.mxu0 0.0
      %1968 = vmatpush1.msra.mxu0 0.0
      %1969 = vmatprep.subr.mxu0 0.0
      %1970 = vmatpush1.msra.mxu0 0.0
      %1971 = vmatprep.subr.mxu0 0.0
      %1972 = vmatpush1.msra.mxu0 0.0
      %1973 = vmatprep.subr.mxu0 0.0
      %1974 = vmatpush1.msra.mxu0 0.0
      %1975 = vmatprep.subr.mxu0 0.0
      %1976 = vmatpush1.msra.mxu0 0.0
      %1977 = vmatprep.subr.mxu0 0.0
      %1978 = vmatpush1.msra.mxu0 0.0
      %1979 = vmatprep.mubr.f32.mxu0 0.0
      %v1980 = vand.u32 %v1514, 4294901760
      %1981 = vmatmul.mubr.f32.gmra.mrb[0].mxu0 %v1980
      %v1982 = vpop.f32.mrb[0].mxu0
      %v1983 = vadd.f32 %v1909, %v1982
      %v1984 = vpop.f32.mrb[0].mxu0
      %v1985 = vadd.f32 %v1911, %v1984
      %1986 = vdwg.mxu0
      %v1987 = vsel %vm761, %v1983, 0.0
      %v1988 = vsel %vm761, %v1985, 0.0
      %v1989 = vadd.f32 %v1987, %v1988
      %1990 = vadd.xlane.f32.xlu0 %v1989
      %v1991 = vpop.xlane.xlu0 %1990
      %v1992 = vmul.f32 %v1991, 0.00390625
      %v1993 = vsub.f32 %v1983, %v1992
      %v1994 = vsub.f32 %v1985, %v1992
      %v1995 = vmul.f32 %v1993, %v1993
      %v1996 = vmul.f32 %v1994, %v1994
      %v1997 = vsel %vm761, %v1995, 0.0
      %v1998 = vsel %vm761, %v1996, 0.0
      %v1999 = vadd.f32 %v1997, %v1998
      %2000 = vadd.xlane.f32.xlu0 %v1999
      %v2001 = vpop.xlane.xlu0 %2000
      %v2002 = vmul.f32 %v2001, 0.00390625
      %v2003 = vadd.f32 %v2002, 1e-05
      %v2004 = vrsqrt.pop %v2003
      %v2005 = vmul.f32 %v1993, %v2004
      %v2006 = vmul.f32 %v1994, %v2004
      %vm2007 = vcmp.ge.f32.partialorder %v2005, 0.0
      %vm2008 = vcmp.ge.f32.partialorder %v2006, 0.0
      %v2009 = vmul.f32 %v2005, 0.01
      %v2010 = vmul.f32 %v2006, 0.01
      %v2011 = vsel %vm2007, %v2005, %v2009
      %v2012 = vsel %vm2008, %v2006, %v2010
      %s2013 = scalar_lea.vmem %s1, 496
      %v2014 = vld [vmem:[%s2013] sm:$0xf]
      %v2015 = vld [vmem:[%s2013 + $0x8] sm:$0xf]
      %v2016 = vmul.f32 %v2011, %v2014
      %v2017 = vmul.f32 %v2012, %v2015
      %2018 = vrot.lane.b32.xlu0 %v2011, 17
      %v2019 = vpop.permute.xlu0 %2018
      %2020 = vrot.lane.b32.xlu0 %v2012, 17
      %v2021 = vpop.permute.xlu0 %2020
      %v2022 = vsel %vm184, %v2019, %v2021
      %v2023 = vsel %vm184, %v2021, %v2019
      %s2024 = scalar_lea.vmem %s1, 432
      %v2025 = vld [vmem:[%s2024] sm:$0xf]
      %v2026 = vld [vmem:[%s2024 + $0x8] sm:$0xf]
      %v2027 = vmul.f32 %v2023, %v2025
      %v2028 = vmul.f32 %v2022, %v2026
      %v2029 = vadd.f32 %v2016, %v2027
      %v2030 = vadd.f32 %v2017, %v2028
      %2031 = vrot.lane.b32.xlu0 %v2011, 16
      %v2032 = vpop.permute.xlu0 %2031
      %2033 = vrot.lane.b32.xlu0 %v2012, 16
      %v2034 = vpop.permute.xlu0 %2033
      %v2035 = vsel %vm197, %v2032, %v2034
      %v2036 = vsel %vm197, %v2034, %v2032
      %s2037 = scalar_lea.vmem %s1, 448
      %v2038 = vld [vmem:[%s2037] sm:$0xf]
      %v2039 = vld [vmem:[%s2037 + $0x8] sm:$0xf]
      %v2040 = vmul.f32 %v2036, %v2038
      %v2041 = vmul.f32 %v2035, %v2039
      %v2042 = vadd.f32 %v2029, %v2040
      %v2043 = vadd.f32 %v2030, %v2041
      %2044 = vrot.lane.b32.xlu0 %v2011, 15
      %v2045 = vpop.permute.xlu0 %2044
      %2046 = vrot.lane.b32.xlu0 %v2012, 15
      %v2047 = vpop.permute.xlu0 %2046
      %v2048 = vsel %vm211, %v2045, %v2047
      %v2049 = vsel %vm211, %v2047, %v2045
      %s2050 = scalar_lea.vmem %s1, 464
      %v2051 = vld [vmem:[%s2050] sm:$0xf]
      %v2052 = vld [vmem:[%s2050 + $0x8] sm:$0xf]
      %v2053 = vmul.f32 %v2049, %v2051
      %v2054 = vmul.f32 %v2048, %v2052
      %v2055 = vadd.f32 %v2042, %v2053
      %v2056 = vadd.f32 %v2043, %v2054
      %2057 = vrot.lane.b32.xlu0 %v2011, 1
      %v2058 = vpop.permute.xlu0 %2057
      %2059 = vrot.lane.b32.xlu0 %v2012, 1
      %v2060 = vpop.permute.xlu0 %2059
      %v2061 = vsel %vm225, %v2058, %v2060
      %v2062 = vsel %vm225, %v2060, %v2058
      %s2063 = scalar_lea.vmem %s1, 480
      %v2064 = vld [vmem:[%s2063] sm:$0xf]
      %v2065 = vld [vmem:[%s2063 + $0x8] sm:$0xf]
      %v2066 = vmul.f32 %v2062, %v2064
      %v2067 = vmul.f32 %v2061, %v2065
      %v2068 = vadd.f32 %v2055, %v2066
      %v2069 = vadd.f32 %v2056, %v2067
      %2070 = vrot.lane.b32.xlu0 %v2011, 127
      %v2071 = vpop.permute.xlu0 %2070
      %2072 = vrot.lane.b32.xlu0 %v2012, 127
      %v2073 = vpop.permute.xlu0 %2072
      %v2074 = vsel %vm239, %v2071, %v2073
      %v2075 = vsel %vm239, %v2073, %v2071
      %s2076 = scalar_lea.vmem %s1, 512
      %v2077 = vld [vmem:[%s2076] sm:$0xf]
      %v2078 = vld [vmem:[%s2076 + $0x8] sm:$0xf]
      %v2079 = vmul.f32 %v2074, %v2077
      %v2080 = vmul.f32 %v2075, %v2078
      %v2081 = vadd.f32 %v2068, %v2079
      %v2082 = vadd.f32 %v2069, %v2080
      %2083 = vrot.lane.b32.xlu0 %v2011, 113
      %v2084 = vpop.permute.xlu0 %2083
      %2085 = vrot.lane.b32.xlu0 %v2012, 113
      %v2086 = vpop.permute.xlu0 %2085
      %v2087 = vsel %vm253, %v2084, %v2086
      %v2088 = vsel %vm253, %v2086, %v2084
      %s2089 = scalar_lea.vmem %s1, 528
      %v2090 = vld [vmem:[%s2089] sm:$0xf]
      %v2091 = vld [vmem:[%s2089 + $0x8] sm:$0xf]
      %v2092 = vmul.f32 %v2087, %v2090
      %v2093 = vmul.f32 %v2088, %v2091
      %v2094 = vadd.f32 %v2081, %v2092
      %v2095 = vadd.f32 %v2082, %v2093
      %2096 = vrot.lane.b32.xlu0 %v2011, 112
      %v2097 = vpop.permute.xlu0 %2096
      %2098 = vrot.lane.b32.xlu0 %v2012, 112
      %v2099 = vpop.permute.xlu0 %2098
      %v2100 = vsel %vm267, %v2097, %v2099
      %v2101 = vsel %vm267, %v2099, %v2097
      %s2102 = scalar_lea.vmem %s1, 544
      %v2103 = vld [vmem:[%s2102] sm:$0xf]
      %v2104 = vld [vmem:[%s2102 + $0x8] sm:$0xf]
      %v2105 = vmul.f32 %v2100, %v2103
      %v2106 = vmul.f32 %v2101, %v2104
      %v2107 = vadd.f32 %v2094, %v2105
      %v2108 = vadd.f32 %v2095, %v2106
      %2109 = vrot.lane.b32.xlu0 %v2011, 111
      %v2110 = vpop.permute.xlu0 %2109
      %2111 = vrot.lane.b32.xlu0 %v2012, 111
      %v2112 = vpop.permute.xlu0 %2111
      %v2113 = vsel %vm281, %v2110, %v2112
      %v2114 = vsel %vm281, %v2112, %v2110
      %s2115 = scalar_lea.vmem %s1, 560
      %v2116 = vld [vmem:[%s2115] sm:$0xf]
      %v2117 = vld [vmem:[%s2115 + $0x8] sm:$0xf]
      %v2118 = vmul.f32 %v2113, %v2116
      %v2119 = vmul.f32 %v2114, %v2117
      %v2120 = vadd.f32 %v2107, %v2118
      %v2121 = vadd.f32 %v2108, %v2119
      %s2122 = scalar_lea.vmem %s2, 24
      %v2123 = vld [vmem:[%s2122] sm:$0xff]
      %v2125 = vsel %vm899, %v2123, 0
      %v2128 = vsel %vm761, %v2120, 0
      %v2131 = vsel %vm761, %v2121, 0
      %v2133 = vand.u32 %v2131, 4294901760
      %2134 = vmatprep.subr.mxu0 %v2133
      %v2135 = vand.u32 %v2128, 4294901760
      %2136 = vmatpush1.msra.mxu0 %v2135
      %2137 = vmatprep.subr.mxu0 0.0
      %2138 = vmatpush1.msra.mxu0 0.0
      %2139 = vmatprep.subr.mxu0 0.0
      %2140 = vmatpush1.msra.mxu0 0.0
      %2141 = vmatprep.subr.mxu0 0.0
      %2142 = vmatpush1.msra.mxu0 0.0
      %2143 = vmatprep.subr.mxu0 0.0
      %2144 = vmatpush1.msra.mxu0 0.0
      %2145 = vmatprep.subr.mxu0 0.0
      %2146 = vmatpush1.msra.mxu0 0.0
      %2147 = vmatprep.subr.mxu0 0.0
      %2148 = vmatpush1.msra.mxu0 0.0
      %2149 = vmatprep.subr.mxu0 0.0
      %2150 = vmatpush1.msra.mxu0 0.0
      %2151 = vmatprep.subr.mxu0 0.0
      %2152 = vmatpush1.msra.mxu0 0.0
      %2153 = vmatprep.subr.mxu0 0.0
      %2154 = vmatpush1.msra.mxu0 0.0
      %2155 = vmatprep.subr.mxu0 0.0
      %2156 = vmatpush1.msra.mxu0 0.0
      %2157 = vmatprep.subr.mxu0 0.0
      %2158 = vmatpush1.msra.mxu0 0.0
      %2159 = vmatprep.subr.mxu0 0.0
      %2160 = vmatpush1.msra.mxu0 0.0
      %2161 = vmatprep.subr.mxu0 0.0
      %2162 = vmatpush1.msra.mxu0 0.0
      %2163 = vmatprep.subr.mxu0 0.0
      %2164 = vmatpush1.msra.mxu0 0.0
      %2165 = vmatprep.subr.mxu0 0.0
      %2166 = vmatpush1.msra.mxu0 0.0
      %2167 = vmatprep.subr.mxu0 0.0
      %2168 = vmatpush1.msra.mxu0 0.0
      %2169 = vmatprep.subr.mxu0 0.0
      %2170 = vmatpush1.msra.mxu0 0.0
      %2171 = vmatprep.subr.mxu0 0.0
      %2172 = vmatpush1.msra.mxu0 0.0
      %2173 = vmatprep.subr.mxu0 0.0
      %2174 = vmatpush1.msra.mxu0 0.0
      %2175 = vmatprep.subr.mxu0 0.0
      %2176 = vmatpush1.msra.mxu0 0.0
      %2177 = vmatprep.subr.mxu0 0.0
      %2178 = vmatpush1.msra.mxu0 0.0
      %2179 = vmatprep.subr.mxu0 0.0
      %2180 = vmatpush1.msra.mxu0 0.0
      %2181 = vmatprep.subr.mxu0 0.0
      %2182 = vmatpush1.msra.mxu0 0.0
      %2183 = vmatprep.subr.mxu0 0.0
      %2184 = vmatpush1.msra.mxu0 0.0
      %2185 = vmatprep.subr.mxu0 0.0
      %2186 = vmatpush1.msra.mxu0 0.0
      %2187 = vmatprep.subr.mxu0 0.0
      %2188 = vmatpush1.msra.mxu0 0.0
      %2189 = vmatprep.subr.mxu0 0.0
      %2190 = vmatpush1.msra.mxu0 0.0
      %2191 = vmatprep.subr.mxu0 0.0
      %2192 = vmatpush1.msra.mxu0 0.0
      %2193 = vmatprep.subr.mxu0 0.0
      %2194 = vmatpush1.msra.mxu0 0.0
      %2195 = vmatprep.subr.mxu0 0.0
      %2196 = vmatpush1.msra.mxu0 0.0
      %2197 = vmatprep.subr.mxu0 0.0
      %2198 = vmatpush1.msra.mxu0 0.0
      %2199 = vmatprep.mubr.f32.mxu0 0.0
      %v2200 = vand.u32 %v2125, 4294901760
      %v2201 = vsub.f32 %v2125, %v2200
      %v2202 = vand.u32 %v2201, 4294901760
      %v2203 = vsub.f32 %v2201, %v2202
      %v2204 = vand.u32 %v2203, 4294901760
      %2205 = vmatmul.mubr.f32.gmra.mrb[0].mxu0 %v2204
      %v2206 = vpop.f32.mrb[0].mxu0
      %v2207 = vadd.f32 0.0, %v2206
      %v2208 = vpop.f32.mrb[0].mxu0
      %v2209 = vadd.f32 0.0, %v2208
      %2210 = vdwg.mxu0
      %v2211 = vand.u32 %v2131, 4294901760
      %v2212 = vsub.f32 %v2131, %v2211
      %v2213 = vand.u32 %v2212, 4294901760
      %v2214 = vsub.f32 %v2212, %v2213
      %v2215 = vand.u32 %v2214, 4294901760
      %2216 = vmatprep.subr.mxu0 %v2215
      %v2217 = vand.u32 %v2128, 4294901760
      %v2218 = vsub.f32 %v2128, %v2217
      %v2219 = vand.u32 %v2218, 4294901760
      %v2220 = vsub.f32 %v2218, %v2219
      %v2221 = vand.u32 %v2220, 4294901760
      %2222 = vmatpush1.msra.mxu0 %v2221
      %2223 = vmatprep.subr.mxu0 0.0
      %2224 = vmatpush1.msra.mxu0 0.0
      %2225 = vmatprep.subr.mxu0 0.0
      %2226 = vmatpush1.msra.mxu0 0.0
      %2227 = vmatprep.subr.mxu0 0.0
      %2228 = vmatpush1.msra.mxu0 0.0
      %2229 = vmatprep.subr.mxu0 0.0
      %2230 = vmatpush1.msra.mxu0 0.0
      %2231 = vmatprep.subr.mxu0 0.0
      %2232 = vmatpush1.msra.mxu0 0.0
      %2233 = vmatprep.subr.mxu0 0.0
      %2234 = vmatpush1.msra.mxu0 0.0
      %2235 = vmatprep.subr.mxu0 0.0
      %2236 = vmatpush1.msra.mxu0 0.0
      %2237 = vmatprep.subr.mxu0 0.0
      %2238 = vmatpush1.msra.mxu0 0.0
      %2239 = vmatprep.subr.mxu0 0.0
      %2240 = vmatpush1.msra.mxu0 0.0
      %2241 = vmatprep.subr.mxu0 0.0
      %2242 = vmatpush1.msra.mxu0 0.0
      %2243 = vmatprep.subr.mxu0 0.0
      %2244 = vmatpush1.msra.mxu0 0.0
      %2245 = vmatprep.subr.mxu0 0.0
      %2246 = vmatpush1.msra.mxu0 0.0
      %2247 = vmatprep.subr.mxu0 0.0
      %2248 = vmatpush1.msra.mxu0 0.0
      %2249 = vmatprep.subr.mxu0 0.0
      %2250 = vmatpush1.msra.mxu0 0.0
      %2251 = vmatprep.subr.mxu0 0.0
      %2252 = vmatpush1.msra.mxu0 0.0
      %2253 = vmatprep.subr.mxu0 0.0
      %2254 = vmatpush1.msra.mxu0 0.0
      %2255 = vmatprep.subr.mxu0 0.0
      %2256 = vmatpush1.msra.mxu0 0.0
      %2257 = vmatprep.subr.mxu0 0.0
      %2258 = vmatpush1.msra.mxu0 0.0
      %2259 = vmatprep.subr.mxu0 0.0
      %2260 = vmatpush1.msra.mxu0 0.0
      %2261 = vmatprep.subr.mxu0 0.0
      %2262 = vmatpush1.msra.mxu0 0.0
      %2263 = vmatprep.subr.mxu0 0.0
      %2264 = vmatpush1.msra.mxu0 0.0
      %2265 = vmatprep.subr.mxu0 0.0
      %2266 = vmatpush1.msra.mxu0 0.0
      %2267 = vmatprep.subr.mxu0 0.0
      %2268 = vmatpush1.msra.mxu0 0.0
      %2269 = vmatprep.subr.mxu0 0.0
      %2270 = vmatpush1.msra.mxu0 0.0
      %2271 = vmatprep.subr.mxu0 0.0
      %2272 = vmatpush1.msra.mxu0 0.0
      %2273 = vmatprep.subr.mxu0 0.0
      %2274 = vmatpush1.msra.mxu0 0.0
      %2275 = vmatprep.subr.mxu0 0.0
      %2276 = vmatpush1.msra.mxu0 0.0
      %2277 = vmatprep.subr.mxu0 0.0
      %2278 = vmatpush1.msra.mxu0 0.0
      %2279 = vmatprep.subr.mxu0 0.0
      %2280 = vmatpush1.msra.mxu0 0.0
      %2281 = vmatprep.subr.mxu0 0.0
      %2282 = vmatpush1.msra.mxu0 0.0
      %2283 = vmatprep.subr.mxu0 0.0
      %2284 = vmatpush1.msra.mxu0 0.0
      %2285 = vmatprep.mubr.f32.mxu0 0.0
      %v2286 = vand.u32 %v2125, 4294901760
      %2287 = vmatmul.mubr.f32.gmra.mrb[0].mxu0 %v2286
      %v2288 = vpop.f32.mrb[0].mxu0
      %v2289 = vadd.f32 %v2207, %v2288
      %v2290 = vpop.f32.mrb[0].mxu0
      %v2291 = vadd.f32 %v2209, %v2290
      %2292 = vdwg.mxu0
      %v2293 = vand.u32 %v2131, 4294901760
      %v2294 = vsub.f32 %v2131, %v2293
      %2295 = vmatprep.subr.mxu0 %v2294
      %v2296 = vand.u32 %v2128, 4294901760
      %v2297 = vsub.f32 %v2128, %v2296
      %2298 = vmatpush1.msra.mxu0 %v2297
      %2299 = vmatprep.subr.mxu0 0.0
      %2300 = vmatpush1.msra.mxu0 0.0
      %2301 = vmatprep.subr.mxu0 0.0
      %2302 = vmatpush1.msra.mxu0 0.0
      %2303 = vmatprep.subr.mxu0 0.0
      %2304 = vmatpush1.msra.mxu0 0.0
      %2305 = vmatprep.subr.mxu0 0.0
      %2306 = vmatpush1.msra.mxu0 0.0
      %2307 = vmatprep.subr.mxu0 0.0
      %2308 = vmatpush1.msra.mxu0 0.0
      %2309 = vmatprep.subr.mxu0 0.0
      %2310 = vmatpush1.msra.mxu0 0.0
      %2311 = vmatprep.subr.mxu0 0.0
      %2312 = vmatpush1.msra.mxu0 0.0
      %2313 = vmatprep.subr.mxu0 0.0
      %2314 = vmatpush1.msra.mxu0 0.0
      %2315 = vmatprep.subr.mxu0 0.0
      %2316 = vmatpush1.msra.mxu0 0.0
      %2317 = vmatprep.subr.mxu0 0.0
      %2318 = vmatpush1.msra.mxu0 0.0
      %2319 = vmatprep.subr.mxu0 0.0
      %2320 = vmatpush1.msra.mxu0 0.0
      %2321 = vmatprep.subr.mxu0 0.0
      %2322 = vmatpush1.msra.mxu0 0.0
      %2323 = vmatprep.subr.mxu0 0.0
      %2324 = vmatpush1.msra.mxu0 0.0
      %2325 = vmatprep.subr.mxu0 0.0
      %2326 = vmatpush1.msra.mxu0 0.0
      %2327 = vmatprep.subr.mxu0 0.0
      %2328 = vmatpush1.msra.mxu0 0.0
      %2329 = vmatprep.subr.mxu0 0.0
      %2330 = vmatpush1.msra.mxu0 0.0
      %2331 = vmatprep.subr.mxu0 0.0
      %2332 = vmatpush1.msra.mxu0 0.0
      %2333 = vmatprep.subr.mxu0 0.0
      %2334 = vmatpush1.msra.mxu0 0.0
      %2335 = vmatprep.subr.mxu0 0.0
      %2336 = vmatpush1.msra.mxu0 0.0
      %2337 = vmatprep.subr.mxu0 0.0
      %2338 = vmatpush1.msra.mxu0 0.0
      %2339 = vmatprep.subr.mxu0 0.0
      %2340 = vmatpush1.msra.mxu0 0.0
      %2341 = vmatprep.subr.mxu0 0.0
      %2342 = vmatpush1.msra.mxu0 0.0
      %2343 = vmatprep.subr.mxu0 0.0
      %2344 = vmatpush1.msra.mxu0 0.0
      %2345 = vmatprep.subr.mxu0 0.0
      %2346 = vmatpush1.msra.mxu0 0.0
      %2347 = vmatprep.subr.mxu0 0.0
      %2348 = vmatpush1.msra.mxu0 0.0
      %2349 = vmatprep.subr.mxu0 0.0
      %2350 = vmatpush1.msra.mxu0 0.0
      %2351 = vmatprep.subr.mxu0 0.0
      %2352 = vmatpush1.msra.mxu0 0.0
      %2353 = vmatprep.subr.mxu0 0.0
      %2354 = vmatpush1.msra.mxu0 0.0
      %2355 = vmatprep.subr.mxu0 0.0
      %2356 = vmatpush1.msra.mxu0 0.0
      %2357 = vmatprep.subr.mxu0 0.0
      %2358 = vmatpush1.msra.mxu0 0.0
      %2359 = vmatprep.subr.mxu0 0.0
      %2360 = vmatpush1.msra.mxu0 0.0
      %2361 = vmatprep.mubr.f32.mxu0 0.0
      %v2362 = vand.u32 %v2125, 4294901760
      %v2363 = vsub.f32 %v2125, %v2362
      %2364 = vmatmul.mubr.f32.gmra.mrb[0].mxu0 %v2363
      %v2365 = vpop.f32.mrb[0].mxu0
      %v2366 = vadd.f32 %v2289, %v2365
      %v2367 = vpop.f32.mrb[0].mxu0
      %v2368 = vadd.f32 %v2291, %v2367
      %2369 = vdwg.mxu0
      %v2370 = vand.u32 %v2131, 4294901760
      %2371 = vmatprep.subr.mxu0 %v2370
      %v2372 = vand.u32 %v2128, 4294901760
      %2373 = vmatpush1.msra.mxu0 %v2372
      %2374 = vmatprep.subr.mxu0 0.0
      %2375 = vmatpush1.msra.mxu0 0.0
      %2376 = vmatprep.subr.mxu0 0.0
      %2377 = vmatpush1.msra.mxu0 0.0
      %2378 = vmatprep.subr.mxu0 0.0
      %2379 = vmatpush1.msra.mxu0 0.0
      %2380 = vmatprep.subr.mxu0 0.0
      %2381 = vmatpush1.msra.mxu0 0.0
      %2382 = vmatprep.subr.mxu0 0.0
      %2383 = vmatpush1.msra.mxu0 0.0
      %2384 = vmatprep.subr.mxu0 0.0
      %2385 = vmatpush1.msra.mxu0 0.0
      %2386 = vmatprep.subr.mxu0 0.0
      %2387 = vmatpush1.msra.mxu0 0.0
      %2388 = vmatprep.subr.mxu0 0.0
      %2389 = vmatpush1.msra.mxu0 0.0
      %2390 = vmatprep.subr.mxu0 0.0
      %2391 = vmatpush1.msra.mxu0 0.0
      %2392 = vmatprep.subr.mxu0 0.0
      %2393 = vmatpush1.msra.mxu0 0.0
      %2394 = vmatprep.subr.mxu0 0.0
      %2395 = vmatpush1.msra.mxu0 0.0
      %2396 = vmatprep.subr.mxu0 0.0
      %2397 = vmatpush1.msra.mxu0 0.0
      %2398 = vmatprep.subr.mxu0 0.0
      %2399 = vmatpush1.msra.mxu0 0.0
      %2400 = vmatprep.subr.mxu0 0.0
      %2401 = vmatpush1.msra.mxu0 0.0
      %2402 = vmatprep.subr.mxu0 0.0
      %2403 = vmatpush1.msra.mxu0 0.0
      %2404 = vmatprep.subr.mxu0 0.0
      %2405 = vmatpush1.msra.mxu0 0.0
      %2406 = vmatprep.subr.mxu0 0.0
      %2407 = vmatpush1.msra.mxu0 0.0
      %2408 = vmatprep.subr.mxu0 0.0
      %2409 = vmatpush1.msra.mxu0 0.0
      %2410 = vmatprep.subr.mxu0 0.0
      %2411 = vmatpush1.msra.mxu0 0.0
      %2412 = vmatprep.subr.mxu0 0.0
      %2413 = vmatpush1.msra.mxu0 0.0
      %2414 = vmatprep.subr.mxu0 0.0
      %2415 = vmatpush1.msra.mxu0 0.0
      %2416 = vmatprep.subr.mxu0 0.0
      %2417 = vmatpush1.msra.mxu0 0.0
      %2418 = vmatprep.subr.mxu0 0.0
      %2419 = vmatpush1.msra.mxu0 0.0
      %2420 = vmatprep.subr.mxu0 0.0
      %2421 = vmatpush1.msra.mxu0 0.0
      %2422 = vmatprep.subr.mxu0 0.0
      %2423 = vmatpush1.msra.mxu0 0.0
      %2424 = vmatprep.subr.mxu0 0.0
      %2425 = vmatpush1.msra.mxu0 0.0
      %2426 = vmatprep.subr.mxu0 0.0
      %2427 = vmatpush1.msra.mxu0 0.0
      %2428 = vmatprep.subr.mxu0 0.0
      %2429 = vmatpush1.msra.mxu0 0.0
      %2430 = vmatprep.subr.mxu0 0.0
      %2431 = vmatpush1.msra.mxu0 0.0
      %2432 = vmatprep.subr.mxu0 0.0
      %2433 = vmatpush1.msra.mxu0 0.0
      %2434 = vmatprep.subr.mxu0 0.0
      %2435 = vmatpush1.msra.mxu0 0.0
      %2436 = vmatprep.mubr.f32.mxu0 0.0
      %v2437 = vand.u32 %v2125, 4294901760
      %v2438 = vsub.f32 %v2125, %v2437
      %v2439 = vand.u32 %v2438, 4294901760
      %2440 = vmatmul.mubr.f32.gmra.mrb[0].mxu0 %v2439
      %v2441 = vpop.f32.mrb[0].mxu0
      %v2442 = vadd.f32 %v2366, %v2441
      %v2443 = vpop.f32.mrb[0].mxu0
      %v2444 = vadd.f32 %v2368, %v2443
      %2445 = vdwg.mxu0
      %v2446 = vand.u32 %v2131, 4294901760
      %v2447 = vsub.f32 %v2131, %v2446
      %v2448 = vand.u32 %v2447, 4294901760
      %2449 = vmatprep.subr.mxu0 %v2448
      %v2450 = vand.u32 %v2128, 4294901760
      %v2451 = vsub.f32 %v2128, %v2450
      %v2452 = vand.u32 %v2451, 4294901760
      %2453 = vmatpush1.msra.mxu0 %v2452
      %2454 = vmatprep.subr.mxu0 0.0
      %2455 = vmatpush1.msra.mxu0 0.0
      %2456 = vmatprep.subr.mxu0 0.0
      %2457 = vmatpush1.msra.mxu0 0.0
      %2458 = vmatprep.subr.mxu0 0.0
      %2459 = vmatpush1.msra.mxu0 0.0
      %2460 = vmatprep.subr.mxu0 0.0
      %2461 = vmatpush1.msra.mxu0 0.0
      %2462 = vmatprep.subr.mxu0 0.0
      %2463 = vmatpush1.msra.mxu0 0.0
      %2464 = vmatprep.subr.mxu0 0.0
      %2465 = vmatpush1.msra.mxu0 0.0
      %2466 = vmatprep.subr.mxu0 0.0
      %2467 = vmatpush1.msra.mxu0 0.0
      %2468 = vmatprep.subr.mxu0 0.0
      %2469 = vmatpush1.msra.mxu0 0.0
      %2470 = vmatprep.subr.mxu0 0.0
      %2471 = vmatpush1.msra.mxu0 0.0
      %2472 = vmatprep.subr.mxu0 0.0
      %2473 = vmatpush1.msra.mxu0 0.0
      %2474 = vmatprep.subr.mxu0 0.0
      %2475 = vmatpush1.msra.mxu0 0.0
      %2476 = vmatprep.subr.mxu0 0.0
      %2477 = vmatpush1.msra.mxu0 0.0
      %2478 = vmatprep.subr.mxu0 0.0
      %2479 = vmatpush1.msra.mxu0 0.0
      %2480 = vmatprep.subr.mxu0 0.0
      %2481 = vmatpush1.msra.mxu0 0.0
      %2482 = vmatprep.subr.mxu0 0.0
      %2483 = vmatpush1.msra.mxu0 0.0
      %2484 = vmatprep.subr.mxu0 0.0
      %2485 = vmatpush1.msra.mxu0 0.0
      %2486 = vmatprep.subr.mxu0 0.0
      %2487 = vmatpush1.msra.mxu0 0.0
      %2488 = vmatprep.subr.mxu0 0.0
      %2489 = vmatpush1.msra.mxu0 0.0
      %2490 = vmatprep.subr.mxu0 0.0
      %2491 = vmatpush1.msra.mxu0 0.0
      %2492 = vmatprep.subr.mxu0 0.0
      %2493 = vmatpush1.msra.mxu0 0.0
      %2494 = vmatprep.subr.mxu0 0.0
      %2495 = vmatpush1.msra.mxu0 0.0
      %2496 = vmatprep.subr.mxu0 0.0
      %2497 = vmatpush1.msra.mxu0 0.0
      %2498 = vmatprep.subr.mxu0 0.0
      %2499 = vmatpush1.msra.mxu0 0.0
      %2500 = vmatprep.subr.mxu0 0.0
      %2501 = vmatpush1.msra.mxu0 0.0
      %2502 = vmatprep.subr.mxu0 0.0
      %2503 = vmatpush1.msra.mxu0 0.0
      %2504 = vmatprep.subr.mxu0 0.0
      %2505 = vmatpush1.msra.mxu0 0.0
      %2506 = vmatprep.subr.mxu0 0.0
      %2507 = vmatpush1.msra.mxu0 0.0
      %2508 = vmatprep.subr.mxu0 0.0
      %2509 = vmatpush1.msra.mxu0 0.0
      %2510 = vmatprep.subr.mxu0 0.0
      %2511 = vmatpush1.msra.mxu0 0.0
      %2512 = vmatprep.subr.mxu0 0.0
      %2513 = vmatpush1.msra.mxu0 0.0
      %2514 = vmatprep.subr.mxu0 0.0
      %2515 = vmatpush1.msra.mxu0 0.0
      %2516 = vmatprep.mubr.f32.mxu0 0.0
      %v2517 = vand.u32 %v2125, 4294901760
      %2518 = vmatmul.mubr.f32.gmra.mrb[0].mxu0 %v2517
      %v2519 = vpop.f32.mrb[0].mxu0
      %v2520 = vadd.f32 %v2442, %v2519
      %v2521 = vpop.f32.mrb[0].mxu0
      %v2522 = vadd.f32 %v2444, %v2521
      %2523 = vdwg.mxu0
      %v2524 = vand.u32 %v2131, 4294901760
      %2525 = vmatprep.subr.mxu0 %v2524
      %v2526 = vand.u32 %v2128, 4294901760
      %2527 = vmatpush1.msra.mxu0 %v2526
      %2528 = vmatprep.subr.mxu0 0.0
      %2529 = vmatpush1.msra.mxu0 0.0
      %2530 = vmatprep.subr.mxu0 0.0
      %2531 = vmatpush1.msra.mxu0 0.0
      %2532 = vmatprep.subr.mxu0 0.0
      %2533 = vmatpush1.msra.mxu0 0.0
      %2534 = vmatprep.subr.mxu0 0.0
      %2535 = vmatpush1.msra.mxu0 0.0
      %2536 = vmatprep.subr.mxu0 0.0
      %2537 = vmatpush1.msra.mxu0 0.0
      %2538 = vmatprep.subr.mxu0 0.0
      %2539 = vmatpush1.msra.mxu0 0.0
      %2540 = vmatprep.subr.mxu0 0.0
      %2541 = vmatpush1.msra.mxu0 0.0
      %2542 = vmatprep.subr.mxu0 0.0
      %2543 = vmatpush1.msra.mxu0 0.0
      %2544 = vmatprep.subr.mxu0 0.0
      %2545 = vmatpush1.msra.mxu0 0.0
      %2546 = vmatprep.subr.mxu0 0.0
      %2547 = vmatpush1.msra.mxu0 0.0
      %2548 = vmatprep.subr.mxu0 0.0
      %2549 = vmatpush1.msra.mxu0 0.0
      %2550 = vmatprep.subr.mxu0 0.0
      %2551 = vmatpush1.msra.mxu0 0.0
      %2552 = vmatprep.subr.mxu0 0.0
      %2553 = vmatpush1.msra.mxu0 0.0
      %2554 = vmatprep.subr.mxu0 0.0
      %2555 = vmatpush1.msra.mxu0 0.0
      %2556 = vmatprep.subr.mxu0 0.0
      %2557 = vmatpush1.msra.mxu0 0.0
      %2558 = vmatprep.subr.mxu0 0.0
      %2559 = vmatpush1.msra.mxu0 0.0
      %2560 = vmatprep.subr.mxu0 0.0
      %2561 = vmatpush1.msra.mxu0 0.0
      %2562 = vmatprep.subr.mxu0 0.0
      %2563 = vmatpush1.msra.mxu0 0.0
      %2564 = vmatprep.subr.mxu0 0.0
      %2565 = vmatpush1.msra.mxu0 0.0
      %2566 = vmatprep.subr.mxu0 0.0
      %2567 = vmatpush1.msra.mxu0 0.0
      %2568 = vmatprep.subr.mxu0 0.0
      %2569 = vmatpush1.msra.mxu0 0.0
      %2570 = vmatprep.subr.mxu0 0.0
      %2571 = vmatpush1.msra.mxu0 0.0
      %2572 = vmatprep.subr.mxu0 0.0
      %2573 = vmatpush1.msra.mxu0 0.0
      %2574 = vmatprep.subr.mxu0 0.0
      %2575 = vmatpush1.msra.mxu0 0.0
      %2576 = vmatprep.subr.mxu0 0.0
      %2577 = vmatpush1.msra.mxu0 0.0
      %2578 = vmatprep.subr.mxu0 0.0
      %2579 = vmatpush1.msra.mxu0 0.0
      %2580 = vmatprep.subr.mxu0 0.0
      %2581 = vmatpush1.msra.mxu0 0.0
      %2582 = vmatprep.subr.mxu0 0.0
      %2583 = vmatpush1.msra.mxu0 0.0
      %2584 = vmatprep.subr.mxu0 0.0
      %2585 = vmatpush1.msra.mxu0 0.0
      %2586 = vmatprep.subr.mxu0 0.0
      %2587 = vmatpush1.msra.mxu0 0.0
      %2588 = vmatprep.subr.mxu0 0.0
      %2589 = vmatpush1.msra.mxu0 0.0
      %2590 = vmatprep.mubr.f32.mxu0 0.0
      %v2591 = vand.u32 %v2125, 4294901760
      %2592 = vmatmul.mubr.f32.gmra.mrb[0].mxu0 %v2591
      %v2593 = vpop.f32.mrb[0].mxu0
      %v2594 = vadd.f32 %v2520, %v2593
      %v2595 = vpop.f32.mrb[0].mxu0
      %v2596 = vadd.f32 %v2522, %v2595
      %2597 = vdwg.mxu0
      %v2598 = vadd.f32 %v2594, %v2596
      %2599 = vadd.xlane.f32.xlu0 %v2598
      %v2600 = vpop.xlane.xlu0 %2599
      %v2601 = vmul.f32 %v2600, 0.00390625
      %v2602 = vsub.f32 %v2594, %v2601
      %v2603 = vsub.f32 %v2596, %v2601
      %v2604 = vmul.f32 %v2602, %v2602
      %v2605 = vmul.f32 %v2603, %v2603
      %v2606 = vadd.f32 %v2604, %v2605
      %2607 = vadd.xlane.f32.xlu0 %v2606
      %v2608 = vpop.xlane.xlu0 %2607
      %v2609 = vmul.f32 %v2608, 0.00390625
      %v2610 = vadd.f32 %v2609, 1e-05
      %v2611 = vrsqrt.pop %v2610
      %v2612 = vmul.f32 %v2602, %v2611
      %v2613 = vmul.f32 %v2603, %v2611
      %vm2614 = vcmp.ge.f32.partialorder %v2612, 0.0
      %vm2615 = vcmp.ge.f32.partialorder %v2613, 0.0
      %v2616 = vmul.f32 %v2612, 0.01
      %v2617 = vmul.f32 %v2613, 0.01
      %v2618 = vsel %vm2614, %v2612, %v2616
      %v2619 = vsel %vm2615, %v2613, %v2617
      %2620 = vst [vmem:[%s170] sm:$0xff] %v2618
      %2621 = vst [vmem:[%s170 + $0x8] sm:$0xff] %v2619
      %p2622 = scmp.lt.s32.totalorder %s14, 1
      %s2623 = scalar_select %p2622, %s14, 1
      %s2624 = smul.addr %s2623, 2
      %s2625 = smul.addr %s2624, 8
      %s2626 = scalar_lea.vmem %s3, %s2625
      // Predicated region
      $region33: #{sparse_proj_layer.1} parent=31 // pred_check
        %p2627 = pneg %p100
      $region34: #{sparse_proj_layer.1} parent=31 // pred_check_branch
        %2629 = sbr.rel (%p2627) target = $region36
      $region35: #{sparse_proj_layer.1} parent=31 // pred_region
        _
      $region36: #{sparse_proj_layer.1} parent=31 // pred_fallthru
        _
    $region32: #{sparse_proj_layer.1} parent=5 // pred_fallthru
      _
    %p2630 = scmp.le.s32.totalorder 2, %s9
    // Predicated region
    $region37: #{sparse_proj_layer.1} parent=5 // pred_check
      %p2631 = pneg %p2630
    $region38: #{sparse_proj_layer.1} parent=5 // pred_check_branch
      %2633 = sbr.rel (%p2631) target = $region40
    $region39: #{sparse_proj_layer.1} parent=5 // pred_region
      %s2634 = ssub.s32 %s9, 2
      // Predicated region
      $region41: #{sparse_proj_layer.1} parent=39 // pred_check
        %p2635 = pneg %p106
      $region42: #{sparse_proj_layer.1} parent=39 // pred_check_branch
        %2637 = sbr.rel (%p2635) target = $region44
      $region43: #{sparse_proj_layer.1} parent=39 // pred_region
        %p2638 = scmp.lt.s32.totalorder %s15, 1
        %s2639 = scalar_select %p2638, %s15, 1
        %s2640 = smul.addr %s2639, 2
        %s2641 = smul.addr %s2640, 8
        %s2642 = scalar_lea.vmem %s3, %s2641
      $region44: #{sparse_proj_layer.1} parent=39 // pred_fallthru
        _
    $region40: #{sparse_proj_layer.1} parent=5 // pred_fallthru
      _
  $region6: #{sparse_proj_layer.1} parent=0 // loop_footer
    %s13 = sadd.s32 1, %s9
  $region7: #{sparse_proj_layer.1} parent=0 // loop_footer_branch
    %8 = sbr.rel target = $region3
  $region8: #{sparse_proj_layer.1} parent=0 // loop_exit
    _

</llo_original>
